<compile_context>
chip_gen: v6e
topology: v6e:2x2x1
jax: 0.10.0
libtpu: 0.0.40
codegen_flags: <defaults>
</compile_context>

<pallas_src>
import functools

import jax
import jax.numpy as jnp
from jax.experimental import pallas as pl
from jax.experimental.pallas import tpu as pltpu


def _round_up(x, m):
    return ((x + m - 1) // m) * m


def _fused_mlp_kernel(*refs, n_layers: int):
    """Fused MLP head: every Linear (+ReLU except last) in one kernel body.

    refs = (x_ref, w_ref_0, b_ref_0, ..., w_ref_{L-1}, b_ref_{L-1}, o_ref)

    x_ref : (TM, D0)        f32  VMEM row tile
    w_ref : (D_in, D_out)   bf16 VMEM (resident across row tiles)
    b_ref : (1, D_out)      f32  VMEM (resident across row tiles)
    o_ref : (TM, D_last)    f32  VMEM row tile
    """
    x_ref = refs[0]
    o_ref = refs[-1]
    wb_refs = refs[1:-1]

    h = x_ref[...]                                # f32 activations
    for layer in range(n_layers):
        w = wb_refs[2 * layer][...]               # (D_in, D_out) bf16
        b = wb_refs[2 * layer + 1][...]           # (1, D_out)   f32
        # MXU: bf16 x bf16 -> f32 accumulation.
        h = jnp.dot(h.astype(w.dtype), w, preferred_element_type=jnp.float32)
        h = h + b                                 # VPU bias add (broadcast over rows)
        if layer < n_layers - 1:
            h = jnp.maximum(h, 0.0)               # fused ReLU (all but last layer)
    o_ref[...] = h.astype(o_ref.dtype)


def _default_row_tile():
    """Pick the row tile per TPU generation.

    v6e / v7x: MXU is 256-wide in M, so 256-row tiles double MXU fill vs 128
    and halve grid-step overhead.  v5e: 128 already fills its 4x128^2 MXU; the
    only lever is fewer/larger steps, so use 512.
    """
    try:
        kind = jax.devices()[0].device_kind.lower()
    except Exception:
        kind = ""
    if "v5 lite" in kind or "v5lite" in kind or "v5e" in kind:
        return 512
    return 256


def _derive_vmem_limit_bytes(tm, din0, layer_dims, dout_pad, x_itemsize, out_itemsize):
    """Size-derived scoped-VMEM budget (keeps 'fail loudly on scale-up' honest)."""
    total = 2 * tm * din0 * x_itemsize            # input row tile, double-buffered
    total += 2 * tm * dout_pad * out_itemsize     # output row tile, double-buffered
    for din_l, dout_l in layer_dims:              # resident weights/biases (1 buffer)
        total += din_l * dout_l * 2                               # bf16 weight
        total += 8 * _round_up(dout_l, 128) * 4                   # (1,dout) f32 bias, (8,128)-padded
    widest = max([din0] + [d for _, d in layer_dims])
    total += 2 * tm * widest * 4                  # in-kernel activation working set / spill headroom
    # 2x slack for compiler-internal scratch; clamp to [16 MiB, 64 MiB] (v7x physical = 64 MiB).
    return max(16 * 1024 * 1024, min(64 * 1024 * 1024, 2 * total))


def mlp_head_forward(x, params, *, row_tile=None, out_dtype=None):
    """Run the whole MLP head as one fused pallas_call over a 1-D row grid."""
    B, Din = x.shape
    n_layers = len(params)
    out_dtype = x.dtype if out_dtype is None else jnp.dtype(out_dtype)

    if row_tile is None:
        row_tile = _default_row_tile()

    # Lane-width guard on the final layer: pad to a multiple of 128 lanes so
    # output stores are dense (unmasked vst); slice back after the call.
    Dout = params[-1][0].shape[1]
    Dout_pad = _round_up(Dout, 128)
    if Dout_pad != Dout:
        w_last, b_last = params[-1]
        pad = Dout_pad - Dout
        params = list(params[:-1]) + [
            (jnp.pad(w_last, ((0, 0), (0, pad))),
             jnp.pad(b_last, ((0, 0), (0, pad))))]

    # Fixed row tile; ragged batches use a cdiv grid with a masked partial last
    # tile (rows are independent, so padding rows never contaminate valid ones).
    # Never fall back to a single (B, Din) block -> no O(B) VMEM blow-up.
    tm = B if B <= row_tile else row_tile
    grid = (pl.cdiv(B, tm),)

    layer_dims = [(w.shape[0], w.shape[1]) for w, _ in params]
    vmem_limit = _derive_vmem_limit_bytes(
        tm, Din, layer_dims, Dout_pad, x.dtype.itemsize, out_dtype.itemsize)

    flops = 2 * B * sum(din_l * dout_l for din_l, dout_l in layer_dims)
    bytes_accessed = (
        B * Din * x.dtype.itemsize
        + sum(w.size * w.dtype.itemsize + b.size * b.dtype.itemsize for w, b in params)
        + B * Dout_pad * out_dtype.itemsize)
    cost = pl.CostEstimate(flops=flops, transcendentals=0,
                           bytes_accessed=bytes_accessed)

    flat_args = [x]
    for w, b in params:
        flat_args += [w, b]

    kernel = functools.partial(_fused_mlp_kernel, n_layers=n_layers)
    vmem = pltpu.MemorySpace.VMEM

    def build(single_buffer_weights):
        wb_kwargs = {}
        if single_buffer_weights:
            # Constant index map -> weights/biases never change; one buffer is
            # enough (frees the headroom that lets tm grow on v7x's 64 MiB).
            wb_kwargs["pipeline_mode"] = pl.Buffered(1)

        in_specs = [pl.BlockSpec((tm, Din), lambda i: (i, 0), memory_space=vmem)]
        for din_l, dout_l in layer_dims:
            in_specs.append(pl.BlockSpec((din_l, dout_l), lambda i: (0, 0),
                                         memory_space=vmem, **wb_kwargs))
            in_specs.append(pl.BlockSpec((1, dout_l), lambda i: (0, 0),
                                         memory_space=vmem, **wb_kwargs))
        out_spec = pl.BlockSpec((tm, Dout_pad), lambda i: (i, 0), memory_space=vmem)

        return pl.pallas_call(
            kernel,
            out_shape=jax.ShapeDtypeStruct((B, Dout_pad), out_dtype),
            grid=grid,
            in_specs=in_specs,
            out_specs=out_spec,
            cost_estimate=cost,
            compiler_params=pltpu.CompilerParams(
                # Row axis is independent; on v7x this lets the two TensorCores
                # split the row tiles.  (Verify the 2-TC split in an xprof
                # trace; if one core idles, switch to pltpu.CORE_PARALLEL.)
                dimension_semantics=("parallel",),
                vmem_limit_bytes=vmem_limit,
            ),
        )

    try:
        out = build(single_buffer_weights=True)(*flat_args)
    except Exception:
        # pipeline_mode=pl.Buffered(1) is a VMEM-headroom-only optimisation;
        # fall back to default double-buffering if this build rejects it.
        out = build(single_buffer_weights=False)(*flat_args)

    if Dout_pad != Dout:
        out = out[:, :Dout]
    return out


def init_mlp_head_params(key, neurons_layer):
    """fp32 params matching nn.Linear init.

    PyTorch nn.Linear(n_in, n_out): weight (n_out, n_in), bias (n_out,), both
    ~ U(-1/sqrt(n_in), 1/sqrt(n_in)).  Stored transposed to (n_in, n_out) with
    bias as (1, n_out).
    """
    params = []
    for n_in, n_out in zip(neurons_layer[:-1], neurons_layer[1:]):
        key, kw, kb = jax.random.split(key, 3)
        bound = 1.0 / float(n_in) ** 0.5
        w = jax.random.uniform(kw, (n_out, n_in), jnp.float32, -bound, bound)
        b = jax.random.uniform(kb, (n_out,), jnp.float32, -bound, bound)
        params.append((jnp.transpose(w), b.reshape(1, n_out)))
    return params


def cast_params_for_kernel(params_f32):
    """bf16 weights (MXU-native, half the weight DMA), f32 biases."""
    return [(w.astype(jnp.bfloat16), b) for w, b in params_f32]


def mlp_head_reference(x, params):
    """Pure-JAX reference (works for both bf16-weight and fp32-weight params)."""
    n_layers = len(params)
    h = x
    for i, (w, b) in enumerate(params):
        h = jnp.dot(h.astype(w.dtype), w, preferred_element_type=jnp.float32) + b
        if i < n_layers - 1:
            h = jnp.maximum(h, 0.0)
    return h.astype(x.dtype)


if __name__ == "__main__":
    neurons_layer = [512, 256, 128]   # default MLPHead structure
    batch = 300                       # non-divisible batch exercises the
                                      # cdiv grid + masked partial-tile path

    key = jax.random.PRNGKey(0)
    key, kx = jax.random.split(key)
    x = jax.random.normal(kx, (batch, neurons_layer[0]), jnp.float32)

    params_f32 = init_mlp_head_params(key, neurons_layer)
    params = cast_params_for_kernel(params_f32)

    out = jax.block_until_ready(mlp_head_forward(x, params))
    assert out.shape == (batch, neurons_layer[-1])

    # Matched-precision reference (bf16 weights, f32 accumulation): tight check.
    ref = mlp_head_reference(x, params)
    assert jnp.allclose(out, ref, atol=1e-2, rtol=1e-2), "mismatch vs bf16 reference"

    # Full-fp32 reference (PyTorch-equivalent numerics): looser tolerance that
    # bounds the bf16-weight quantisation drift.
    ref32 = mlp_head_reference(x, params_f32)
    assert jnp.allclose(out, ref32, atol=5e-2, rtol=5e-2), "excess drift vs fp32 reference"

    print("KERNEL_OK")
</pallas_src>

<mosaic_0001>
module attributes {stable_mosaic.version = 11 : i64} {
  func.func @_fused_mlp_kernel(%arg0: i32, %arg1: memref<256x512xf32, #tpu.memory_space<vmem>>, %arg2: memref<512x256xbf16, #tpu.memory_space<vmem>>, %arg3: memref<1x256xf32, #tpu.memory_space<vmem>>, %arg4: memref<256x128xbf16, #tpu.memory_space<vmem>>, %arg5: memref<1x128xf32, #tpu.memory_space<vmem>>, %arg6: memref<256x128xf32, #tpu.memory_space<vmem>>) attributes {dimension_semantics = [#tpu.dimension_semantics<parallel>], iteration_bounds = array<i64: 2>, scalar_prefetch = 0 : i64, scratch_operands = 0 : i64, tpu.core_type = #tpu.core_type<tc>, window_params = [{transform_indices = @transform_0, window_bounds = array<i64: 256, 512>}, {pipeline_mode = #tpu.pipeline_mode<synchronous>, transform_indices = @transform_1, window_bounds = array<i64: 512, 256>}, {pipeline_mode = #tpu.pipeline_mode<synchronous>, transform_indices = @transform_2, window_bounds = array<i64: 1, 256>}, {pipeline_mode = #tpu.pipeline_mode<synchronous>, transform_indices = @transform_3, window_bounds = array<i64: 256, 128>}, {pipeline_mode = #tpu.pipeline_mode<synchronous>, transform_indices = @transform_4, window_bounds = array<i64: 1, 128>}, {transform_indices = @transform_5, window_bounds = array<i64: 256, 128>}]} {
    %c0 = arith.constant 0 : index
    %c0_0 = arith.constant 0 : index
    %0 = vector.load %arg1[%c0, %c0_0] : memref<256x512xf32, #tpu.memory_space<vmem>>, vector<256x512xf32>
    %c0_1 = arith.constant 0 : index
    %c0_2 = arith.constant 0 : index
    %1 = vector.load %arg2[%c0_1, %c0_2] : memref<512x256xbf16, #tpu.memory_space<vmem>>, vector<512x256xbf16>
    %c0_3 = arith.constant 0 : index
    %c0_4 = arith.constant 0 : index
    %2 = vector.load %arg3[%c0_3, %c0_4] : memref<1x256xf32, #tpu.memory_space<vmem>>, vector<1x256xf32>
    %3 = arith.truncf %0 : vector<256x512xf32> to vector<256x512xbf16>
    %cst = arith.constant dense<0.000000e+00> : vector<256x256xf32>
    %4 = tpu.matmul %3, %1, %cst {dimension_numbers = #tpu.dot_dimension_numbers<[1], [0], [0], [1], [0, 0, 1, 1], [], []>} : vector<256x512xbf16>, vector<512x256xbf16>, vector<256x256xf32> -> vector<256x256xf32>
    %5 = vector.broadcast %2 : vector<1x256xf32> to vector<256x256xf32>
    %6 = arith.addf %4, %5 : vector<256x256xf32>
    %cst_5 = arith.constant 0.000000e+00 : f32
    %7 = vector.broadcast %cst_5 : f32 to vector<256x256xf32>
    %8 = arith.maximumf %6, %7 : vector<256x256xf32>
    %c0_6 = arith.constant 0 : index
    %c0_7 = arith.constant 0 : index
    %9 = vector.load %arg4[%c0_6, %c0_7] : memref<256x128xbf16, #tpu.memory_space<vmem>>, vector<256x128xbf16>
    %c0_8 = arith.constant 0 : index
    %c0_9 = arith.constant 0 : index
    %10 = vector.load %arg5[%c0_8, %c0_9] : memref<1x128xf32, #tpu.memory_space<vmem>>, vector<1x128xf32>
    %11 = arith.truncf %8 : vector<256x256xf32> to vector<256x256xbf16>
    %cst_10 = arith.constant dense<0.000000e+00> : vector<256x128xf32>
    %12 = tpu.matmul %11, %9, %cst_10 {dimension_numbers = #tpu.dot_dimension_numbers<[1], [0], [0], [1], [0, 0, 1, 1], [], []>} : vector<256x256xbf16>, vector<256x128xbf16>, vector<256x128xf32> -> vector<256x128xf32>
    %13 = vector.broadcast %10 : vector<1x128xf32> to vector<256x128xf32>
    %14 = arith.addf %12, %13 : vector<256x128xf32>
    %c0_11 = arith.constant 0 : index
    %c0_12 = arith.constant 0 : index
    %15 = vector.load %arg6[%c0_11, %c0_12] : memref<256x128xf32, #tpu.memory_space<vmem>>, vector<256x128xf32>
    tpu.vector_store %arg6[%c0_11, %c0_12], %14 {strides = array<i32>} : memref<256x128xf32, #tpu.memory_space<vmem>>, vector<256x128xf32>,
    return
  }
  func.func @transform_0(%arg0: i32) -> (i32, i32) {
    %c0_i32 = arith.constant 0 : i32
    %c0_i32_0 = arith.constant 0 : i32
    return %arg0, %c0_i32 : i32, i32
  }
  func.func @transform_1(%arg0: i32) -> (i32, i32) {
    %c0_i32 = arith.constant 0 : i32
    %c0_i32_0 = arith.constant 0 : i32
    %c0_i32_1 = arith.constant 0 : i32
    return %c0_i32, %c0_i32_0 : i32, i32
  }
  func.func @transform_2(%arg0: i32) -> (i32, i32) {
    %c0_i32 = arith.constant 0 : i32
    %c0_i32_0 = arith.constant 0 : i32
    %c0_i32_1 = arith.constant 0 : i32
    return %c0_i32, %c0_i32_0 : i32, i32
  }
  func.func @transform_3(%arg0: i32) -> (i32, i32) {
    %c0_i32 = arith.constant 0 : i32
    %c0_i32_0 = arith.constant 0 : i32
    %c0_i32_1 = arith.constant 0 : i32
    return %c0_i32, %c0_i32_0 : i32, i32
  }
  func.func @transform_4(%arg0: i32) -> (i32, i32) {
    %c0_i32 = arith.constant 0 : i32
    %c0_i32_0 = arith.constant 0 : i32
    %c0_i32_1 = arith.constant 0 : i32
    return %c0_i32, %c0_i32_0 : i32, i32
  }
  func.func @transform_5(%arg0: i32) -> (i32, i32) {
    %c0_i32 = arith.constant 0 : i32
    %c0_i32_0 = arith.constant 0 : i32
    return %arg0, %c0_i32 : i32, i32
  }
}

module attributes {stable_mosaic.version = 11 : i64} {
  func.func @_fused_mlp_kernel(%arg0: i32, %arg1: memref<256x512xf32, #tpu.memory_space<vmem>>, %arg2: memref<512x256xbf16, #tpu.memory_space<vmem>>, %arg3: memref<1x256xf32, #tpu.memory_space<vmem>>, %arg4: memref<256x128xbf16, #tpu.memory_space<vmem>>, %arg5: memref<1x128xf32, #tpu.memory_space<vmem>>, %arg6: memref<256x128xf32, #tpu.memory_space<vmem>>) attributes {dimension_semantics = [#tpu.dimension_semantics<parallel>], iteration_bounds = array<i64: 2>, scalar_prefetch = 0 : i64, scratch_operands = 0 : i64, tpu.core_type = #tpu.core_type<tc>, window_params = [{transform_indices = @transform_0, window_bounds = array<i64: 256, 512>}, {pipeline_mode = #tpu.pipeline_mode<synchronous>, transform_indices = @transform_1, window_bounds = array<i64: 512, 256>}, {pipeline_mode = #tpu.pipeline_mode<synchronous>, transform_indices = @transform_2, window_bounds = array<i64: 1, 256>}, {pipeline_mode = #tpu.pipeline_mode<synchronous>, transform_indices = @transform_3, window_bounds = array<i64: 256, 128>}, {pipeline_mode = #tpu.pipeline_mode<synchronous>, transform_indices = @transform_4, window_bounds = array<i64: 1, 128>}, {transform_indices = @transform_5, window_bounds = array<i64: 256, 128>}]} {
    %c0 = arith.constant 0 : index
    %c0_0 = arith.constant 0 : index
    %0 = vector.load %arg1[%c0, %c0_0] : memref<256x512xf32, #tpu.memory_space<vmem>>, vector<256x512xf32>
    %c0_1 = arith.constant 0 : index
    %c0_2 = arith.constant 0 : index
    %1 = vector.load %arg2[%c0_1, %c0_2] : memref<512x256xbf16, #tpu.memory_space<vmem>>, vector<512x256xbf16>
    %c0_3 = arith.constant 0 : index
    %c0_4 = arith.constant 0 : index
    %2 = vector.load %arg3[%c0_3, %c0_4] : memref<1x256xf32, #tpu.memory_space<vmem>>, vector<1x256xf32>
    %3 = arith.truncf %0 : vector<256x512xf32> to vector<256x512xbf16>
    %cst = arith.constant dense<0.000000e+00> : vector<256x256xf32>
    %4 = tpu.matmul %3, %1, %cst {dimension_numbers = #tpu.dot_dimension_numbers<[1], [0], [0], [1], [0, 0, 1, 1], [], []>} : vector<256x512xbf16>, vector<512x256xbf16>, vector<256x256xf32> -> vector<256x256xf32>
    %5 = vector.broadcast %2 : vector<1x256xf32> to vector<256x256xf32>
    %6 = arith.addf %4, %5 : vector<256x256xf32>
    %cst_5 = arith.constant 0.000000e+00 : f32
    %7 = vector.broadcast %cst_5 : f32 to vector<256x256xf32>
    %8 = arith.maximumf %6, %7 : vector<256x256xf32>
    %c0_6 = arith.constant 0 : index
    %c0_7 = arith.constant 0 : index
    %9 = vector.load %arg4[%c0_6, %c0_7] : memref<256x128xbf16, #tpu.memory_space<vmem>>, vector<256x128xbf16>
    %c0_8 = arith.constant 0 : index
    %c0_9 = arith.constant 0 : index
    %10 = vector.load %arg5[%c0_8, %c0_9] : memref<1x128xf32, #tpu.memory_space<vmem>>, vector<1x128xf32>
    %11 = arith.truncf %8 : vector<256x256xf32> to vector<256x256xbf16>
    %cst_10 = arith.constant dense<0.000000e+00> : vector<256x128xf32>
    %12 = tpu.matmul %11, %9, %cst_10 {dimension_numbers = #tpu.dot_dimension_numbers<[1], [0], [0], [1], [0, 0, 1, 1], [], []>} : vector<256x256xbf16>, vector<256x128xbf16>, vector<256x128xf32> -> vector<256x128xf32>
    %13 = vector.broadcast %10 : vector<1x128xf32> to vector<256x128xf32>
    %14 = arith.addf %12, %13 : vector<256x128xf32>
    %c0_11 = arith.constant 0 : index
    %c0_12 = arith.constant 0 : index
    %15 = vector.load %arg6[%c0_11, %c0_12] : memref<256x128xf32, #tpu.memory_space<vmem>>, vector<256x128xf32>
    tpu.vector_store %arg6[%c0_11, %c0_12], %14 {strides = array<i32>} : memref<256x128xf32, #tpu.memory_space<vmem>>, vector<256x128xf32>,
    return
  }
  func.func @transform_0(%arg0: i32) -> (i32, i32) {
    %c0_i32 = arith.constant 0 : i32
    %c0_i32_0 = arith.constant 0 : i32
    return %arg0, %c0_i32 : i32, i32
  }
  func.func @transform_1(%arg0: i32) -> (i32, i32) {
    %c0_i32 = arith.constant 0 : i32
    %c0_i32_0 = arith.constant 0 : i32
    %c0_i32_1 = arith.constant 0 : i32
    return %c0_i32, %c0_i32_0 : i32, i32
  }
  func.func @transform_2(%arg0: i32) -> (i32, i32) {
    %c0_i32 = arith.constant 0 : i32
    %c0_i32_0 = arith.constant 0 : i32
    %c0_i32_1 = arith.constant 0 : i32
    return %c0_i32, %c0_i32_0 : i32, i32
  }
  func.func @transform_3(%arg0: i32) -> (i32, i32) {
    %c0_i32 = arith.constant 0 : i32
    %c0_i32_0 = arith.constant 0 : i32
    %c0_i32_1 = arith.constant 0 : i32
    return %c0_i32, %c0_i32_0 : i32, i32
  }
  func.func @transform_4(%arg0: i32) -> (i32, i32) {
    %c0_i32 = arith.constant 0 : i32
    %c0_i32_0 = arith.constant 0 : i32
    %c0_i32_1 = arith.constant 0 : i32
    return %c0_i32, %c0_i32_0 : i32, i32
  }
  func.func @transform_5(%arg0: i32) -> (i32, i32) {
    %c0_i32 = arith.constant 0 : i32
    %c0_i32_0 = arith.constant 0 : i32
    return %arg0, %c0_i32 : i32, i32
  }
}

</mosaic_0001>

<llo_original>
// kernel: tpu_custom_call.1
$region0: #{tpu_custom_call.1}
  #allocation0 [shape = 'u32[]', space=smem, size = 0x4, offset = 0x4, fixed_abs, tag = 'smem constant byte address 0x4 - core index']
  #allocation1 [shape = 'u32[144,128]{1,0:T(1,128)}', space=vmem, size = 0x12000, scoped, tag = 'internal scratch']
  %s0 = inlined_call_operand.hbm [shape: f32[300,512], index: 0, kind: input, shape index: {}]
  %s1 = inlined_call_operand.hbm [shape: bf16[512,256], index: 1, kind: input, shape index: {}]
  %s2 = inlined_call_operand.vmem [shape: f32[1,256], index: 2, kind: input, shape index: {}]
  %s3 = inlined_call_operand.hbm [shape: bf16[256,128], index: 3, kind: input, shape index: {}]
  %s4 = inlined_call_operand.vmem [shape: f32[1,128], index: 4, kind: input, shape index: {}]
  %s5 = inlined_call_operand.hbm [shape: f32[300,128], index: 5, kind: output, shape index: {}]
  %s6 = sld [smem:[#allocation0]]
  $region65: #{tpu_custom_call.1} parent=0
    _
  %s8 = ssub.s32 1, %s6
  %s9 = scalar_select 0, %s8, %s6
  $region1: #{tpu_custom_call.1} parent=0
    #allocation2 [shape = 'u8[1048576]{0}', space=vmem, size = 0x100000, scoped, tag = 'input window, operand 0']
    #allocation3 [shape = 's32[2]{0}', space=sflag, size = 0x8, scoped, tag = 'scoped memory for tpu_custom_call.1']
    #allocation4 [shape = 's32[2]{0}', space=sflag, size = 0x8, scoped, tag = 'scoped memory for tpu_custom_call.1']
    #allocation5 [shape = 'u8[262144]{0}', space=vmem, size = 0x40000, scoped, tag = 'input window, operand 1, single buffered']
    #allocation6 [shape = 's32[1]{0}', space=sflag, size = 0x4, scoped, tag = 'scoped memory for tpu_custom_call.1']
    #allocation7 [shape = 'u8[65536]{0}', space=vmem, size = 0x10000, scoped, tag = 'input window, operand 3, single buffered']
    #allocation8 [shape = 'u8[262144]{0}', space=vmem, size = 0x40000, scoped, tag = 'output window, operand 0']
    %10 = vsyncpa [#allocation3], 0
    %s11 = scalar_lea.sflag [#allocation3], 1
    %12 = vsyncpa %s11, 0
    %13 = vsyncpa [#allocation6], 0
    %14 = vsyncpa [#allocation4], 0
    %s15 = scalar_lea.sflag [#allocation4], 1
    %16 = vsyncpa %s15, 0
    loop: start=0, step=1, limit=4
    $region2: #{tpu_custom_call.1} parent=1 // loop_pre_header
      _
    $region3: #{tpu_custom_call.1} parent=1 // loop_header
      %s18 = sphi 0, %s22
      %p19 = scmp.ge.s32.totalorder %s18, 4
      %s28 = sphi 0, %s30
      %s31 = sphi 0, %s28
      %s32 = sphi 0, %s31
      %s48 = sphi 0, %s32
      %s52 = sphi 0, %s52
      %s54 = sphi 0, %s52
      %s55 = sphi 0, %s54
      %s69 = sphi 0, %s55
      %s73 = sphi 0, %s73
      %s75 = sphi 0, %s73
      %s76 = sphi 0, %s75
      %s90 = sphi 0, %s76
      %s94 = sphi 0, %s94
      %s96 = sphi 0, %s94
      %s97 = sphi 0, %s96
      %s111 = sphi 0, %s97
      %s115 = sphi 0, %s115
      %s117 = sphi 0, %s115
      %s118 = sphi 0, %s117
      %s132 = sphi 0, %s118
      %s138 = sphi 0, %s140
      %s141 = sphi 0, %s138
      %s142 = sphi 0, %s141
      %s158 = sphi 0, %s142
    $region4: #{tpu_custom_call.1} parent=1 // loop_header_branch
      %21 = sbr.rel (%p19) target = $region8
    $region5: #{tpu_custom_call.1} parent=1 // loop_body
      %s23 = ssub.s32 %s18, 1
      %s24 = ssub.s32 %s18, 2
      %s25 = sadd.s32 %s18, 1
      %s26 = ssub.s32 %s18, %s25
      %p27 = scmp.eq.s32.totalorder %s26, 0
      %s29 = sadd.s32 %s28, 1
      %s30 = scalar_select %p27, %s28, %s29
      %p33 = pneg %p27
      %p34 = scmp.eq.s32.totalorder %s18, 1
      %p35 = por %p33, %p34
      %p36 = scmp.ne.s32.totalorder %s28, %s31
      %p37 = scmp.eq.s32.totalorder %s18, 0
      %p38 = por %p36, %p37
      %p39 = scmp.ne.s32.totalorder %s28, %s31
      %p40 = scmp.eq.s32.totalorder %s23, 1
      %p41 = por %p39, %p40
      %p42 = scmp.ne.s32.totalorder %s31, %s32
      %p43 = scmp.eq.s32.totalorder %s23, 0
      %p44 = por %p42, %p43
      %p45 = scmp.ne.s32.totalorder %s31, %s32
      %p46 = scmp.eq.s32.totalorder %s24, 1
      %p47 = por %p45, %p46
      %p49 = scmp.ne.s32.totalorder %s32, %s48
      %p50 = scmp.eq.s32.totalorder %s24, 0
      %p51 = por %p49, %p50
      %s53 = sadd.s32 %s52, 1
      %p56 = scmp.eq.s32.totalorder %s18, 1
      %p57 = scmp.ne.s32.totalorder %s52, %s54
      %p58 = scmp.eq.s32.totalorder %s18, 0
      %p59 = por %p57, %p58
      %p60 = scmp.ne.s32.totalorder %s52, %s54
      %p61 = scmp.eq.s32.totalorder %s23, 1
      %p62 = por %p60, %p61
      %p63 = scmp.ne.s32.totalorder %s54, %s55
      %p64 = scmp.eq.s32.totalorder %s23, 0
      %p65 = por %p63, %p64
      %p66 = scmp.ne.s32.totalorder %s54, %s55
      %p67 = scmp.eq.s32.totalorder %s24, 1
      %p68 = por %p66, %p67
      %p70 = scmp.ne.s32.totalorder %s55, %s69
      %p71 = scmp.eq.s32.totalorder %s24, 0
      %p72 = por %p70, %p71
      %s74 = sadd.s32 %s73, 1
      %p77 = scmp.eq.s32.totalorder %s18, 1
      %p78 = scmp.ne.s32.totalorder %s73, %s75
      %p79 = scmp.eq.s32.totalorder %s18, 0
      %p80 = por %p78, %p79
      %p81 = scmp.ne.s32.totalorder %s73, %s75
      %p82 = scmp.eq.s32.totalorder %s23, 1
      %p83 = por %p81, %p82
      %p84 = scmp.ne.s32.totalorder %s75, %s76
      %p85 = scmp.eq.s32.totalorder %s23, 0
      %p86 = por %p84, %p85
      %p87 = scmp.ne.s32.totalorder %s75, %s76
      %p88 = scmp.eq.s32.totalorder %s24, 1
      %p89 = por %p87, %p88
      %p91 = scmp.ne.s32.totalorder %s76, %s90
      %p92 = scmp.eq.s32.totalorder %s24, 0
      %p93 = por %p91, %p92
      %s95 = sadd.s32 %s94, 1
      %p98 = scmp.eq.s32.totalorder %s18, 1
      %p99 = scmp.ne.s32.totalorder %s94, %s96
      %p100 = scmp.eq.s32.totalorder %s18, 0
      %p101 = por %p99, %p100
      %p102 = scmp.ne.s32.totalorder %s94, %s96
      %p103 = scmp.eq.s32.totalorder %s23, 1
      %p104 = por %p102, %p103
      %p105 = scmp.ne.s32.totalorder %s96, %s97
      %p106 = scmp.eq.s32.totalorder %s23, 0
      %p107 = por %p105, %p106
      %p108 = scmp.ne.s32.totalorder %s96, %s97
      %p109 = scmp.eq.s32.totalorder %s24, 1
      %p110 = por %p108, %p109
      %p112 = scmp.ne.s32.totalorder %s97, %s111
      %p113 = scmp.eq.s32.totalorder %s24, 0
      %p114 = por %p112, %p113
      %s116 = sadd.s32 %s115, 1
      %p119 = scmp.eq.s32.totalorder %s18, 1
      %p120 = scmp.ne.s32.totalorder %s115, %s117
      %p121 = scmp.eq.s32.totalorder %s18, 0
      %p122 = por %p120, %p121
      %p123 = scmp.ne.s32.totalorder %s115, %s117
      %p124 = scmp.eq.s32.totalorder %s23, 1
      %p125 = por %p123, %p124
      %p126 = scmp.ne.s32.totalorder %s117, %s118
      %p127 = scmp.eq.s32.totalorder %s23, 0
      %p128 = por %p126, %p127
      %p129 = scmp.ne.s32.totalorder %s117, %s118
      %p130 = scmp.eq.s32.totalorder %s24, 1
      %p131 = por %p129, %p130
      %p133 = scmp.ne.s32.totalorder %s118, %s132
      %p134 = scmp.eq.s32.totalorder %s24, 0
      %p135 = por %p133, %p134
      %s136 = ssub.s32 %s18, %s25
      %p137 = scmp.eq.s32.totalorder %s136, 0
      %s139 = sadd.s32 %s138, 1
      %s140 = scalar_select %p137, %s138, %s139
      %p143 = pneg %p137
      %p144 = scmp.eq.s32.totalorder %s18, 1
      %p145 = por %p143, %p144
      %p146 = scmp.ne.s32.totalorder %s138, %s141
      %p147 = scmp.eq.s32.totalorder %s18, 0
      %p148 = por %p146, %p147
      %p149 = scmp.ne.s32.totalorder %s138, %s141
      %p150 = scmp.eq.s32.totalorder %s23, 1
      %p151 = por %p149, %p150
      %p152 = scmp.ne.s32.totalorder %s141, %s142
      %p153 = scmp.eq.s32.totalorder %s23, 0
      %p154 = por %p152, %p153
      %p155 = scmp.ne.s32.totalorder %s141, %s142
      %p156 = scmp.eq.s32.totalorder %s24, 1
      %p157 = por %p155, %p156
      %p159 = scmp.ne.s32.totalorder %s142, %s158
      %p160 = scmp.eq.s32.totalorder %s24, 0
      %p161 = por %p159, %p160
      %p162 = scmp.le.s32.totalorder 1, %s18
      %p163 = scmp.lt.s32.totalorder %s18, 3
      %p164 = pnand %p162, %p163
      %p165 = pneg %p164
      // Predicated region
      $region9: #{tpu_custom_call.1} parent=5 // pred_check
        _
      $region10: #{tpu_custom_call.1} parent=5 // pred_check_branch
        %167 = sbr.rel (%p164) target = $region12
      $region11: #{tpu_custom_call.1} parent=5 // pred_region
        %s168 = ssub.s32 %s18, 1
        // Predicated region
        $region13: #{tpu_custom_call.1} parent=11 // pred_check
          %p169 = pneg %p65
        $region14: #{tpu_custom_call.1} parent=11 // pred_check_branch
          %171 = sbr.rel (%p169) target = $region16
        $region15: #{tpu_custom_call.1} parent=11 // pred_region
          %s173 = ssub.s32 8192, 8192
          %174 = vsyncadd [#allocation6], %s173
          %s175 = sshll.u32 [#allocation5], 4
          %s176 = int_to_ptr.vmem [resolvable:$true] %s175
          %181 = dma.hbm_to_vmem [thread:$0]  %s1, 8192, %s176, [#allocation6], 128, 128, 8
        $region16: #{tpu_custom_call.1} parent=11 // pred_fallthru
          _
        // Predicated region
        $region17: #{tpu_custom_call.1} parent=11 // pred_check
          %p182 = pneg %p86
        $region18: #{tpu_custom_call.1} parent=11 // pred_check_branch
          %184 = sbr.rel (%p182) target = $region20
        $region19: #{tpu_custom_call.1} parent=11 // pred_region
          _
        $region20: #{tpu_custom_call.1} parent=11 // pred_fallthru
          _
        // Predicated region
        $region21: #{tpu_custom_call.1} parent=11 // pred_check
          %p185 = pneg %p107
        $region22: #{tpu_custom_call.1} parent=11 // pred_check_branch
          %187 = sbr.rel (%p185) target = $region24
        $region23: #{tpu_custom_call.1} parent=11 // pred_region
          %s189 = ssub.s32 2048, 2048
          %190 = vsyncadd [#allocation6], %s189
          %s191 = sshll.u32 [#allocation7], 4
          %s192 = int_to_ptr.vmem [resolvable:$true] %s191
          %197 = dma.hbm_to_vmem [thread:$0]  %s3, 2048, %s192, [#allocation6], 64, 64, 4
        $region24: #{tpu_custom_call.1} parent=11 // pred_fallthru
          _
        // Predicated region
        $region25: #{tpu_custom_call.1} parent=11 // pred_check
          %p198 = pneg %p128
        $region26: #{tpu_custom_call.1} parent=11 // pred_check_branch
          %200 = sbr.rel (%p198) target = $region28
        $region27: #{tpu_custom_call.1} parent=11 // pred_region
          _
        $region28: #{tpu_custom_call.1} parent=11 // pred_fallthru
          _
      $region12: #{tpu_custom_call.1} parent=5 // pred_fallthru
        _
      %p201 = scmp.lt.s32.totalorder %s18, 2
      // Predicated region
      $region29: #{tpu_custom_call.1} parent=5 // pred_check
        %p202 = pneg %p201
      $region30: #{tpu_custom_call.1} parent=5 // pred_check_branch
        %204 = sbr.rel (%p202) target = $region32
      $region31: #{tpu_custom_call.1} parent=5 // pred_region
        // Predicated region
        $region33: #{tpu_custom_call.1} parent=31 // pred_check
          %p205 = pneg %p38
        $region34: #{tpu_custom_call.1} parent=31 // pred_check_branch
          %207 = sbr.rel (%p205) target = $region36
        $region35: #{tpu_custom_call.1} parent=31 // pred_region
          %s208 = sand.u32 %s28, 1
          %s209 = scalar_lea.sflag [#allocation3], %s208
          %s210 = sand.u32 %s28, 1
          %s211 = smul.addr %s210, 1024
          %s212 = scalar_lea.vmem [#allocation2], %s211
          %s213 = smul.u32 32, %s18
          %s214 = ssub.s32 38, %s213
          %p215 = scmp.lt.s32.totalorder %s214, 32
          %s216 = scalar_select %p215, %s214, 32
          %s217 = smul.u32 128, %s216
          %s218 = smul.u32 %s217, 4
          %s220 = ssub.s32 16384, %s218
          %221 = vsyncadd %s209, %s220
          %p222 = scmp.ne.s32.totalorder 0, %s218
          %s223 = smul.addr %s213, 4
          %s224 = smul.addr %s223, 128
          %s225 = scalar_lea.hbm %s0, %s224
          %s226 = smul.u32 32, %s216
          %s227 = sshll.u32 %s212, 4
          %s228 = int_to_ptr.vmem [resolvable:$true] %s227
          %s229 = sshll.u32 %s226, 4
          %233 = dma.hbm_to_vmem [thread:$0]  (%p222), %s225, %s229, %s228, %s209, 512, 512, 32
        $region36: #{tpu_custom_call.1} parent=31 // pred_fallthru
          _
      $region32: #{tpu_custom_call.1} parent=5 // pred_fallthru
        _
      %p234 = scmp.le.s32.totalorder 1, %s18
      %p235 = scmp.lt.s32.totalorder %s18, 3
      %p236 = pnand %p234, %p235
      %p237 = pneg %p236
      // Predicated region
      $region37: #{tpu_custom_call.1} parent=5 // pred_check
        _
      $region38: #{tpu_custom_call.1} parent=5 // pred_check_branch
        %239 = sbr.rel (%p236) target = $region40
      $region39: #{tpu_custom_call.1} parent=5 // pred_region
        %s240 = ssub.s32 %s18, 1
        %s241 = sand.u32 %s31, 1
        %s242 = scalar_lea.sflag [#allocation3], %s241
        %s243 = sand.u32 %s31, 1
        %s244 = smul.addr %s243, 1024
        %s245 = scalar_lea.vmem [#allocation2], %s244
        // Predicated region
        $region41: #{tpu_custom_call.1} parent=39 // pred_check
          %p246 = pneg %p44
        $region42: #{tpu_custom_call.1} parent=39 // pred_check_branch
          %248 = sbr.rel (%p246) target = $region44
        $region43: #{tpu_custom_call.1} parent=39 // pred_region
          %249 = dma.done %s242, 16384
        $region44: #{tpu_custom_call.1} parent=39 // pred_fallthru
          _
        // Predicated region
        $region45: #{tpu_custom_call.1} parent=39 // pred_check
          %p250 = pneg %p65
        $region46: #{tpu_custom_call.1} parent=39 // pred_check_branch
          %252 = sbr.rel (%p250) target = $region48
        $region47: #{tpu_custom_call.1} parent=39 // pred_region
          %253 = dma.done [#allocation6], 8192
        $region48: #{tpu_custom_call.1} parent=39 // pred_fallthru
          _
        // Predicated region
        $region49: #{tpu_custom_call.1} parent=39 // pred_check
          %p254 = pneg %p107
        $region50: #{tpu_custom_call.1} parent=39 // pred_check_branch
          %256 = sbr.rel (%p254) target = $region52
        $region51: #{tpu_custom_call.1} parent=39 // pred_region
          %257 = dma.done [#allocation6], 2048
        $region52: #{tpu_custom_call.1} parent=39 // pred_fallthru
          _
        %s258 = sand.u32 %s31, 1
        %s259 = scalar_lea.sflag [#allocation3], %s258
        %s260 = sand.u32 %s31, 1
        %s261 = smul.addr %s260, 1024
        %s262 = scalar_lea.vmem [#allocation2], %s261
        %p263 = pneg %p44
        %p264 = pneg %p41
        %p265 = pneg %p65
        %p266 = pneg %p62
        %p267 = pneg %p86
        %p268 = pneg %p83
        %p269 = pneg %p107
        %p270 = pneg %p104
        %p271 = pneg %p128
        %p272 = pneg %p125
        %p273 = pneg %p154
        %p274 = pneg %p151
        %s275 = sand.u32 %s141, 1
        %s276 = scalar_lea.sflag [#allocation4], %s275
        %s277 = sand.u32 %s141, 1
        %s278 = smul.addr %s277, 256
        %s279 = scalar_lea.vmem [#allocation8], %s278
        %s280 = smul.u32 32, %s23
        %s281 = ssub.s32 38, %s280
        %p282 = scmp.lt.s32.totalorder %s281, 32
        %s283 = scalar_select %p282, %s281, 32
        %s284 = smul.u32 128, %s283
        %s285 = smul.u32 %s284, 4
        %s286 = smul.u32 32, %s23
        %s287 = ssub.s32 38, %s286
        %p288 = scmp.lt.s32.totalorder %s287, 32
        %s289 = scalar_select %p288, %s287, 32
        %s290 = smul.u32 128, %s289
        %v292 = vld [vmem:[%s245] sm:$0xff]
        %v293 = vld [vmem:[%s245 + $0x8] sm:$0xff]
        %v294 = vld [vmem:[%s245 + $0x10] sm:$0xff]
        %v295 = vld [vmem:[%s245 + $0x18] sm:$0xff]
        %v296 = vld [vmem:[%s245 + $0x20] sm:$0xff]
        %v297 = vld [vmem:[%s245 + $0x28] sm:$0xff]
        %v298 = vld [vmem:[%s245 + $0x30] sm:$0xff]
        %v299 = vld [vmem:[%s245 + $0x38] sm:$0xff]
        %v300 = vld [vmem:[%s245 + $0x40] sm:$0xff]
        %v301 = vld [vmem:[%s245 + $0x48] sm:$0xff]
        %v302 = vld [vmem:[%s245 + $0x50] sm:$0xff]
        %v303 = vld [vmem:[%s245 + $0x58] sm:$0xff]
        %v304 = vld [vmem:[%s245 + $0x60] sm:$0xff]
        %v305 = vld [vmem:[%s245 + $0x68] sm:$0xff]
        %v306 = vld [vmem:[%s245 + $0x70] sm:$0xff]
        %v307 = vld [vmem:[%s245 + $0x78] sm:$0xff]
        %v308 = vld [vmem:[%s245 + $0x80] sm:$0xff]
        %v309 = vld [vmem:[%s245 + $0x88] sm:$0xff]
        %v310 = vld [vmem:[%s245 + $0x90] sm:$0xff]
        %v311 = vld [vmem:[%s245 + $0x98] sm:$0xff]
        %v312 = vld [vmem:[%s245 + $0xa0] sm:$0xff]
        %v313 = vld [vmem:[%s245 + $0xa8] sm:$0xff]
        %v314 = vld [vmem:[%s245 + $0xb0] sm:$0xff]
        %v315 = vld [vmem:[%s245 + $0xb8] sm:$0xff]
        %v316 = vld [vmem:[%s245 + $0xc0] sm:$0xff]
        %v317 = vld [vmem:[%s245 + $0xc8] sm:$0xff]
        %v318 = vld [vmem:[%s245 + $0xd0] sm:$0xff]
        %v319 = vld [vmem:[%s245 + $0xd8] sm:$0xff]
        %v320 = vld [vmem:[%s245 + $0xe0] sm:$0xff]
        %v321 = vld [vmem:[%s245 + $0xe8] sm:$0xff]
        %v322 = vld [vmem:[%s245 + $0xf0] sm:$0xff]
        %v323 = vld [vmem:[%s245 + $0xf8] sm:$0xff]
        %v324 = vld [vmem:[%s245 + $0x100] sm:$0xff]
        %v325 = vld [vmem:[%s245 + $0x108] sm:$0xff]
        %v326 = vld [vmem:[%s245 + $0x110] sm:$0xff]
        %v327 = vld [vmem:[%s245 + $0x118] sm:$0xff]
        %v328 = vld [vmem:[%s245 + $0x120] sm:$0xff]
        %v329 = vld [vmem:[%s245 + $0x128] sm:$0xff]
        %v330 = vld [vmem:[%s245 + $0x130] sm:$0xff]
        %v331 = vld [vmem:[%s245 + $0x138] sm:$0xff]
        %v332 = vld [vmem:[%s245 + $0x140] sm:$0xff]
        %v333 = vld [vmem:[%s245 + $0x148] sm:$0xff]
        %v334 = vld [vmem:[%s245 + $0x150] sm:$0xff]
        %v335 = vld [vmem:[%s245 + $0x158] sm:$0xff]
        %v336 = vld [vmem:[%s245 + $0x160] sm:$0xff]
        %v337 = vld [vmem:[%s245 + $0x168] sm:$0xff]
        %v338 = vld [vmem:[%s245 + $0x170] sm:$0xff]
        %v339 = vld [vmem:[%s245 + $0x178] sm:$0xff]
        %v340 = vld [vmem:[%s245 + $0x180] sm:$0xff]
        %v341 = vld [vmem:[%s245 + $0x188] sm:$0xff]
        %v342 = vld [vmem:[%s245 + $0x190] sm:$0xff]
        %v343 = vld [vmem:[%s245 + $0x198] sm:$0xff]
        %v344 = vld [vmem:[%s245 + $0x1a0] sm:$0xff]
        %v345 = vld [vmem:[%s245 + $0x1a8] sm:$0xff]
        %v346 = vld [vmem:[%s245 + $0x1b0] sm:$0xff]
        %v347 = vld [vmem:[%s245 + $0x1b8] sm:$0xff]
        %v348 = vld [vmem:[%s245 + $0x1c0] sm:$0xff]
        %v349 = vld [vmem:[%s245 + $0x1c8] sm:$0xff]
        %v350 = vld [vmem:[%s245 + $0x1d0] sm:$0xff]
        %v351 = vld [vmem:[%s245 + $0x1d8] sm:$0xff]
        %v352 = vld [vmem:[%s245 + $0x1e0] sm:$0xff]
        %v353 = vld [vmem:[%s245 + $0x1e8] sm:$0xff]
        %v354 = vld [vmem:[%s245 + $0x1f0] sm:$0xff]
        %v355 = vld [vmem:[%s245 + $0x1f8] sm:$0xff]
        %v356 = vld [vmem:[%s245 + $0x200] sm:$0xff]
        %v357 = vld [vmem:[%s245 + $0x208] sm:$0xff]
        %v358 = vld [vmem:[%s245 + $0x210] sm:$0xff]
        %v359 = vld [vmem:[%s245 + $0x218] sm:$0xff]
        %v360 = vld [vmem:[%s245 + $0x220] sm:$0xff]
        %v361 = vld [vmem:[%s245 + $0x228] sm:$0xff]
        %v362 = vld [vmem:[%s245 + $0x230] sm:$0xff]
        %v363 = vld [vmem:[%s245 + $0x238] sm:$0xff]
        %v364 = vld [vmem:[%s245 + $0x240] sm:$0xff]
        %v365 = vld [vmem:[%s245 + $0x248] sm:$0xff]
        %v366 = vld [vmem:[%s245 + $0x250] sm:$0xff]
        %v367 = vld [vmem:[%s245 + $0x258] sm:$0xff]
        %v368 = vld [vmem:[%s245 + $0x260] sm:$0xff]
        %v369 = vld [vmem:[%s245 + $0x268] sm:$0xff]
        %v370 = vld [vmem:[%s245 + $0x270] sm:$0xff]
        %v371 = vld [vmem:[%s245 + $0x278] sm:$0xff]
        %v372 = vld [vmem:[%s245 + $0x280] sm:$0xff]
        %v373 = vld [vmem:[%s245 + $0x288] sm:$0xff]
        %v374 = vld [vmem:[%s245 + $0x290] sm:$0xff]
        %v375 = vld [vmem:[%s245 + $0x298] sm:$0xff]
        %v376 = vld [vmem:[%s245 + $0x2a0] sm:$0xff]
        %v377 = vld [vmem:[%s245 + $0x2a8] sm:$0xff]
        %v378 = vld [vmem:[%s245 + $0x2b0] sm:$0xff]
        %v379 = vld [vmem:[%s245 + $0x2b8] sm:$0xff]
        %v380 = vld [vmem:[%s245 + $0x2c0] sm:$0xff]
        %v381 = vld [vmem:[%s245 + $0x2c8] sm:$0xff]
        %v382 = vld [vmem:[%s245 + $0x2d0] sm:$0xff]
        %v383 = vld [vmem:[%s245 + $0x2d8] sm:$0xff]
        %v384 = vld [vmem:[%s245 + $0x2e0] sm:$0xff]
        %v385 = vld [vmem:[%s245 + $0x2e8] sm:$0xff]
        %v386 = vld [vmem:[%s245 + $0x2f0] sm:$0xff]
        %v387 = vld [vmem:[%s245 + $0x2f8] sm:$0xff]
        %v388 = vld [vmem:[%s245 + $0x300] sm:$0xff]
        %v389 = vld [vmem:[%s245 + $0x308] sm:$0xff]
        %v390 = vld [vmem:[%s245 + $0x310] sm:$0xff]
        %v391 = vld [vmem:[%s245 + $0x318] sm:$0xff]
        %v392 = vld [vmem:[%s245 + $0x320] sm:$0xff]
        %v393 = vld [vmem:[%s245 + $0x328] sm:$0xff]
        %v394 = vld [vmem:[%s245 + $0x330] sm:$0xff]
        %v395 = vld [vmem:[%s245 + $0x338] sm:$0xff]
        %v396 = vld [vmem:[%s245 + $0x340] sm:$0xff]
        %v397 = vld [vmem:[%s245 + $0x348] sm:$0xff]
        %v398 = vld [vmem:[%s245 + $0x350] sm:$0xff]
        %v399 = vld [vmem:[%s245 + $0x358] sm:$0xff]
        %v400 = vld [vmem:[%s245 + $0x360] sm:$0xff]
        %v401 = vld [vmem:[%s245 + $0x368] sm:$0xff]
        %v402 = vld [vmem:[%s245 + $0x370] sm:$0xff]
        %v403 = vld [vmem:[%s245 + $0x378] sm:$0xff]
        %v404 = vld [vmem:[%s245 + $0x380] sm:$0xff]
        %v405 = vld [vmem:[%s245 + $0x388] sm:$0xff]
        %v406 = vld [vmem:[%s245 + $0x390] sm:$0xff]
        %v407 = vld [vmem:[%s245 + $0x398] sm:$0xff]
        %v408 = vld [vmem:[%s245 + $0x3a0] sm:$0xff]
        %v409 = vld [vmem:[%s245 + $0x3a8] sm:$0xff]
        %v410 = vld [vmem:[%s245 + $0x3b0] sm:$0xff]
        %v411 = vld [vmem:[%s245 + $0x3b8] sm:$0xff]
        %v412 = vld [vmem:[%s245 + $0x3c0] sm:$0xff]
        %v413 = vld [vmem:[%s245 + $0x3c8] sm:$0xff]
        %v414 = vld [vmem:[%s245 + $0x3d0] sm:$0xff]
        %v415 = vld [vmem:[%s245 + $0x3d8] sm:$0xff]
        %v416 = vld [vmem:[%s245 + $0x3e0] sm:$0xff]
        %v417 = vld [vmem:[%s245 + $0x3e8] sm:$0xff]
        %v418 = vld [vmem:[%s245 + $0x3f0] sm:$0xff]
        %v419 = vld [vmem:[%s245 + $0x3f8] sm:$0xff]
        %v420 = vld [vmem:[#allocation5] sm:$0xff]
        %v421 = vld [vmem:[#allocation5 + $0x8] sm:$0xff]
        %v422 = vld [vmem:[#allocation5 + $0x10] sm:$0xff]
        %v423 = vld [vmem:[#allocation5 + $0x18] sm:$0xff]
        %v424 = vld [vmem:[#allocation5 + $0x20] sm:$0xff]
        %v425 = vld [vmem:[#allocation5 + $0x28] sm:$0xff]
        %v426 = vld [vmem:[#allocation5 + $0x30] sm:$0xff]
        %v427 = vld [vmem:[#allocation5 + $0x38] sm:$0xff]
        %v428 = vld [vmem:[#allocation5 + $0x40] sm:$0xff]
        %v429 = vld [vmem:[#allocation5 + $0x48] sm:$0xff]
        %v430 = vld [vmem:[#allocation5 + $0x50] sm:$0xff]
        %v431 = vld [vmem:[#allocation5 + $0x58] sm:$0xff]
        %v432 = vld [vmem:[#allocation5 + $0x60] sm:$0xff]
        %v433 = vld [vmem:[#allocation5 + $0x68] sm:$0xff]
        %v434 = vld [vmem:[#allocation5 + $0x70] sm:$0xff]
        %v435 = vld [vmem:[#allocation5 + $0x78] sm:$0xff]
        %v436 = vld [vmem:[#allocation5 + $0x80] sm:$0xff]
        %v437 = vld [vmem:[#allocation5 + $0x88] sm:$0xff]
        %v438 = vld [vmem:[#allocation5 + $0x90] sm:$0xff]
        %v439 = vld [vmem:[#allocation5 + $0x98] sm:$0xff]
        %v440 = vld [vmem:[#allocation5 + $0xa0] sm:$0xff]
        %v441 = vld [vmem:[#allocation5 + $0xa8] sm:$0xff]
        %v442 = vld [vmem:[#allocation5 + $0xb0] sm:$0xff]
        %v443 = vld [vmem:[#allocation5 + $0xb8] sm:$0xff]
        %v444 = vld [vmem:[#allocation5 + $0xc0] sm:$0xff]
        %v445 = vld [vmem:[#allocation5 + $0xc8] sm:$0xff]
        %v446 = vld [vmem:[#allocation5 + $0xd0] sm:$0xff]
        %v447 = vld [vmem:[#allocation5 + $0xd8] sm:$0xff]
        %v448 = vld [vmem:[#allocation5 + $0xe0] sm:$0xff]
        %v449 = vld [vmem:[#allocation5 + $0xe8] sm:$0xff]
        %v450 = vld [vmem:[#allocation5 + $0xf0] sm:$0xff]
        %v451 = vld [vmem:[#allocation5 + $0xf8] sm:$0xff]
        %v452 = vld [vmem:[#allocation5 + $0x100] sm:$0xff]
        %v453 = vld [vmem:[#allocation5 + $0x108] sm:$0xff]
        %v454 = vld [vmem:[#allocation5 + $0x110] sm:$0xff]
        %v455 = vld [vmem:[#allocation5 + $0x118] sm:$0xff]
        %v456 = vld [vmem:[#allocation5 + $0x120] sm:$0xff]
        %v457 = vld [vmem:[#allocation5 + $0x128] sm:$0xff]
        %v458 = vld [vmem:[#allocation5 + $0x130] sm:$0xff]
        %v459 = vld [vmem:[#allocation5 + $0x138] sm:$0xff]
        %v460 = vld [vmem:[#allocation5 + $0x140] sm:$0xff]
        %v461 = vld [vmem:[#allocation5 + $0x148] sm:$0xff]
        %v462 = vld [vmem:[#allocation5 + $0x150] sm:$0xff]
        %v463 = vld [vmem:[#allocation5 + $0x158] sm:$0xff]
        %v464 = vld [vmem:[#allocation5 + $0x160] sm:$0xff]
        %v465 = vld [vmem:[#allocation5 + $0x168] sm:$0xff]
        %v466 = vld [vmem:[#allocation5 + $0x170] sm:$0xff]
        %v467 = vld [vmem:[#allocation5 + $0x178] sm:$0xff]
        %v468 = vld [vmem:[#allocation5 + $0x180] sm:$0xff]
        %v469 = vld [vmem:[#allocation5 + $0x188] sm:$0xff]
        %v470 = vld [vmem:[#allocation5 + $0x190] sm:$0xff]
        %v471 = vld [vmem:[#allocation5 + $0x198] sm:$0xff]
        %v472 = vld [vmem:[#allocation5 + $0x1a0] sm:$0xff]
        %v473 = vld [vmem:[#allocation5 + $0x1a8] sm:$0xff]
        %v474 = vld [vmem:[#allocation5 + $0x1b0] sm:$0xff]
        %v475 = vld [vmem:[#allocation5 + $0x1b8] sm:$0xff]
        %v476 = vld [vmem:[#allocation5 + $0x1c0] sm:$0xff]
        %v477 = vld [vmem:[#allocation5 + $0x1c8] sm:$0xff]
        %v478 = vld [vmem:[#allocation5 + $0x1d0] sm:$0xff]
        %v479 = vld [vmem:[#allocation5 + $0x1d8] sm:$0xff]
        %v480 = vld [vmem:[#allocation5 + $0x1e0] sm:$0xff]
        %v481 = vld [vmem:[#allocation5 + $0x1e8] sm:$0xff]
        %v482 = vld [vmem:[#allocation5 + $0x1f0] sm:$0xff]
        %v483 = vld [vmem:[#allocation5 + $0x1f8] sm:$0xff]
        %v484 = vld [vmem:[%s2] sm:$0x3]
        %v485 = vpack.c.bf16 %v296, %v292
        %v486 = vpack.c.bf16 %v297, %v293
        %v487 = vpack.c.bf16 %v298, %v294
        %v488 = vpack.c.bf16 %v299, %v295
        %v489 = vpack.c.bf16 %v304, %v300
        %v490 = vpack.c.bf16 %v305, %v301
        %v491 = vpack.c.bf16 %v306, %v302
        %v492 = vpack.c.bf16 %v307, %v303
        %v493 = vpack.c.bf16 %v312, %v308
        %v494 = vpack.c.bf16 %v313, %v309
        %v495 = vpack.c.bf16 %v314, %v310
        %v496 = vpack.c.bf16 %v315, %v311
        %v497 = vpack.c.bf16 %v320, %v316
        %v498 = vpack.c.bf16 %v321, %v317
        %v499 = vpack.c.bf16 %v322, %v318
        %v500 = vpack.c.bf16 %v323, %v319
        %v501 = vpack.c.bf16 %v328, %v324
        %v502 = vpack.c.bf16 %v329, %v325
        %v503 = vpack.c.bf16 %v330, %v326
        %v504 = vpack.c.bf16 %v331, %v327
        %v505 = vpack.c.bf16 %v336, %v332
        %v506 = vpack.c.bf16 %v337, %v333
        %v507 = vpack.c.bf16 %v338, %v334
        %v508 = vpack.c.bf16 %v339, %v335
        %v509 = vpack.c.bf16 %v344, %v340
        %v510 = vpack.c.bf16 %v345, %v341
        %v511 = vpack.c.bf16 %v346, %v342
        %v512 = vpack.c.bf16 %v347, %v343
        %v513 = vpack.c.bf16 %v352, %v348
        %v514 = vpack.c.bf16 %v353, %v349
        %v515 = vpack.c.bf16 %v354, %v350
        %v516 = vpack.c.bf16 %v355, %v351
        %v517 = vpack.c.bf16 %v360, %v356
        %v518 = vpack.c.bf16 %v361, %v357
        %v519 = vpack.c.bf16 %v362, %v358
        %v520 = vpack.c.bf16 %v363, %v359
        %v521 = vpack.c.bf16 %v368, %v364
        %v522 = vpack.c.bf16 %v369, %v365
        %v523 = vpack.c.bf16 %v370, %v366
        %v524 = vpack.c.bf16 %v371, %v367
        %v525 = vpack.c.bf16 %v376, %v372
        %v526 = vpack.c.bf16 %v377, %v373
        %v527 = vpack.c.bf16 %v378, %v374
        %v528 = vpack.c.bf16 %v379, %v375
        %v529 = vpack.c.bf16 %v384, %v380
        %v530 = vpack.c.bf16 %v385, %v381
        %v531 = vpack.c.bf16 %v386, %v382
        %v532 = vpack.c.bf16 %v387, %v383
        %v533 = vpack.c.bf16 %v392, %v388
        %v534 = vpack.c.bf16 %v393, %v389
        %v535 = vpack.c.bf16 %v394, %v390
        %v536 = vpack.c.bf16 %v395, %v391
        %v537 = vpack.c.bf16 %v400, %v396
        %v538 = vpack.c.bf16 %v401, %v397
        %v539 = vpack.c.bf16 %v402, %v398
        %v540 = vpack.c.bf16 %v403, %v399
        %v541 = vpack.c.bf16 %v408, %v404
        %v542 = vpack.c.bf16 %v409, %v405
        %v543 = vpack.c.bf16 %v410, %v406
        %v544 = vpack.c.bf16 %v411, %v407
        %v545 = vpack.c.bf16 %v416, %v412
        %v546 = vpack.c.bf16 %v417, %v413
        %v547 = vpack.c.bf16 %v418, %v414
        %v548 = vpack.c.bf16 %v419, %v415
        %v550 = vlaneseq
        %v551 = vshrl.u32 %v550, 7
        %v552 = vsub.s32 0, %v551
        %v553 = vrot.slane %v484, %v552
        %v554 = vlaneseq
        %v555 = vshrl.u32 %v554, 7
        %v556 = vsub.s32 1, %v555
        %v557 = vrot.slane %v484, %v556
        %v624 = vunpack.c.l.b16 %v420
        %v625 = vunpack.c.h.b16 %v420
        %v626 = vunpack.c.l.b16 %v421
        %v627 = vunpack.c.h.b16 %v421
        %v628 = vunpack.c.l.b16 %v422
        %v629 = vunpack.c.h.b16 %v422
        %v630 = vunpack.c.l.b16 %v423
        %v631 = vunpack.c.h.b16 %v423
        %v632 = vunpack.c.l.b16 %v424
        %v633 = vunpack.c.h.b16 %v424
        %v634 = vunpack.c.l.b16 %v425
        %v635 = vunpack.c.h.b16 %v425
        %v636 = vunpack.c.l.b16 %v426
        %v637 = vunpack.c.h.b16 %v426
        %v638 = vunpack.c.l.b16 %v427
        %v639 = vunpack.c.h.b16 %v427
        %v640 = vunpack.c.l.b16 %v428
        %v641 = vunpack.c.h.b16 %v428
        %v642 = vunpack.c.l.b16 %v429
        %v643 = vunpack.c.h.b16 %v429
        %v644 = vunpack.c.l.b16 %v430
        %v645 = vunpack.c.h.b16 %v430
        %v646 = vunpack.c.l.b16 %v431
        %v647 = vunpack.c.h.b16 %v431
        %v648 = vunpack.c.l.b16 %v432
        %v649 = vunpack.c.h.b16 %v432
        %v650 = vunpack.c.l.b16 %v433
        %v651 = vunpack.c.h.b16 %v433
        %v652 = vunpack.c.l.b16 %v434
        %v653 = vunpack.c.h.b16 %v434
        %v654 = vunpack.c.l.b16 %v435
        %v655 = vunpack.c.h.b16 %v435
        %v656 = vunpack.c.l.b16 %v436
        %v657 = vunpack.c.h.b16 %v436
        %v658 = vunpack.c.l.b16 %v437
        %v659 = vunpack.c.h.b16 %v437
        %v660 = vunpack.c.l.b16 %v438
        %v661 = vunpack.c.h.b16 %v438
        %v662 = vunpack.c.l.b16 %v439
        %v663 = vunpack.c.h.b16 %v439
        %v664 = vunpack.c.l.b16 %v440
        %v665 = vunpack.c.h.b16 %v440
        %v666 = vunpack.c.l.b16 %v441
        %v667 = vunpack.c.h.b16 %v441
        %v668 = vunpack.c.l.b16 %v442
        %v669 = vunpack.c.h.b16 %v442
        %v670 = vunpack.c.l.b16 %v443
        %v671 = vunpack.c.h.b16 %v443
        %v672 = vunpack.c.l.b16 %v444
        %v673 = vunpack.c.h.b16 %v444
        %v674 = vunpack.c.l.b16 %v445
        %v675 = vunpack.c.h.b16 %v445
        %v676 = vunpack.c.l.b16 %v446
        %v677 = vunpack.c.h.b16 %v446
        %v678 = vunpack.c.l.b16 %v447
        %v679 = vunpack.c.h.b16 %v447
        %v680 = vunpack.c.l.b16 %v448
        %v681 = vunpack.c.h.b16 %v448
        %v682 = vunpack.c.l.b16 %v449
        %v683 = vunpack.c.h.b16 %v449
        %v684 = vunpack.c.l.b16 %v450
        %v685 = vunpack.c.h.b16 %v450
        %v686 = vunpack.c.l.b16 %v451
        %v687 = vunpack.c.h.b16 %v451
        %v688 = vunpack.c.l.b16 %v452
        %v689 = vunpack.c.h.b16 %v452
        %v690 = vunpack.c.l.b16 %v453
        %v691 = vunpack.c.h.b16 %v453
        %v692 = vunpack.c.l.b16 %v454
        %v693 = vunpack.c.h.b16 %v454
        %v694 = vunpack.c.l.b16 %v455
        %v695 = vunpack.c.h.b16 %v455
        %v696 = vunpack.c.l.b16 %v456
        %v697 = vunpack.c.h.b16 %v456
        %v698 = vunpack.c.l.b16 %v457
        %v699 = vunpack.c.h.b16 %v457
        %v700 = vunpack.c.l.b16 %v458
        %v701 = vunpack.c.h.b16 %v458
        %v702 = vunpack.c.l.b16 %v459
        %v703 = vunpack.c.h.b16 %v459
        %v704 = vunpack.c.l.b16 %v460
        %v705 = vunpack.c.h.b16 %v460
        %v706 = vunpack.c.l.b16 %v461
        %v707 = vunpack.c.h.b16 %v461
        %v708 = vunpack.c.l.b16 %v462
        %v709 = vunpack.c.h.b16 %v462
        %v710 = vunpack.c.l.b16 %v463
        %v711 = vunpack.c.h.b16 %v463
        %v712 = vunpack.c.l.b16 %v464
        %v713 = vunpack.c.h.b16 %v464
        %v714 = vunpack.c.l.b16 %v465
        %v715 = vunpack.c.h.b16 %v465
        %v716 = vunpack.c.l.b16 %v466
        %v717 = vunpack.c.h.b16 %v466
        %v718 = vunpack.c.l.b16 %v467
        %v719 = vunpack.c.h.b16 %v467
        %v720 = vunpack.c.l.b16 %v468
        %v721 = vunpack.c.h.b16 %v468
        %v722 = vunpack.c.l.b16 %v469
        %v723 = vunpack.c.h.b16 %v469
        %v724 = vunpack.c.l.b16 %v470
        %v725 = vunpack.c.h.b16 %v470
        %v726 = vunpack.c.l.b16 %v471
        %v727 = vunpack.c.h.b16 %v471
        %v728 = vunpack.c.l.b16 %v472
        %v729 = vunpack.c.h.b16 %v472
        %v730 = vunpack.c.l.b16 %v473
        %v731 = vunpack.c.h.b16 %v473
        %v732 = vunpack.c.l.b16 %v474
        %v733 = vunpack.c.h.b16 %v474
        %v734 = vunpack.c.l.b16 %v475
        %v735 = vunpack.c.h.b16 %v475
        %v736 = vunpack.c.l.b16 %v476
        %v737 = vunpack.c.h.b16 %v476
        %v738 = vunpack.c.l.b16 %v477
        %v739 = vunpack.c.h.b16 %v477
        %v740 = vunpack.c.l.b16 %v478
        %v741 = vunpack.c.h.b16 %v478
        %v742 = vunpack.c.l.b16 %v479
        %v743 = vunpack.c.h.b16 %v479
        %v744 = vunpack.c.l.b16 %v480
        %v745 = vunpack.c.h.b16 %v480
        %v746 = vunpack.c.l.b16 %v481
        %v747 = vunpack.c.h.b16 %v481
        %v748 = vunpack.c.l.b16 %v482
        %v749 = vunpack.c.h.b16 %v482
        %v750 = vunpack.c.l.b16 %v483
        %v751 = vunpack.c.h.b16 %v483
        %v752 = vpack.c.b16 %v626, %v624
        %v753 = vpack.c.b16 %v627, %v625
        %v754 = vpack.c.b16 %v630, %v628
        %v755 = vpack.c.b16 %v631, %v629
        %v756 = vpack.c.b16 %v634, %v632
        %v757 = vpack.c.b16 %v635, %v633
        %v758 = vpack.c.b16 %v638, %v636
        %v759 = vpack.c.b16 %v639, %v637
        %v760 = vpack.c.b16 %v642, %v640
        %v761 = vpack.c.b16 %v643, %v641
        %v762 = vpack.c.b16 %v646, %v644
        %v763 = vpack.c.b16 %v647, %v645
        %v764 = vpack.c.b16 %v650, %v648
        %v765 = vpack.c.b16 %v651, %v649
        %v766 = vpack.c.b16 %v654, %v652
        %v767 = vpack.c.b16 %v655, %v653
        %v768 = vpack.c.b16 %v658, %v656
        %v769 = vpack.c.b16 %v659, %v657
        %v770 = vpack.c.b16 %v662, %v660
        %v771 = vpack.c.b16 %v663, %v661
        %v772 = vpack.c.b16 %v666, %v664
        %v773 = vpack.c.b16 %v667, %v665
        %v774 = vpack.c.b16 %v670, %v668
        %v775 = vpack.c.b16 %v671, %v669
        %v776 = vpack.c.b16 %v674, %v672
        %v777 = vpack.c.b16 %v675, %v673
        %v778 = vpack.c.b16 %v678, %v676
        %v779 = vpack.c.b16 %v679, %v677
        %v780 = vpack.c.b16 %v682, %v680
        %v781 = vpack.c.b16 %v683, %v681
        %v782 = vpack.c.b16 %v686, %v684
        %v783 = vpack.c.b16 %v687, %v685
        %v784 = vpack.c.b16 %v690, %v688
        %v785 = vpack.c.b16 %v691, %v689
        %v786 = vpack.c.b16 %v694, %v692
        %v787 = vpack.c.b16 %v695, %v693
        %v788 = vpack.c.b16 %v698, %v696
        %v789 = vpack.c.b16 %v699, %v697
        %v790 = vpack.c.b16 %v702, %v700
        %v791 = vpack.c.b16 %v703, %v701
        %v792 = vpack.c.b16 %v706, %v704
        %v793 = vpack.c.b16 %v707, %v705
        %v794 = vpack.c.b16 %v710, %v708
        %v795 = vpack.c.b16 %v711, %v709
        %v796 = vpack.c.b16 %v714, %v712
        %v797 = vpack.c.b16 %v715, %v713
        %v798 = vpack.c.b16 %v718, %v716
        %v799 = vpack.c.b16 %v719, %v717
        %v800 = vpack.c.b16 %v722, %v720
        %v801 = vpack.c.b16 %v723, %v721
        %v802 = vpack.c.b16 %v726, %v724
        %v803 = vpack.c.b16 %v727, %v725
        %v804 = vpack.c.b16 %v730, %v728
        %v805 = vpack.c.b16 %v731, %v729
        %v806 = vpack.c.b16 %v734, %v732
        %v807 = vpack.c.b16 %v735, %v733
        %v808 = vpack.c.b16 %v738, %v736
        %v809 = vpack.c.b16 %v739, %v737
        %v810 = vpack.c.b16 %v742, %v740
        %v811 = vpack.c.b16 %v743, %v741
        %v812 = vpack.c.b16 %v746, %v744
        %v813 = vpack.c.b16 %v747, %v745
        %v814 = vpack.c.b16 %v750, %v748
        %v815 = vpack.c.b16 %v751, %v749
        %880 = vmatprep.subr.bf16.mxu0 %v767
        %881 = vmatpush1.bf16.msra.mxu0 %v766
        %882 = vmatprep.subr.bf16.mxu0 %v765
        %883 = vmatpush1.bf16.msra.mxu0 %v764
        %884 = vmatprep.subr.bf16.mxu0 %v763
        %885 = vmatpush1.bf16.msra.mxu0 %v762
        %886 = vmatprep.subr.bf16.mxu0 %v761
        %887 = vmatpush1.bf16.msra.mxu0 %v760
        %888 = vmatprep.subr.bf16.mxu0 %v759
        %889 = vmatpush1.bf16.msra.mxu0 %v758
        %890 = vmatprep.subr.bf16.mxu0 %v757
        %891 = vmatpush1.bf16.msra.mxu0 %v756
        %892 = vmatprep.subr.bf16.mxu0 %v755
        %893 = vmatpush1.bf16.msra.mxu0 %v754
        %894 = vmatprep.subr.bf16.mxu0 %v753
        %895 = vmatpush1.bf16.msra.mxu0 %v752
        %896 = vmatprep.subr.bf16.mxu0 %v783
        %897 = vmatpush2.bf16.msra.mxu0 %v782
        %898 = vmatprep.subr.bf16.mxu0 %v781
        %899 = vmatpush2.bf16.msra.mxu0 %v780
        %900 = vmatprep.subr.bf16.mxu0 %v779
        %901 = vmatpush2.bf16.msra.mxu0 %v778
        %902 = vmatprep.subr.bf16.mxu0 %v777
        %903 = vmatpush2.bf16.msra.mxu0 %v776
        %904 = vmatprep.subr.bf16.mxu0 %v775
        %905 = vmatpush2.bf16.msra.mxu0 %v774
        %906 = vmatprep.subr.bf16.mxu0 %v773
        %907 = vmatpush2.bf16.msra.mxu0 %v772
        %908 = vmatprep.subr.bf16.mxu0 %v771
        %909 = vmatpush2.bf16.msra.mxu0 %v770
        %910 = vmatprep.subr.bf16.mxu0 %v769
        %911 = vmatpush2.bf16.msra.mxu0 %v768
        %912 = vmatprep.mubr.bf16.mxu0 %v486
        %913 = vmatmul.mubr.bf16.gmra.mxu0 %v485
        %v914 = vpop.f32.mrf.mxu0
        %v915 = vadd.f32 %v553, %v914
        %v916 = vpop.f32.mrf.mxu0
        %v917 = vadd.f32 %v557, %v916
        %v918 = vpop.f32.mrf.mxu0
        %v919 = vadd.f32 %v553, %v918
        %v920 = vpop.f32.mrf.mxu0
        %v921 = vadd.f32 %v557, %v920
        %922 = vmatprep.mubr.bf16.mxu0 %v490
        %923 = vmatmul.mubr.bf16.gmra.mxu0 %v489
        %v924 = vpop.f32.mrf.mxu0
        %v925 = vadd.f32 %v553, %v924
        %v926 = vpop.f32.mrf.mxu0
        %v927 = vadd.f32 %v557, %v926
        %v928 = vpop.f32.mrf.mxu0
        %v929 = vadd.f32 %v553, %v928
        %v930 = vpop.f32.mrf.mxu0
        %v931 = vadd.f32 %v557, %v930
        %932 = vmatprep.mubr.bf16.mxu0 %v494
        %933 = vmatmul.mubr.bf16.gmra.mxu0 %v493
        %v934 = vpop.f32.mrf.mxu0
        %v935 = vadd.f32 %v553, %v934
        %v936 = vpop.f32.mrf.mxu0
        %v937 = vadd.f32 %v557, %v936
        %v938 = vpop.f32.mrf.mxu0
        %v939 = vadd.f32 %v553, %v938
        %v940 = vpop.f32.mrf.mxu0
        %v941 = vadd.f32 %v557, %v940
        %942 = vmatprep.mubr.bf16.mxu0 %v498
        %943 = vmatmul.mubr.bf16.gmra.mxu0 %v497
        %v944 = vpop.f32.mrf.mxu0
        %v945 = vadd.f32 %v553, %v944
        %v946 = vpop.f32.mrf.mxu0
        %v947 = vadd.f32 %v557, %v946
        %v948 = vpop.f32.mrf.mxu0
        %v949 = vadd.f32 %v553, %v948
        %v950 = vpop.f32.mrf.mxu0
        %v951 = vadd.f32 %v557, %v950
        %952 = vmatprep.mubr.bf16.mxu0 %v502
        %953 = vmatmul.mubr.bf16.gmra.mxu0 %v501
        %v954 = vpop.f32.mrf.mxu0
        %v955 = vadd.f32 %v553, %v954
        %v956 = vpop.f32.mrf.mxu0
        %v957 = vadd.f32 %v557, %v956
        %v958 = vpop.f32.mrf.mxu0
        %v959 = vadd.f32 %v553, %v958
        %v960 = vpop.f32.mrf.mxu0
        %v961 = vadd.f32 %v557, %v960
        %962 = vmatprep.mubr.bf16.mxu0 %v506
        %963 = vmatmul.mubr.bf16.gmra.mxu0 %v505
        %v964 = vpop.f32.mrf.mxu0
        %v965 = vadd.f32 %v553, %v964
        %v966 = vpop.f32.mrf.mxu0
        %v967 = vadd.f32 %v557, %v966
        %v968 = vpop.f32.mrf.mxu0
        %v969 = vadd.f32 %v553, %v968
        %v970 = vpop.f32.mrf.mxu0
        %v971 = vadd.f32 %v557, %v970
        %972 = vmatprep.mubr.bf16.mxu0 %v510
        %973 = vmatmul.mubr.bf16.gmra.mxu0 %v509
        %v974 = vpop.f32.mrf.mxu0
        %v975 = vadd.f32 %v553, %v974
        %v976 = vpop.f32.mrf.mxu0
        %v977 = vadd.f32 %v557, %v976
        %v978 = vpop.f32.mrf.mxu0
        %v979 = vadd.f32 %v553, %v978
        %v980 = vpop.f32.mrf.mxu0
        %v981 = vadd.f32 %v557, %v980
        %982 = vmatprep.mubr.bf16.mxu0 %v514
        %983 = vmatmul.mubr.bf16.gmra.mxu0 %v513
        %v984 = vpop.f32.mrf.mxu0
        %v985 = vadd.f32 %v553, %v984
        %v986 = vpop.f32.mrf.mxu0
        %v987 = vadd.f32 %v557, %v986
        %v988 = vpop.f32.mrf.mxu0
        %v989 = vadd.f32 %v553, %v988
        %v990 = vpop.f32.mrf.mxu0
        %v991 = vadd.f32 %v557, %v990
        %992 = vmatprep.mubr.bf16.mxu0 %v518
        %993 = vmatmul.mubr.bf16.gmra.mxu0 %v517
        %v994 = vpop.f32.mrf.mxu0
        %v995 = vadd.f32 %v553, %v994
        %v996 = vpop.f32.mrf.mxu0
        %v997 = vadd.f32 %v557, %v996
        %v998 = vpop.f32.mrf.mxu0
        %v999 = vadd.f32 %v553, %v998
        %v1000 = vpop.f32.mrf.mxu0
        %v1001 = vadd.f32 %v557, %v1000
        %1002 = vmatprep.mubr.bf16.mxu0 %v522
        %1003 = vmatmul.mubr.bf16.gmra.mxu0 %v521
        %v1004 = vpop.f32.mrf.mxu0
        %v1005 = vadd.f32 %v553, %v1004
        %v1006 = vpop.f32.mrf.mxu0
        %v1007 = vadd.f32 %v557, %v1006
        %v1008 = vpop.f32.mrf.mxu0
        %v1009 = vadd.f32 %v553, %v1008
        %v1010 = vpop.f32.mrf.mxu0
        %v1011 = vadd.f32 %v557, %v1010
        %1012 = vmatprep.mubr.bf16.mxu0 %v526
        %1013 = vmatmul.mubr.bf16.gmra.mxu0 %v525
        %v1014 = vpop.f32.mrf.mxu0
        %v1015 = vadd.f32 %v553, %v1014
        %v1016 = vpop.f32.mrf.mxu0
        %v1017 = vadd.f32 %v557, %v1016
        %v1018 = vpop.f32.mrf.mxu0
        %v1019 = vadd.f32 %v553, %v1018
        %v1020 = vpop.f32.mrf.mxu0
        %v1021 = vadd.f32 %v557, %v1020
        %1022 = vmatprep.mubr.bf16.mxu0 %v530
        %1023 = vmatmul.mubr.bf16.gmra.mxu0 %v529
        %v1024 = vpop.f32.mrf.mxu0
        %v1025 = vadd.f32 %v553, %v1024
        %v1026 = vpop.f32.mrf.mxu0
        %v1027 = vadd.f32 %v557, %v1026
        %v1028 = vpop.f32.mrf.mxu0
        %v1029 = vadd.f32 %v553, %v1028
        %v1030 = vpop.f32.mrf.mxu0
        %v1031 = vadd.f32 %v557, %v1030
        %1032 = vmatprep.mubr.bf16.mxu0 %v534
        %1033 = vmatmul.mubr.bf16.gmra.mxu0 %v533
        %v1034 = vpop.f32.mrf.mxu0
        %v1035 = vadd.f32 %v553, %v1034
        %v1036 = vpop.f32.mrf.mxu0
        %v1037 = vadd.f32 %v557, %v1036
        %v1038 = vpop.f32.mrf.mxu0
        %v1039 = vadd.f32 %v553, %v1038
        %v1040 = vpop.f32.mrf.mxu0
        %v1041 = vadd.f32 %v557, %v1040
        %1042 = vmatprep.mubr.bf16.mxu0 %v538
        %1043 = vmatmul.mubr.bf16.gmra.mxu0 %v537
        %v1044 = vpop.f32.mrf.mxu0
        %v1045 = vadd.f32 %v553, %v1044
        %v1046 = vpop.f32.mrf.mxu0
        %v1047 = vadd.f32 %v557, %v1046
        %v1048 = vpop.f32.mrf.mxu0
        %v1049 = vadd.f32 %v553, %v1048
        %v1050 = vpop.f32.mrf.mxu0
        %v1051 = vadd.f32 %v557, %v1050
        %1052 = vmatprep.mubr.bf16.mxu0 %v542
        %1053 = vmatmul.mubr.bf16.gmra.mxu0 %v541
        %v1054 = vpop.f32.mrf.mxu0
        %v1055 = vadd.f32 %v553, %v1054
        %v1056 = vpop.f32.mrf.mxu0
        %v1057 = vadd.f32 %v557, %v1056
        %v1058 = vpop.f32.mrf.mxu0
        %v1059 = vadd.f32 %v553, %v1058
        %v1060 = vpop.f32.mrf.mxu0
        %v1061 = vadd.f32 %v557, %v1060
        %1062 = vmatprep.mubr.bf16.mxu0 %v546
        %1063 = vmatmul.mubr.bf16.gmra.mxu0 %v545
        %v1064 = vpop.f32.mrf.mxu0
        %v1065 = vadd.f32 %v553, %v1064
        %v1066 = vpop.f32.mrf.mxu0
        %v1067 = vadd.f32 %v557, %v1066
        %v1068 = vpop.f32.mrf.mxu0
        %v1069 = vadd.f32 %v553, %v1068
        %v1070 = vpop.f32.mrf.mxu0
        %v1071 = vadd.f32 %v557, %v1070
        %1072 = vdwg.mxu0
        %1073 = vmatprep.subr.bf16.mxu0 %v799
        %1074 = vmatpush1.bf16.msra.mxu0 %v798
        %1075 = vmatprep.subr.bf16.mxu0 %v797
        %1076 = vmatpush1.bf16.msra.mxu0 %v796
        %1077 = vmatprep.subr.bf16.mxu0 %v795
        %1078 = vmatpush1.bf16.msra.mxu0 %v794
        %1079 = vmatprep.subr.bf16.mxu0 %v793
        %1080 = vmatpush1.bf16.msra.mxu0 %v792
        %1081 = vmatprep.subr.bf16.mxu0 %v791
        %1082 = vmatpush1.bf16.msra.mxu0 %v790
        %1083 = vmatprep.subr.bf16.mxu0 %v789
        %1084 = vmatpush1.bf16.msra.mxu0 %v788
        %1085 = vmatprep.subr.bf16.mxu0 %v787
        %1086 = vmatpush1.bf16.msra.mxu0 %v786
        %1087 = vmatprep.subr.bf16.mxu0 %v785
        %1088 = vmatpush1.bf16.msra.mxu0 %v784
        %1089 = vmatprep.subr.bf16.mxu0 %v815
        %1090 = vmatpush2.bf16.msra.mxu0 %v814
        %1091 = vmatprep.subr.bf16.mxu0 %v813
        %1092 = vmatpush2.bf16.msra.mxu0 %v812
        %1093 = vmatprep.subr.bf16.mxu0 %v811
        %1094 = vmatpush2.bf16.msra.mxu0 %v810
        %1095 = vmatprep.subr.bf16.mxu0 %v809
        %1096 = vmatpush2.bf16.msra.mxu0 %v808
        %1097 = vmatprep.subr.bf16.mxu0 %v807
        %1098 = vmatpush2.bf16.msra.mxu0 %v806
        %1099 = vmatprep.subr.bf16.mxu0 %v805
        %1100 = vmatpush2.bf16.msra.mxu0 %v804
        %1101 = vmatprep.subr.bf16.mxu0 %v803
        %1102 = vmatpush2.bf16.msra.mxu0 %v802
        %1103 = vmatprep.subr.bf16.mxu0 %v801
        %1104 = vmatpush2.bf16.msra.mxu0 %v800
        %1105 = vmatprep.mubr.bf16.mxu0 %v488
        %1106 = vmatmul.mubr.bf16.gmra.mxu0 %v487
        %v1107 = vpop.f32.mrf.mxu0
        %v1108 = vadd.f32 %v915, %v1107
        %v1109 = vpop.f32.mrf.mxu0
        %v1110 = vadd.f32 %v917, %v1109
        %v1111 = vpop.f32.mrf.mxu0
        %v1112 = vadd.f32 %v919, %v1111
        %v1113 = vpop.f32.mrf.mxu0
        %v1114 = vadd.f32 %v921, %v1113
        %1115 = vmatprep.mubr.bf16.mxu0 %v492
        %1116 = vmatmul.mubr.bf16.gmra.mxu0 %v491
        %v1117 = vpop.f32.mrf.mxu0
        %v1118 = vadd.f32 %v925, %v1117
        %v1119 = vpop.f32.mrf.mxu0
        %v1120 = vadd.f32 %v927, %v1119
        %v1121 = vpop.f32.mrf.mxu0
        %v1122 = vadd.f32 %v929, %v1121
        %v1123 = vpop.f32.mrf.mxu0
        %v1124 = vadd.f32 %v931, %v1123
        %1125 = vmatprep.mubr.bf16.mxu0 %v496
        %1126 = vmatmul.mubr.bf16.gmra.mxu0 %v495
        %v1127 = vpop.f32.mrf.mxu0
        %v1128 = vadd.f32 %v935, %v1127
        %v1129 = vpop.f32.mrf.mxu0
        %v1130 = vadd.f32 %v937, %v1129
        %v1131 = vpop.f32.mrf.mxu0
        %v1132 = vadd.f32 %v939, %v1131
        %v1133 = vpop.f32.mrf.mxu0
        %v1134 = vadd.f32 %v941, %v1133
        %1135 = vmatprep.mubr.bf16.mxu0 %v500
        %1136 = vmatmul.mubr.bf16.gmra.mxu0 %v499
        %v1137 = vpop.f32.mrf.mxu0
        %v1138 = vadd.f32 %v945, %v1137
        %v1139 = vpop.f32.mrf.mxu0
        %v1140 = vadd.f32 %v947, %v1139
        %v1141 = vpop.f32.mrf.mxu0
        %v1142 = vadd.f32 %v949, %v1141
        %v1143 = vpop.f32.mrf.mxu0
        %v1144 = vadd.f32 %v951, %v1143
        %1145 = vmatprep.mubr.bf16.mxu0 %v504
        %1146 = vmatmul.mubr.bf16.gmra.mxu0 %v503
        %v1147 = vpop.f32.mrf.mxu0
        %v1148 = vadd.f32 %v955, %v1147
        %v1149 = vpop.f32.mrf.mxu0
        %v1150 = vadd.f32 %v957, %v1149
        %v1151 = vpop.f32.mrf.mxu0
        %v1152 = vadd.f32 %v959, %v1151
        %v1153 = vpop.f32.mrf.mxu0
        %v1154 = vadd.f32 %v961, %v1153
        %1155 = vmatprep.mubr.bf16.mxu0 %v508
        %1156 = vmatmul.mubr.bf16.gmra.mxu0 %v507
        %v1157 = vpop.f32.mrf.mxu0
        %v1158 = vadd.f32 %v965, %v1157
        %v1159 = vpop.f32.mrf.mxu0
        %v1160 = vadd.f32 %v967, %v1159
        %v1161 = vpop.f32.mrf.mxu0
        %v1162 = vadd.f32 %v969, %v1161
        %v1163 = vpop.f32.mrf.mxu0
        %v1164 = vadd.f32 %v971, %v1163
        %1165 = vmatprep.mubr.bf16.mxu0 %v512
        %1166 = vmatmul.mubr.bf16.gmra.mxu0 %v511
        %v1167 = vpop.f32.mrf.mxu0
        %v1168 = vadd.f32 %v975, %v1167
        %v1169 = vpop.f32.mrf.mxu0
        %v1170 = vadd.f32 %v977, %v1169
        %v1171 = vpop.f32.mrf.mxu0
        %v1172 = vadd.f32 %v979, %v1171
        %v1173 = vpop.f32.mrf.mxu0
        %v1174 = vadd.f32 %v981, %v1173
        %1175 = vmatprep.mubr.bf16.mxu0 %v516
        %1176 = vmatmul.mubr.bf16.gmra.mxu0 %v515
        %v1177 = vpop.f32.mrf.mxu0
        %v1178 = vadd.f32 %v985, %v1177
        %v1179 = vpop.f32.mrf.mxu0
        %v1180 = vadd.f32 %v987, %v1179
        %v1181 = vpop.f32.mrf.mxu0
        %v1182 = vadd.f32 %v989, %v1181
        %v1183 = vpop.f32.mrf.mxu0
        %v1184 = vadd.f32 %v991, %v1183
        %1185 = vmatprep.mubr.bf16.mxu0 %v520
        %1186 = vmatmul.mubr.bf16.gmra.mxu0 %v519
        %v1187 = vpop.f32.mrf.mxu0
        %v1188 = vadd.f32 %v995, %v1187
        %v1189 = vpop.f32.mrf.mxu0
        %v1190 = vadd.f32 %v997, %v1189
        %v1191 = vpop.f32.mrf.mxu0
        %v1192 = vadd.f32 %v999, %v1191
        %v1193 = vpop.f32.mrf.mxu0
        %v1194 = vadd.f32 %v1001, %v1193
        %1195 = vmatprep.mubr.bf16.mxu0 %v524
        %1196 = vmatmul.mubr.bf16.gmra.mxu0 %v523
        %v1197 = vpop.f32.mrf.mxu0
        %v1198 = vadd.f32 %v1005, %v1197
        %v1199 = vpop.f32.mrf.mxu0
        %v1200 = vadd.f32 %v1007, %v1199
        %v1201 = vpop.f32.mrf.mxu0
        %v1202 = vadd.f32 %v1009, %v1201
        %v1203 = vpop.f32.mrf.mxu0
        %v1204 = vadd.f32 %v1011, %v1203
        %1205 = vmatprep.mubr.bf16.mxu0 %v528
        %1206 = vmatmul.mubr.bf16.gmra.mxu0 %v527
        %v1207 = vpop.f32.mrf.mxu0
        %v1208 = vadd.f32 %v1015, %v1207
        %v1209 = vpop.f32.mrf.mxu0
        %v1210 = vadd.f32 %v1017, %v1209
        %v1211 = vpop.f32.mrf.mxu0
        %v1212 = vadd.f32 %v1019, %v1211
        %v1213 = vpop.f32.mrf.mxu0
        %v1214 = vadd.f32 %v1021, %v1213
        %1215 = vmatprep.mubr.bf16.mxu0 %v532
        %1216 = vmatmul.mubr.bf16.gmra.mxu0 %v531
        %v1217 = vpop.f32.mrf.mxu0
        %v1218 = vadd.f32 %v1025, %v1217
        %v1219 = vpop.f32.mrf.mxu0
        %v1220 = vadd.f32 %v1027, %v1219
        %v1221 = vpop.f32.mrf.mxu0
        %v1222 = vadd.f32 %v1029, %v1221
        %v1223 = vpop.f32.mrf.mxu0
        %v1224 = vadd.f32 %v1031, %v1223
        %1225 = vmatprep.mubr.bf16.mxu0 %v536
        %1226 = vmatmul.mubr.bf16.gmra.mxu0 %v535
        %v1227 = vpop.f32.mrf.mxu0
        %v1228 = vadd.f32 %v1035, %v1227
        %v1229 = vpop.f32.mrf.mxu0
        %v1230 = vadd.f32 %v1037, %v1229
        %v1231 = vpop.f32.mrf.mxu0
        %v1232 = vadd.f32 %v1039, %v1231
        %v1233 = vpop.f32.mrf.mxu0
        %v1234 = vadd.f32 %v1041, %v1233
        %1235 = vmatprep.mubr.bf16.mxu0 %v540
        %1236 = vmatmul.mubr.bf16.gmra.mxu0 %v539
        %v1237 = vpop.f32.mrf.mxu0
        %v1238 = vadd.f32 %v1045, %v1237
        %v1239 = vpop.f32.mrf.mxu0
        %v1240 = vadd.f32 %v1047, %v1239
        %v1241 = vpop.f32.mrf.mxu0
        %v1242 = vadd.f32 %v1049, %v1241
        %v1243 = vpop.f32.mrf.mxu0
        %v1244 = vadd.f32 %v1051, %v1243
        %1245 = vmatprep.mubr.bf16.mxu0 %v544
        %1246 = vmatmul.mubr.bf16.gmra.mxu0 %v543
        %v1247 = vpop.f32.mrf.mxu0
        %v1248 = vadd.f32 %v1055, %v1247
        %v1249 = vpop.f32.mrf.mxu0
        %v1250 = vadd.f32 %v1057, %v1249
        %v1251 = vpop.f32.mrf.mxu0
        %v1252 = vadd.f32 %v1059, %v1251
        %v1253 = vpop.f32.mrf.mxu0
        %v1254 = vadd.f32 %v1061, %v1253
        %1255 = vmatprep.mubr.bf16.mxu0 %v548
        %1256 = vmatmul.mubr.bf16.gmra.mxu0 %v547
        %v1257 = vpop.f32.mrf.mxu0
        %v1258 = vadd.f32 %v1065, %v1257
        %v1259 = vpop.f32.mrf.mxu0
        %v1260 = vadd.f32 %v1067, %v1259
        %v1261 = vpop.f32.mrf.mxu0
        %v1262 = vadd.f32 %v1069, %v1261
        %v1263 = vpop.f32.mrf.mxu0
        %v1264 = vadd.f32 %v1071, %v1263
        %1265 = vdwg.mxu0
        %v1266 = vmax.f32 %v1108, 0.0
        %v1267 = vmax.f32 %v1110, 0.0
        %v1268 = vmax.f32 %v1112, 0.0
        %v1269 = vmax.f32 %v1114, 0.0
        %v1270 = vmax.f32 %v1118, 0.0
        %v1271 = vmax.f32 %v1120, 0.0
        %v1272 = vmax.f32 %v1122, 0.0
        %v1273 = vmax.f32 %v1124, 0.0
        %v1274 = vmax.f32 %v1128, 0.0
        %v1275 = vmax.f32 %v1130, 0.0
        %v1276 = vmax.f32 %v1132, 0.0
        %v1277 = vmax.f32 %v1134, 0.0
        %v1278 = vmax.f32 %v1138, 0.0
        %v1279 = vmax.f32 %v1140, 0.0
        %v1280 = vmax.f32 %v1142, 0.0
        %v1281 = vmax.f32 %v1144, 0.0
        %v1282 = vmax.f32 %v1148, 0.0
        %v1283 = vmax.f32 %v1150, 0.0
        %v1284 = vmax.f32 %v1152, 0.0
        %v1285 = vmax.f32 %v1154, 0.0
        %v1286 = vmax.f32 %v1158, 0.0
        %v1287 = vmax.f32 %v1160, 0.0
        %v1288 = vmax.f32 %v1162, 0.0
        %v1289 = vmax.f32 %v1164, 0.0
        %v1290 = vmax.f32 %v1168, 0.0
        %v1291 = vmax.f32 %v1170, 0.0
        %v1292 = vmax.f32 %v1172, 0.0
        %v1293 = vmax.f32 %v1174, 0.0
        %v1294 = vmax.f32 %v1178, 0.0
        %v1295 = vmax.f32 %v1180, 0.0
        %v1296 = vmax.f32 %v1182, 0.0
        %v1297 = vmax.f32 %v1184, 0.0
        %v1298 = vmax.f32 %v1188, 0.0
        %v1299 = vmax.f32 %v1190, 0.0
        %v1300 = vmax.f32 %v1192, 0.0
        %v1301 = vmax.f32 %v1194, 0.0
        %v1302 = vmax.f32 %v1198, 0.0
        %v1303 = vmax.f32 %v1200, 0.0
        %v1304 = vmax.f32 %v1202, 0.0
        %v1305 = vmax.f32 %v1204, 0.0
        %v1306 = vmax.f32 %v1208, 0.0
        %v1307 = vmax.f32 %v1210, 0.0
        %v1308 = vmax.f32 %v1212, 0.0
        %v1309 = vmax.f32 %v1214, 0.0
        %v1310 = vmax.f32 %v1218, 0.0
        %v1311 = vmax.f32 %v1220, 0.0
        %v1312 = vmax.f32 %v1222, 0.0
        %v1313 = vmax.f32 %v1224, 0.0
        %v1314 = vmax.f32 %v1228, 0.0
        %v1315 = vmax.f32 %v1230, 0.0
        %v1316 = vmax.f32 %v1232, 0.0
        %v1317 = vmax.f32 %v1234, 0.0
        %v1318 = vmax.f32 %v1238, 0.0
        %v1319 = vmax.f32 %v1240, 0.0
        %v1320 = vmax.f32 %v1242, 0.0
        %v1321 = vmax.f32 %v1244, 0.0
        %v1322 = vmax.f32 %v1248, 0.0
        %v1323 = vmax.f32 %v1250, 0.0
        %v1324 = vmax.f32 %v1252, 0.0
        %v1325 = vmax.f32 %v1254, 0.0
        %v1326 = vmax.f32 %v1258, 0.0
        %v1327 = vmax.f32 %v1260, 0.0
        %v1328 = vmax.f32 %v1262, 0.0
        %v1329 = vmax.f32 %v1264, 0.0
        %v1330 = vld [vmem:[#allocation7] sm:$0xf]
        %v1331 = vld [vmem:[#allocation7 + $0x4] sm:$0xf]
        %v1332 = vld [vmem:[#allocation7 + $0x8] sm:$0xf]
        %v1333 = vld [vmem:[#allocation7 + $0xc] sm:$0xf]
        %v1334 = vld [vmem:[#allocation7 + $0x10] sm:$0xf]
        %v1335 = vld [vmem:[#allocation7 + $0x14] sm:$0xf]
        %v1336 = vld [vmem:[#allocation7 + $0x18] sm:$0xf]
        %v1337 = vld [vmem:[#allocation7 + $0x1c] sm:$0xf]
        %v1338 = vld [vmem:[#allocation7 + $0x20] sm:$0xf]
        %v1339 = vld [vmem:[#allocation7 + $0x24] sm:$0xf]
        %v1340 = vld [vmem:[#allocation7 + $0x28] sm:$0xf]
        %v1341 = vld [vmem:[#allocation7 + $0x2c] sm:$0xf]
        %v1342 = vld [vmem:[#allocation7 + $0x30] sm:$0xf]
        %v1343 = vld [vmem:[#allocation7 + $0x34] sm:$0xf]
        %v1344 = vld [vmem:[#allocation7 + $0x38] sm:$0xf]
        %v1345 = vld [vmem:[#allocation7 + $0x3c] sm:$0xf]
        %v1346 = vld [vmem:[#allocation7 + $0x40] sm:$0xf]
        %v1347 = vld [vmem:[#allocation7 + $0x44] sm:$0xf]
        %v1348 = vld [vmem:[#allocation7 + $0x48] sm:$0xf]
        %v1349 = vld [vmem:[#allocation7 + $0x4c] sm:$0xf]
        %v1350 = vld [vmem:[#allocation7 + $0x50] sm:$0xf]
        %v1351 = vld [vmem:[#allocation7 + $0x54] sm:$0xf]
        %v1352 = vld [vmem:[#allocation7 + $0x58] sm:$0xf]
        %v1353 = vld [vmem:[#allocation7 + $0x5c] sm:$0xf]
        %v1354 = vld [vmem:[#allocation7 + $0x60] sm:$0xf]
        %v1355 = vld [vmem:[#allocation7 + $0x64] sm:$0xf]
        %v1356 = vld [vmem:[#allocation7 + $0x68] sm:$0xf]
        %v1357 = vld [vmem:[#allocation7 + $0x6c] sm:$0xf]
        %v1358 = vld [vmem:[#allocation7 + $0x70] sm:$0xf]
        %v1359 = vld [vmem:[#allocation7 + $0x74] sm:$0xf]
        %v1360 = vld [vmem:[#allocation7 + $0x78] sm:$0xf]
        %v1361 = vld [vmem:[#allocation7 + $0x7c] sm:$0xf]
        %v1362 = vld [vmem:[%s4] sm:$0x1]
        %v1363 = vpack.c.bf16 %v1268, %v1266
        %v1364 = vpack.c.bf16 %v1269, %v1267
        %v1365 = vpack.c.bf16 %v1272, %v1270
        %v1366 = vpack.c.bf16 %v1273, %v1271
        %v1367 = vpack.c.bf16 %v1276, %v1274
        %v1368 = vpack.c.bf16 %v1277, %v1275
        %v1369 = vpack.c.bf16 %v1280, %v1278
        %v1370 = vpack.c.bf16 %v1281, %v1279
        %v1371 = vpack.c.bf16 %v1284, %v1282
        %v1372 = vpack.c.bf16 %v1285, %v1283
        %v1373 = vpack.c.bf16 %v1288, %v1286
        %v1374 = vpack.c.bf16 %v1289, %v1287
        %v1375 = vpack.c.bf16 %v1292, %v1290
        %v1376 = vpack.c.bf16 %v1293, %v1291
        %v1377 = vpack.c.bf16 %v1296, %v1294
        %v1378 = vpack.c.bf16 %v1297, %v1295
        %v1379 = vpack.c.bf16 %v1300, %v1298
        %v1380 = vpack.c.bf16 %v1301, %v1299
        %v1381 = vpack.c.bf16 %v1304, %v1302
        %v1382 = vpack.c.bf16 %v1305, %v1303
        %v1383 = vpack.c.bf16 %v1308, %v1306
        %v1384 = vpack.c.bf16 %v1309, %v1307
        %v1385 = vpack.c.bf16 %v1312, %v1310
        %v1386 = vpack.c.bf16 %v1313, %v1311
        %v1387 = vpack.c.bf16 %v1316, %v1314
        %v1388 = vpack.c.bf16 %v1317, %v1315
        %v1389 = vpack.c.bf16 %v1320, %v1318
        %v1390 = vpack.c.bf16 %v1321, %v1319
        %v1391 = vpack.c.bf16 %v1324, %v1322
        %v1392 = vpack.c.bf16 %v1325, %v1323
        %v1393 = vpack.c.bf16 %v1328, %v1326
        %v1394 = vpack.c.bf16 %v1329, %v1327
        %v1396 = vlaneseq
        %v1397 = vshrl.u32 %v1396, 7
        %v1398 = vsub.s32 0, %v1397
        %v1399 = vrot.slane %v1362, %v1398
        %v1433 = vunpack.c.l.b16 %v1330
        %v1434 = vunpack.c.l.b16 %v1331
        %v1435 = vunpack.c.l.b16 %v1332
        %v1436 = vunpack.c.l.b16 %v1333
        %v1437 = vunpack.c.l.b16 %v1334
        %v1438 = vunpack.c.l.b16 %v1335
        %v1439 = vunpack.c.l.b16 %v1336
        %v1440 = vunpack.c.l.b16 %v1337
        %v1441 = vunpack.c.l.b16 %v1338
        %v1442 = vunpack.c.l.b16 %v1339
        %v1443 = vunpack.c.l.b16 %v1340
        %v1444 = vunpack.c.l.b16 %v1341
        %v1445 = vunpack.c.l.b16 %v1342
        %v1446 = vunpack.c.l.b16 %v1343
        %v1447 = vunpack.c.l.b16 %v1344
        %v1448 = vunpack.c.l.b16 %v1345
        %v1449 = vunpack.c.l.b16 %v1346
        %v1450 = vunpack.c.l.b16 %v1347
        %v1451 = vunpack.c.l.b16 %v1348
        %v1452 = vunpack.c.l.b16 %v1349
        %v1453 = vunpack.c.l.b16 %v1350
        %v1454 = vunpack.c.l.b16 %v1351
        %v1455 = vunpack.c.l.b16 %v1352
        %v1456 = vunpack.c.l.b16 %v1353
        %v1457 = vunpack.c.l.b16 %v1354
        %v1458 = vunpack.c.l.b16 %v1355
        %v1459 = vunpack.c.l.b16 %v1356
        %v1460 = vunpack.c.l.b16 %v1357
        %v1461 = vunpack.c.l.b16 %v1358
        %v1462 = vunpack.c.l.b16 %v1359
        %v1463 = vunpack.c.l.b16 %v1360
        %v1464 = vunpack.c.l.b16 %v1361
        %v1465 = vpack.c.b16 %v1434, %v1433
        %v1466 = vpack.c.b16 %v1436, %v1435
        %v1467 = vpack.c.b16 %v1438, %v1437
        %v1468 = vpack.c.b16 %v1440, %v1439
        %v1469 = vpack.c.b16 %v1442, %v1441
        %v1470 = vpack.c.b16 %v1444, %v1443
        %v1471 = vpack.c.b16 %v1446, %v1445
        %v1472 = vpack.c.b16 %v1448, %v1447
        %v1473 = vpack.c.b16 %v1450, %v1449
        %v1474 = vpack.c.b16 %v1452, %v1451
        %v1475 = vpack.c.b16 %v1454, %v1453
        %v1476 = vpack.c.b16 %v1456, %v1455
        %v1477 = vpack.c.b16 %v1458, %v1457
        %v1478 = vpack.c.b16 %v1460, %v1459
        %v1479 = vpack.c.b16 %v1462, %v1461
        %v1480 = vpack.c.b16 %v1464, %v1463
        %1497 = vmatprep.subr.bf16.mxu0 0
        %1498 = vmatpush1.bf16.msra.mxu0 %v1472
        %1499 = vmatprep.subr.bf16.mxu0 0
        %1500 = vmatpush1.bf16.msra.mxu0 %v1471
        %1501 = vmatprep.subr.bf16.mxu0 0
        %1502 = vmatpush1.bf16.msra.mxu0 %v1470
        %1503 = vmatprep.subr.bf16.mxu0 0
        %1504 = vmatpush1.bf16.msra.mxu0 %v1469
        %1505 = vmatprep.subr.bf16.mxu0 0
        %1506 = vmatpush1.bf16.msra.mxu0 %v1468
        %1507 = vmatprep.subr.bf16.mxu0 0
        %1508 = vmatpush1.bf16.msra.mxu0 %v1467
        %1509 = vmatprep.subr.bf16.mxu0 0
        %1510 = vmatpush1.bf16.msra.mxu0 %v1466
        %1511 = vmatprep.subr.bf16.mxu0 0
        %1512 = vmatpush1.bf16.msra.mxu0 %v1465
        %1513 = vmatprep.subr.bf16.mxu0 0
        %1514 = vmatpush2.bf16.msra.mxu0 %v1480
        %1515 = vmatprep.subr.bf16.mxu0 0
        %1516 = vmatpush2.bf16.msra.mxu0 %v1479
        %1517 = vmatprep.subr.bf16.mxu0 0
        %1518 = vmatpush2.bf16.msra.mxu0 %v1478
        %1519 = vmatprep.subr.bf16.mxu0 0
        %1520 = vmatpush2.bf16.msra.mxu0 %v1477
        %1521 = vmatprep.subr.bf16.mxu0 0
        %1522 = vmatpush2.bf16.msra.mxu0 %v1476
        %1523 = vmatprep.subr.bf16.mxu0 0
        %1524 = vmatpush2.bf16.msra.mxu0 %v1475
        %1525 = vmatprep.subr.bf16.mxu0 0
        %1526 = vmatpush2.bf16.msra.mxu0 %v1474
        %1527 = vmatprep.subr.bf16.mxu0 0
        %1528 = vmatpush2.bf16.msra.mxu0 %v1473
        %1529 = vmatprep.mubr.bf16.mxu0 %v1364
        %1530 = vmatmul.mubr.bf16.gmra.mxu0 %v1363
        %v1531 = vpop.f32.mrf.mxu0
        %v1532 = vadd.f32 %v1399, %v1531
        %v1533 = vpop.f32.mrf.mxu0
        %v1534 = vpop.f32.mrf.mxu0
        %v1535 = vadd.f32 %v1399, %v1534
        %v1536 = vpop.f32.mrf.mxu0
        %1537 = vmatprep.mubr.bf16.mxu0 %v1366
        %1538 = vmatmul.mubr.bf16.gmra.mxu0 %v1365
        %v1539 = vpop.f32.mrf.mxu0
        %v1540 = vadd.f32 %v1399, %v1539
        %v1541 = vpop.f32.mrf.mxu0
        %v1542 = vpop.f32.mrf.mxu0
        %v1543 = vadd.f32 %v1399, %v1542
        %v1544 = vpop.f32.mrf.mxu0
        %1545 = vmatprep.mubr.bf16.mxu0 %v1368
        %1546 = vmatmul.mubr.bf16.gmra.mxu0 %v1367
        %v1547 = vpop.f32.mrf.mxu0
        %v1548 = vadd.f32 %v1399, %v1547
        %v1549 = vpop.f32.mrf.mxu0
        %v1550 = vpop.f32.mrf.mxu0
        %v1551 = vadd.f32 %v1399, %v1550
        %v1552 = vpop.f32.mrf.mxu0
        %1553 = vmatprep.mubr.bf16.mxu0 %v1370
        %1554 = vmatmul.mubr.bf16.gmra.mxu0 %v1369
        %v1555 = vpop.f32.mrf.mxu0
        %v1556 = vadd.f32 %v1399, %v1555
        %v1557 = vpop.f32.mrf.mxu0
        %v1558 = vpop.f32.mrf.mxu0
        %v1559 = vadd.f32 %v1399, %v1558
        %v1560 = vpop.f32.mrf.mxu0
        %1561 = vmatprep.mubr.bf16.mxu0 %v1372
        %1562 = vmatmul.mubr.bf16.gmra.mxu0 %v1371
        %v1563 = vpop.f32.mrf.mxu0
        %v1564 = vadd.f32 %v1399, %v1563
        %v1565 = vpop.f32.mrf.mxu0
        %v1566 = vpop.f32.mrf.mxu0
        %v1567 = vadd.f32 %v1399, %v1566
        %v1568 = vpop.f32.mrf.mxu0
        %1569 = vmatprep.mubr.bf16.mxu0 %v1374
        %1570 = vmatmul.mubr.bf16.gmra.mxu0 %v1373
        %v1571 = vpop.f32.mrf.mxu0
        %v1572 = vadd.f32 %v1399, %v1571
        %v1573 = vpop.f32.mrf.mxu0
        %v1574 = vpop.f32.mrf.mxu0
        %v1575 = vadd.f32 %v1399, %v1574
        %v1576 = vpop.f32.mrf.mxu0
        %1577 = vmatprep.mubr.bf16.mxu0 %v1376
        %1578 = vmatmul.mubr.bf16.gmra.mxu0 %v1375
        %v1579 = vpop.f32.mrf.mxu0
        %v1580 = vadd.f32 %v1399, %v1579
        %v1581 = vpop.f32.mrf.mxu0
        %v1582 = vpop.f32.mrf.mxu0
        %v1583 = vadd.f32 %v1399, %v1582
        %v1584 = vpop.f32.mrf.mxu0
        %1585 = vmatprep.mubr.bf16.mxu0 %v1378
        %1586 = vmatmul.mubr.bf16.gmra.mxu0 %v1377
        %v1587 = vpop.f32.mrf.mxu0
        %v1588 = vadd.f32 %v1399, %v1587
        %v1589 = vpop.f32.mrf.mxu0
        %v1590 = vpop.f32.mrf.mxu0
        %v1591 = vadd.f32 %v1399, %v1590
        %v1592 = vpop.f32.mrf.mxu0
        %1593 = vmatprep.mubr.bf16.mxu0 %v1380
        %1594 = vmatmul.mubr.bf16.gmra.mxu0 %v1379
        %v1595 = vpop.f32.mrf.mxu0
        %v1596 = vadd.f32 %v1399, %v1595
        %v1597 = vpop.f32.mrf.mxu0
        %v1598 = vpop.f32.mrf.mxu0
        %v1599 = vadd.f32 %v1399, %v1598
        %v1600 = vpop.f32.mrf.mxu0
        %1601 = vmatprep.mubr.bf16.mxu0 %v1382
        %1602 = vmatmul.mubr.bf16.gmra.mxu0 %v1381
        %v1603 = vpop.f32.mrf.mxu0
        %v1604 = vadd.f32 %v1399, %v1603
        %v1605 = vpop.f32.mrf.mxu0
        %v1606 = vpop.f32.mrf.mxu0
        %v1607 = vadd.f32 %v1399, %v1606
        %v1608 = vpop.f32.mrf.mxu0
        %1609 = vmatprep.mubr.bf16.mxu0 %v1384
        %1610 = vmatmul.mubr.bf16.gmra.mxu0 %v1383
        %v1611 = vpop.f32.mrf.mxu0
        %v1612 = vadd.f32 %v1399, %v1611
        %v1613 = vpop.f32.mrf.mxu0
        %v1614 = vpop.f32.mrf.mxu0
        %v1615 = vadd.f32 %v1399, %v1614
        %v1616 = vpop.f32.mrf.mxu0
        %1617 = vmatprep.mubr.bf16.mxu0 %v1386
        %1618 = vmatmul.mubr.bf16.gmra.mxu0 %v1385
        %v1619 = vpop.f32.mrf.mxu0
        %v1620 = vadd.f32 %v1399, %v1619
        %v1621 = vpop.f32.mrf.mxu0
        %v1622 = vpop.f32.mrf.mxu0
        %v1623 = vadd.f32 %v1399, %v1622
        %v1624 = vpop.f32.mrf.mxu0
        %1625 = vmatprep.mubr.bf16.mxu0 %v1388
        %1626 = vmatmul.mubr.bf16.gmra.mxu0 %v1387
        %v1627 = vpop.f32.mrf.mxu0
        %v1628 = vadd.f32 %v1399, %v1627
        %v1629 = vpop.f32.mrf.mxu0
        %v1630 = vpop.f32.mrf.mxu0
        %v1631 = vadd.f32 %v1399, %v1630
        %v1632 = vpop.f32.mrf.mxu0
        %1633 = vmatprep.mubr.bf16.mxu0 %v1390
        %1634 = vmatmul.mubr.bf16.gmra.mxu0 %v1389
        %v1635 = vpop.f32.mrf.mxu0
        %v1636 = vadd.f32 %v1399, %v1635
        %v1637 = vpop.f32.mrf.mxu0
        %v1638 = vpop.f32.mrf.mxu0
        %v1639 = vadd.f32 %v1399, %v1638
        %v1640 = vpop.f32.mrf.mxu0
        %1641 = vmatprep.mubr.bf16.mxu0 %v1392
        %1642 = vmatmul.mubr.bf16.gmra.mxu0 %v1391
        %v1643 = vpop.f32.mrf.mxu0
        %v1644 = vadd.f32 %v1399, %v1643
        %v1645 = vpop.f32.mrf.mxu0
        %v1646 = vpop.f32.mrf.mxu0
        %v1647 = vadd.f32 %v1399, %v1646
        %v1648 = vpop.f32.mrf.mxu0
        %1649 = vmatprep.mubr.bf16.mxu0 %v1394
        %1650 = vmatmul.mubr.bf16.gmra.mxu0 %v1393
        %v1651 = vpop.f32.mrf.mxu0
        %v1652 = vadd.f32 %v1399, %v1651
        %v1653 = vpop.f32.mrf.mxu0
        %v1654 = vpop.f32.mrf.mxu0
        %v1655 = vadd.f32 %v1399, %v1654
        %v1656 = vpop.f32.mrf.mxu0
        %1657 = vdwg.mxu0
        %1658 = vst [vmem:[%s279] sm:$0xff] %v1532
        %1659 = vst [vmem:[%s279 + $0x8] sm:$0xff] %v1535
        %1660 = vst [vmem:[%s279 + $0x10] sm:$0xff] %v1540
        %1661 = vst [vmem:[%s279 + $0x18] sm:$0xff] %v1543
        %1662 = vst [vmem:[%s279 + $0x20] sm:$0xff] %v1548
        %1663 = vst [vmem:[%s279 + $0x28] sm:$0xff] %v1551
        %1664 = vst [vmem:[%s279 + $0x30] sm:$0xff] %v1556
        %1665 = vst [vmem:[%s279 + $0x38] sm:$0xff] %v1559
        %1666 = vst [vmem:[%s279 + $0x40] sm:$0xff] %v1564
        %1667 = vst [vmem:[%s279 + $0x48] sm:$0xff] %v1567
        %1668 = vst [vmem:[%s279 + $0x50] sm:$0xff] %v1572
        %1669 = vst [vmem:[%s279 + $0x58] sm:$0xff] %v1575
        %1670 = vst [vmem:[%s279 + $0x60] sm:$0xff] %v1580
        %1671 = vst [vmem:[%s279 + $0x68] sm:$0xff] %v1583
        %1672 = vst [vmem:[%s279 + $0x70] sm:$0xff] %v1588
        %1673 = vst [vmem:[%s279 + $0x78] sm:$0xff] %v1591
        %1674 = vst [vmem:[%s279 + $0x80] sm:$0xff] %v1596
        %1675 = vst [vmem:[%s279 + $0x88] sm:$0xff] %v1599
        %1676 = vst [vmem:[%s279 + $0x90] sm:$0xff] %v1604
        %1677 = vst [vmem:[%s279 + $0x98] sm:$0xff] %v1607
        %1678 = vst [vmem:[%s279 + $0xa0] sm:$0xff] %v1612
        %1679 = vst [vmem:[%s279 + $0xa8] sm:$0xff] %v1615
        %1680 = vst [vmem:[%s279 + $0xb0] sm:$0xff] %v1620
        %1681 = vst [vmem:[%s279 + $0xb8] sm:$0xff] %v1623
        %1682 = vst [vmem:[%s279 + $0xc0] sm:$0xff] %v1628
        %1683 = vst [vmem:[%s279 + $0xc8] sm:$0xff] %v1631
        %1684 = vst [vmem:[%s279 + $0xd0] sm:$0xff] %v1636
        %1685 = vst [vmem:[%s279 + $0xd8] sm:$0xff] %v1639
        %1686 = vst [vmem:[%s279 + $0xe0] sm:$0xff] %v1644
        %1687 = vst [vmem:[%s279 + $0xe8] sm:$0xff] %v1647
        %1688 = vst [vmem:[%s279 + $0xf0] sm:$0xff] %v1652
        %1689 = vst [vmem:[%s279 + $0xf8] sm:$0xff] %v1655
        %s1690 = sand.u32 %s141, 1
        %s1691 = scalar_lea.sflag [#allocation4], %s1690
        %s1692 = sand.u32 %s141, 1
        %s1693 = smul.addr %s1692, 256
        %s1694 = scalar_lea.vmem [#allocation8], %s1693
        // Predicated region
        $region53: #{tpu_custom_call.1} parent=39 // pred_check
          %p1695 = pneg %p151
        $region54: #{tpu_custom_call.1} parent=39 // pred_check_branch
          %1697 = sbr.rel (%p1695) target = $region56
        $region55: #{tpu_custom_call.1} parent=39 // pred_region
          %s1698 = smul.u32 32, %s23
          %s1699 = ssub.s32 38, %s1698
          %p1700 = scmp.lt.s32.totalorder %s1699, 32
          %s1701 = scalar_select %p1700, %s1699, 32
          %s1702 = smul.u32 128, %s1701
          %s1704 = ssub.s32 4096, %s1702
          %1705 = vsyncadd %s1691, %s1704
          %p1706 = scmp.ne.s32.totalorder 0, %s1702
          %s1707 = smul.addr %s1698, 128
          %s1708 = scalar_lea.hbm %s5, %s1707
          %s1709 = smul.u32 8, %s1701
          %s1710 = sshll.u32 %s1694, 4
          %s1711 = int_to_ptr.vmem [resolvable:$true] %s1710
          %s1712 = sshll.u32 %s1709, 4
          %1716 = dma.vmem_to_hbm [thread:$0]  (%p1706), %s1711, %s1712, %s1708, %s1691, 128, 128, 8
        $region56: #{tpu_custom_call.1} parent=39 // pred_fallthru
          _
      $region40: #{tpu_custom_call.1} parent=5 // pred_fallthru
        _
      %p1717 = scmp.le.s32.totalorder 2, %s18
      // Predicated region
      $region57: #{tpu_custom_call.1} parent=5 // pred_check
        %p1718 = pneg %p1717
      $region58: #{tpu_custom_call.1} parent=5 // pred_check_branch
        %1720 = sbr.rel (%p1718) target = $region60
      $region59: #{tpu_custom_call.1} parent=5 // pred_region
        %s1721 = ssub.s32 %s18, 2
        // Predicated region
        $region61: #{tpu_custom_call.1} parent=59 // pred_check
          %p1722 = pneg %p157
        $region62: #{tpu_custom_call.1} parent=59 // pred_check_branch
          %1724 = sbr.rel (%p1722) target = $region64
        $region63: #{tpu_custom_call.1} parent=59 // pred_region
          %s1725 = sand.u32 %s142, 1
          %s1726 = scalar_lea.sflag [#allocation4], %s1725
          %s1727 = sand.u32 %s142, 1
          %s1728 = smul.addr %s1727, 256
          %s1729 = scalar_lea.vmem [#allocation8], %s1728
          %1730 = dma.done %s1726, 4096
        $region64: #{tpu_custom_call.1} parent=59 // pred_fallthru
          _
      $region60: #{tpu_custom_call.1} parent=5 // pred_fallthru
        _
    $region6: #{tpu_custom_call.1} parent=1 // loop_footer
      %s22 = sadd.s32 1, %s18
    $region7: #{tpu_custom_call.1} parent=1 // loop_footer_branch
      %17 = sbr.rel target = $region3
    $region8: #{tpu_custom_call.1} parent=1 // loop_exit
      _
    %1731 = vsyncpa [#allocation3], 1
    %s1732 = scalar_lea.sflag [#allocation3], 1
    %1733 = vsyncpa %s1732, 1
    %1734 = vsyncpa [#allocation6], 1
    %1735 = vsyncpa [#allocation4], 1
    %s1736 = scalar_lea.sflag [#allocation4], 1
    %1737 = vsyncpa %s1736, 1

// kernel: tpu_custom_call.1
$region0: #{tpu_custom_call.1}
  #allocation0 [shape = 'u32[]', space=smem, size = 0x4, offset = 0x4, fixed_abs, tag = 'smem constant byte address 0x4 - core index']
  #allocation1 [shape = 'u32[144,128]{1,0:T(1,128)}', space=vmem, size = 0x12000, scoped, tag = 'internal scratch']
  %s0 = inlined_call_operand.hbm [shape: f32[300,512], index: 0, kind: input, shape index: {}]
  %s1 = inlined_call_operand.hbm [shape: bf16[512,256], index: 1, kind: input, shape index: {}]
  %s2 = inlined_call_operand.vmem [shape: f32[1,256], index: 2, kind: input, shape index: {}]
  %s3 = inlined_call_operand.hbm [shape: bf16[256,128], index: 3, kind: input, shape index: {}]
  %s4 = inlined_call_operand.vmem [shape: f32[1,128], index: 4, kind: input, shape index: {}]
  %s5 = inlined_call_operand.hbm [shape: f32[300,128], index: 5, kind: output, shape index: {}]
  %s6 = sld [smem:[#allocation0]]
  $region65: #{tpu_custom_call.1} parent=0
    _
  %s8 = ssub.s32 1, %s6
  %s9 = scalar_select 0, %s8, %s6
  $region1: #{tpu_custom_call.1} parent=0
    #allocation2 [shape = 'u8[1048576]{0}', space=vmem, size = 0x100000, scoped, tag = 'input window, operand 0']
    #allocation3 [shape = 's32[2]{0}', space=sflag, size = 0x8, scoped, tag = 'scoped memory for tpu_custom_call.1']
    #allocation4 [shape = 's32[2]{0}', space=sflag, size = 0x8, scoped, tag = 'scoped memory for tpu_custom_call.1']
    #allocation5 [shape = 'u8[262144]{0}', space=vmem, size = 0x40000, scoped, tag = 'input window, operand 1, single buffered']
    #allocation6 [shape = 's32[1]{0}', space=sflag, size = 0x4, scoped, tag = 'scoped memory for tpu_custom_call.1']
    #allocation7 [shape = 'u8[65536]{0}', space=vmem, size = 0x10000, scoped, tag = 'input window, operand 3, single buffered']
    #allocation8 [shape = 'u8[262144]{0}', space=vmem, size = 0x40000, scoped, tag = 'output window, operand 0']
    %10 = vsyncpa [#allocation3], 0
    %s11 = scalar_lea.sflag [#allocation3], 1
    %12 = vsyncpa %s11, 0
    %13 = vsyncpa [#allocation6], 0
    %14 = vsyncpa [#allocation4], 0
    %s15 = scalar_lea.sflag [#allocation4], 1
    %16 = vsyncpa %s15, 0
    loop: start=0, step=1, limit=4
    $region2: #{tpu_custom_call.1} parent=1 // loop_pre_header
      _
    $region3: #{tpu_custom_call.1} parent=1 // loop_header
      %s18 = sphi 0, %s22
      %p19 = scmp.ge.s32.totalorder %s18, 4
      %s28 = sphi 0, %s30
      %s31 = sphi 0, %s28
      %s32 = sphi 0, %s31
      %s48 = sphi 0, %s32
      %s52 = sphi 0, %s52
      %s54 = sphi 0, %s52
      %s55 = sphi 0, %s54
      %s69 = sphi 0, %s55
      %s73 = sphi 0, %s73
      %s75 = sphi 0, %s73
      %s76 = sphi 0, %s75
      %s90 = sphi 0, %s76
      %s94 = sphi 0, %s94
      %s96 = sphi 0, %s94
      %s97 = sphi 0, %s96
      %s111 = sphi 0, %s97
      %s115 = sphi 0, %s115
      %s117 = sphi 0, %s115
      %s118 = sphi 0, %s117
      %s132 = sphi 0, %s118
      %s138 = sphi 0, %s140
      %s141 = sphi 0, %s138
      %s142 = sphi 0, %s141
      %s158 = sphi 0, %s142
    $region4: #{tpu_custom_call.1} parent=1 // loop_header_branch
      %21 = sbr.rel (%p19) target = $region8
    $region5: #{tpu_custom_call.1} parent=1 // loop_body
      %s23 = ssub.s32 %s18, 1
      %s24 = ssub.s32 %s18, 2
      %s25 = sadd.s32 %s18, 1
      %s26 = ssub.s32 %s18, %s25
      %p27 = scmp.eq.s32.totalorder %s26, 0
      %s29 = sadd.s32 %s28, 1
      %s30 = scalar_select %p27, %s28, %s29
      %p33 = pneg %p27
      %p34 = scmp.eq.s32.totalorder %s18, 1
      %p35 = por %p33, %p34
      %p36 = scmp.ne.s32.totalorder %s28, %s31
      %p37 = scmp.eq.s32.totalorder %s18, 0
      %p38 = por %p36, %p37
      %p39 = scmp.ne.s32.totalorder %s28, %s31
      %p40 = scmp.eq.s32.totalorder %s23, 1
      %p41 = por %p39, %p40
      %p42 = scmp.ne.s32.totalorder %s31, %s32
      %p43 = scmp.eq.s32.totalorder %s23, 0
      %p44 = por %p42, %p43
      %p45 = scmp.ne.s32.totalorder %s31, %s32
      %p46 = scmp.eq.s32.totalorder %s24, 1
      %p47 = por %p45, %p46
      %p49 = scmp.ne.s32.totalorder %s32, %s48
      %p50 = scmp.eq.s32.totalorder %s24, 0
      %p51 = por %p49, %p50
      %s53 = sadd.s32 %s52, 1
      %p56 = scmp.eq.s32.totalorder %s18, 1
      %p57 = scmp.ne.s32.totalorder %s52, %s54
      %p58 = scmp.eq.s32.totalorder %s18, 0
      %p59 = por %p57, %p58
      %p60 = scmp.ne.s32.totalorder %s52, %s54
      %p61 = scmp.eq.s32.totalorder %s23, 1
      %p62 = por %p60, %p61
      %p63 = scmp.ne.s32.totalorder %s54, %s55
      %p64 = scmp.eq.s32.totalorder %s23, 0
      %p65 = por %p63, %p64
      %p66 = scmp.ne.s32.totalorder %s54, %s55
      %p67 = scmp.eq.s32.totalorder %s24, 1
      %p68 = por %p66, %p67
      %p70 = scmp.ne.s32.totalorder %s55, %s69
      %p71 = scmp.eq.s32.totalorder %s24, 0
      %p72 = por %p70, %p71
      %s74 = sadd.s32 %s73, 1
      %p77 = scmp.eq.s32.totalorder %s18, 1
      %p78 = scmp.ne.s32.totalorder %s73, %s75
      %p79 = scmp.eq.s32.totalorder %s18, 0
      %p80 = por %p78, %p79
      %p81 = scmp.ne.s32.totalorder %s73, %s75
      %p82 = scmp.eq.s32.totalorder %s23, 1
      %p83 = por %p81, %p82
      %p84 = scmp.ne.s32.totalorder %s75, %s76
      %p85 = scmp.eq.s32.totalorder %s23, 0
      %p86 = por %p84, %p85
      %p87 = scmp.ne.s32.totalorder %s75, %s76
      %p88 = scmp.eq.s32.totalorder %s24, 1
      %p89 = por %p87, %p88
      %p91 = scmp.ne.s32.totalorder %s76, %s90
      %p92 = scmp.eq.s32.totalorder %s24, 0
      %p93 = por %p91, %p92
      %s95 = sadd.s32 %s94, 1
      %p98 = scmp.eq.s32.totalorder %s18, 1
      %p99 = scmp.ne.s32.totalorder %s94, %s96
      %p100 = scmp.eq.s32.totalorder %s18, 0
      %p101 = por %p99, %p100
      %p102 = scmp.ne.s32.totalorder %s94, %s96
      %p103 = scmp.eq.s32.totalorder %s23, 1
      %p104 = por %p102, %p103
      %p105 = scmp.ne.s32.totalorder %s96, %s97
      %p106 = scmp.eq.s32.totalorder %s23, 0
      %p107 = por %p105, %p106
      %p108 = scmp.ne.s32.totalorder %s96, %s97
      %p109 = scmp.eq.s32.totalorder %s24, 1
      %p110 = por %p108, %p109
      %p112 = scmp.ne.s32.totalorder %s97, %s111
      %p113 = scmp.eq.s32.totalorder %s24, 0
      %p114 = por %p112, %p113
      %s116 = sadd.s32 %s115, 1
      %p119 = scmp.eq.s32.totalorder %s18, 1
      %p120 = scmp.ne.s32.totalorder %s115, %s117
      %p121 = scmp.eq.s32.totalorder %s18, 0
      %p122 = por %p120, %p121
      %p123 = scmp.ne.s32.totalorder %s115, %s117
      %p124 = scmp.eq.s32.totalorder %s23, 1
      %p125 = por %p123, %p124
      %p126 = scmp.ne.s32.totalorder %s117, %s118
      %p127 = scmp.eq.s32.totalorder %s23, 0
      %p128 = por %p126, %p127
      %p129 = scmp.ne.s32.totalorder %s117, %s118
      %p130 = scmp.eq.s32.totalorder %s24, 1
      %p131 = por %p129, %p130
      %p133 = scmp.ne.s32.totalorder %s118, %s132
      %p134 = scmp.eq.s32.totalorder %s24, 0
      %p135 = por %p133, %p134
      %s136 = ssub.s32 %s18, %s25
      %p137 = scmp.eq.s32.totalorder %s136, 0
      %s139 = sadd.s32 %s138, 1
      %s140 = scalar_select %p137, %s138, %s139
      %p143 = pneg %p137
      %p144 = scmp.eq.s32.totalorder %s18, 1
      %p145 = por %p143, %p144
      %p146 = scmp.ne.s32.totalorder %s138, %s141
      %p147 = scmp.eq.s32.totalorder %s18, 0
      %p148 = por %p146, %p147
      %p149 = scmp.ne.s32.totalorder %s138, %s141
      %p150 = scmp.eq.s32.totalorder %s23, 1
      %p151 = por %p149, %p150
      %p152 = scmp.ne.s32.totalorder %s141, %s142
      %p153 = scmp.eq.s32.totalorder %s23, 0
      %p154 = por %p152, %p153
      %p155 = scmp.ne.s32.totalorder %s141, %s142
      %p156 = scmp.eq.s32.totalorder %s24, 1
      %p157 = por %p155, %p156
      %p159 = scmp.ne.s32.totalorder %s142, %s158
      %p160 = scmp.eq.s32.totalorder %s24, 0
      %p161 = por %p159, %p160
      %p162 = scmp.le.s32.totalorder 1, %s18
      %p163 = scmp.lt.s32.totalorder %s18, 3
      %p164 = pnand %p162, %p163
      %p165 = pneg %p164
      // Predicated region
      $region9: #{tpu_custom_call.1} parent=5 // pred_check
        _
      $region10: #{tpu_custom_call.1} parent=5 // pred_check_branch
        %167 = sbr.rel (%p164) target = $region12
      $region11: #{tpu_custom_call.1} parent=5 // pred_region
        %s168 = ssub.s32 %s18, 1
        // Predicated region
        $region13: #{tpu_custom_call.1} parent=11 // pred_check
          %p169 = pneg %p65
        $region14: #{tpu_custom_call.1} parent=11 // pred_check_branch
          %171 = sbr.rel (%p169) target = $region16
        $region15: #{tpu_custom_call.1} parent=11 // pred_region
          %s173 = ssub.s32 8192, 8192
          %174 = vsyncadd [#allocation6], %s173
          %s175 = sshll.u32 [#allocation5], 4
          %s176 = int_to_ptr.vmem [resolvable:$true] %s175
          %181 = dma.hbm_to_vmem [thread:$0]  %s1, 8192, %s176, [#allocation6], 128, 128, 8
        $region16: #{tpu_custom_call.1} parent=11 // pred_fallthru
          _
        // Predicated region
        $region17: #{tpu_custom_call.1} parent=11 // pred_check
          %p182 = pneg %p86
        $region18: #{tpu_custom_call.1} parent=11 // pred_check_branch
          %184 = sbr.rel (%p182) target = $region20
        $region19: #{tpu_custom_call.1} parent=11 // pred_region
          _
        $region20: #{tpu_custom_call.1} parent=11 // pred_fallthru
          _
        // Predicated region
        $region21: #{tpu_custom_call.1} parent=11 // pred_check
          %p185 = pneg %p107
        $region22: #{tpu_custom_call.1} parent=11 // pred_check_branch
          %187 = sbr.rel (%p185) target = $region24
        $region23: #{tpu_custom_call.1} parent=11 // pred_region
          %s189 = ssub.s32 2048, 2048
          %190 = vsyncadd [#allocation6], %s189
          %s191 = sshll.u32 [#allocation7], 4
          %s192 = int_to_ptr.vmem [resolvable:$true] %s191
          %197 = dma.hbm_to_vmem [thread:$0]  %s3, 2048, %s192, [#allocation6], 64, 64, 4
        $region24: #{tpu_custom_call.1} parent=11 // pred_fallthru
          _
        // Predicated region
        $region25: #{tpu_custom_call.1} parent=11 // pred_check
          %p198 = pneg %p128
        $region26: #{tpu_custom_call.1} parent=11 // pred_check_branch
          %200 = sbr.rel (%p198) target = $region28
        $region27: #{tpu_custom_call.1} parent=11 // pred_region
          _
        $region28: #{tpu_custom_call.1} parent=11 // pred_fallthru
          _
      $region12: #{tpu_custom_call.1} parent=5 // pred_fallthru
        _
      %p201 = scmp.lt.s32.totalorder %s18, 2
      // Predicated region
      $region29: #{tpu_custom_call.1} parent=5 // pred_check
        %p202 = pneg %p201
      $region30: #{tpu_custom_call.1} parent=5 // pred_check_branch
        %204 = sbr.rel (%p202) target = $region32
      $region31: #{tpu_custom_call.1} parent=5 // pred_region
        // Predicated region
        $region33: #{tpu_custom_call.1} parent=31 // pred_check
          %p205 = pneg %p38
        $region34: #{tpu_custom_call.1} parent=31 // pred_check_branch
          %207 = sbr.rel (%p205) target = $region36
        $region35: #{tpu_custom_call.1} parent=31 // pred_region
          %s208 = sand.u32 %s28, 1
          %s209 = scalar_lea.sflag [#allocation3], %s208
          %s210 = sand.u32 %s28, 1
          %s211 = smul.addr %s210, 1024
          %s212 = scalar_lea.vmem [#allocation2], %s211
          %s213 = smul.u32 32, %s18
          %s214 = ssub.s32 38, %s213
          %p215 = scmp.lt.s32.totalorder %s214, 32
          %s216 = scalar_select %p215, %s214, 32
          %s217 = smul.u32 128, %s216
          %s218 = smul.u32 %s217, 4
          %s220 = ssub.s32 16384, %s218
          %221 = vsyncadd %s209, %s220
          %p222 = scmp.ne.s32.totalorder 0, %s218
          %s223 = smul.addr %s213, 4
          %s224 = smul.addr %s223, 128
          %s225 = scalar_lea.hbm %s0, %s224
          %s226 = smul.u32 32, %s216
          %s227 = sshll.u32 %s212, 4
          %s228 = int_to_ptr.vmem [resolvable:$true] %s227
          %s229 = sshll.u32 %s226, 4
          %233 = dma.hbm_to_vmem [thread:$0]  (%p222), %s225, %s229, %s228, %s209, 512, 512, 32
        $region36: #{tpu_custom_call.1} parent=31 // pred_fallthru
          _
      $region32: #{tpu_custom_call.1} parent=5 // pred_fallthru
        _
      %p234 = scmp.le.s32.totalorder 1, %s18
      %p235 = scmp.lt.s32.totalorder %s18, 3
      %p236 = pnand %p234, %p235
      %p237 = pneg %p236
      // Predicated region
      $region37: #{tpu_custom_call.1} parent=5 // pred_check
        _
      $region38: #{tpu_custom_call.1} parent=5 // pred_check_branch
        %239 = sbr.rel (%p236) target = $region40
      $region39: #{tpu_custom_call.1} parent=5 // pred_region
        %s240 = ssub.s32 %s18, 1
        %s241 = sand.u32 %s31, 1
        %s242 = scalar_lea.sflag [#allocation3], %s241
        %s243 = sand.u32 %s31, 1
        %s244 = smul.addr %s243, 1024
        %s245 = scalar_lea.vmem [#allocation2], %s244
        // Predicated region
        $region41: #{tpu_custom_call.1} parent=39 // pred_check
          %p246 = pneg %p44
        $region42: #{tpu_custom_call.1} parent=39 // pred_check_branch
          %248 = sbr.rel (%p246) target = $region44
        $region43: #{tpu_custom_call.1} parent=39 // pred_region
          %249 = dma.done %s242, 16384
        $region44: #{tpu_custom_call.1} parent=39 // pred_fallthru
          _
        // Predicated region
        $region45: #{tpu_custom_call.1} parent=39 // pred_check
          %p250 = pneg %p65
        $region46: #{tpu_custom_call.1} parent=39 // pred_check_branch
          %252 = sbr.rel (%p250) target = $region48
        $region47: #{tpu_custom_call.1} parent=39 // pred_region
          %253 = dma.done [#allocation6], 8192
        $region48: #{tpu_custom_call.1} parent=39 // pred_fallthru
          _
        // Predicated region
        $region49: #{tpu_custom_call.1} parent=39 // pred_check
          %p254 = pneg %p107
        $region50: #{tpu_custom_call.1} parent=39 // pred_check_branch
          %256 = sbr.rel (%p254) target = $region52
        $region51: #{tpu_custom_call.1} parent=39 // pred_region
          %257 = dma.done [#allocation6], 2048
        $region52: #{tpu_custom_call.1} parent=39 // pred_fallthru
          _
        %s258 = sand.u32 %s31, 1
        %s259 = scalar_lea.sflag [#allocation3], %s258
        %s260 = sand.u32 %s31, 1
        %s261 = smul.addr %s260, 1024
        %s262 = scalar_lea.vmem [#allocation2], %s261
        %p263 = pneg %p44
        %p264 = pneg %p41
        %p265 = pneg %p65
        %p266 = pneg %p62
        %p267 = pneg %p86
        %p268 = pneg %p83
        %p269 = pneg %p107
        %p270 = pneg %p104
        %p271 = pneg %p128
        %p272 = pneg %p125
        %p273 = pneg %p154
        %p274 = pneg %p151
        %s275 = sand.u32 %s141, 1
        %s276 = scalar_lea.sflag [#allocation4], %s275
        %s277 = sand.u32 %s141, 1
        %s278 = smul.addr %s277, 256
        %s279 = scalar_lea.vmem [#allocation8], %s278
        %s280 = smul.u32 32, %s23
        %s281 = ssub.s32 38, %s280
        %p282 = scmp.lt.s32.totalorder %s281, 32
        %s283 = scalar_select %p282, %s281, 32
        %s284 = smul.u32 128, %s283
        %s285 = smul.u32 %s284, 4
        %s286 = smul.u32 32, %s23
        %s287 = ssub.s32 38, %s286
        %p288 = scmp.lt.s32.totalorder %s287, 32
        %s289 = scalar_select %p288, %s287, 32
        %s290 = smul.u32 128, %s289
        %v292 = vld [vmem:[%s245] sm:$0xff]
        %v293 = vld [vmem:[%s245 + $0x8] sm:$0xff]
        %v294 = vld [vmem:[%s245 + $0x10] sm:$0xff]
        %v295 = vld [vmem:[%s245 + $0x18] sm:$0xff]
        %v296 = vld [vmem:[%s245 + $0x20] sm:$0xff]
        %v297 = vld [vmem:[%s245 + $0x28] sm:$0xff]
        %v298 = vld [vmem:[%s245 + $0x30] sm:$0xff]
        %v299 = vld [vmem:[%s245 + $0x38] sm:$0xff]
        %v300 = vld [vmem:[%s245 + $0x40] sm:$0xff]
        %v301 = vld [vmem:[%s245 + $0x48] sm:$0xff]
        %v302 = vld [vmem:[%s245 + $0x50] sm:$0xff]
        %v303 = vld [vmem:[%s245 + $0x58] sm:$0xff]
        %v304 = vld [vmem:[%s245 + $0x60] sm:$0xff]
        %v305 = vld [vmem:[%s245 + $0x68] sm:$0xff]
        %v306 = vld [vmem:[%s245 + $0x70] sm:$0xff]
        %v307 = vld [vmem:[%s245 + $0x78] sm:$0xff]
        %v308 = vld [vmem:[%s245 + $0x80] sm:$0xff]
        %v309 = vld [vmem:[%s245 + $0x88] sm:$0xff]
        %v310 = vld [vmem:[%s245 + $0x90] sm:$0xff]
        %v311 = vld [vmem:[%s245 + $0x98] sm:$0xff]
        %v312 = vld [vmem:[%s245 + $0xa0] sm:$0xff]
        %v313 = vld [vmem:[%s245 + $0xa8] sm:$0xff]
        %v314 = vld [vmem:[%s245 + $0xb0] sm:$0xff]
        %v315 = vld [vmem:[%s245 + $0xb8] sm:$0xff]
        %v316 = vld [vmem:[%s245 + $0xc0] sm:$0xff]
        %v317 = vld [vmem:[%s245 + $0xc8] sm:$0xff]
        %v318 = vld [vmem:[%s245 + $0xd0] sm:$0xff]
        %v319 = vld [vmem:[%s245 + $0xd8] sm:$0xff]
        %v320 = vld [vmem:[%s245 + $0xe0] sm:$0xff]
        %v321 = vld [vmem:[%s245 + $0xe8] sm:$0xff]
        %v322 = vld [vmem:[%s245 + $0xf0] sm:$0xff]
        %v323 = vld [vmem:[%s245 + $0xf8] sm:$0xff]
        %v324 = vld [vmem:[%s245 + $0x100] sm:$0xff]
        %v325 = vld [vmem:[%s245 + $0x108] sm:$0xff]
        %v326 = vld [vmem:[%s245 + $0x110] sm:$0xff]
        %v327 = vld [vmem:[%s245 + $0x118] sm:$0xff]
        %v328 = vld [vmem:[%s245 + $0x120] sm:$0xff]
        %v329 = vld [vmem:[%s245 + $0x128] sm:$0xff]
        %v330 = vld [vmem:[%s245 + $0x130] sm:$0xff]
        %v331 = vld [vmem:[%s245 + $0x138] sm:$0xff]
        %v332 = vld [vmem:[%s245 + $0x140] sm:$0xff]
        %v333 = vld [vmem:[%s245 + $0x148] sm:$0xff]
        %v334 = vld [vmem:[%s245 + $0x150] sm:$0xff]
        %v335 = vld [vmem:[%s245 + $0x158] sm:$0xff]
        %v336 = vld [vmem:[%s245 + $0x160] sm:$0xff]
        %v337 = vld [vmem:[%s245 + $0x168] sm:$0xff]
        %v338 = vld [vmem:[%s245 + $0x170] sm:$0xff]
        %v339 = vld [vmem:[%s245 + $0x178] sm:$0xff]
        %v340 = vld [vmem:[%s245 + $0x180] sm:$0xff]
        %v341 = vld [vmem:[%s245 + $0x188] sm:$0xff]
        %v342 = vld [vmem:[%s245 + $0x190] sm:$0xff]
        %v343 = vld [vmem:[%s245 + $0x198] sm:$0xff]
        %v344 = vld [vmem:[%s245 + $0x1a0] sm:$0xff]
        %v345 = vld [vmem:[%s245 + $0x1a8] sm:$0xff]
        %v346 = vld [vmem:[%s245 + $0x1b0] sm:$0xff]
        %v347 = vld [vmem:[%s245 + $0x1b8] sm:$0xff]
        %v348 = vld [vmem:[%s245 + $0x1c0] sm:$0xff]
        %v349 = vld [vmem:[%s245 + $0x1c8] sm:$0xff]
        %v350 = vld [vmem:[%s245 + $0x1d0] sm:$0xff]
        %v351 = vld [vmem:[%s245 + $0x1d8] sm:$0xff]
        %v352 = vld [vmem:[%s245 + $0x1e0] sm:$0xff]
        %v353 = vld [vmem:[%s245 + $0x1e8] sm:$0xff]
        %v354 = vld [vmem:[%s245 + $0x1f0] sm:$0xff]
        %v355 = vld [vmem:[%s245 + $0x1f8] sm:$0xff]
        %v356 = vld [vmem:[%s245 + $0x200] sm:$0xff]
        %v357 = vld [vmem:[%s245 + $0x208] sm:$0xff]
        %v358 = vld [vmem:[%s245 + $0x210] sm:$0xff]
        %v359 = vld [vmem:[%s245 + $0x218] sm:$0xff]
        %v360 = vld [vmem:[%s245 + $0x220] sm:$0xff]
        %v361 = vld [vmem:[%s245 + $0x228] sm:$0xff]
        %v362 = vld [vmem:[%s245 + $0x230] sm:$0xff]
        %v363 = vld [vmem:[%s245 + $0x238] sm:$0xff]
        %v364 = vld [vmem:[%s245 + $0x240] sm:$0xff]
        %v365 = vld [vmem:[%s245 + $0x248] sm:$0xff]
        %v366 = vld [vmem:[%s245 + $0x250] sm:$0xff]
        %v367 = vld [vmem:[%s245 + $0x258] sm:$0xff]
        %v368 = vld [vmem:[%s245 + $0x260] sm:$0xff]
        %v369 = vld [vmem:[%s245 + $0x268] sm:$0xff]
        %v370 = vld [vmem:[%s245 + $0x270] sm:$0xff]
        %v371 = vld [vmem:[%s245 + $0x278] sm:$0xff]
        %v372 = vld [vmem:[%s245 + $0x280] sm:$0xff]
        %v373 = vld [vmem:[%s245 + $0x288] sm:$0xff]
        %v374 = vld [vmem:[%s245 + $0x290] sm:$0xff]
        %v375 = vld [vmem:[%s245 + $0x298] sm:$0xff]
        %v376 = vld [vmem:[%s245 + $0x2a0] sm:$0xff]
        %v377 = vld [vmem:[%s245 + $0x2a8] sm:$0xff]
        %v378 = vld [vmem:[%s245 + $0x2b0] sm:$0xff]
        %v379 = vld [vmem:[%s245 + $0x2b8] sm:$0xff]
        %v380 = vld [vmem:[%s245 + $0x2c0] sm:$0xff]
        %v381 = vld [vmem:[%s245 + $0x2c8] sm:$0xff]
        %v382 = vld [vmem:[%s245 + $0x2d0] sm:$0xff]
        %v383 = vld [vmem:[%s245 + $0x2d8] sm:$0xff]
        %v384 = vld [vmem:[%s245 + $0x2e0] sm:$0xff]
        %v385 = vld [vmem:[%s245 + $0x2e8] sm:$0xff]
        %v386 = vld [vmem:[%s245 + $0x2f0] sm:$0xff]
        %v387 = vld [vmem:[%s245 + $0x2f8] sm:$0xff]
        %v388 = vld [vmem:[%s245 + $0x300] sm:$0xff]
        %v389 = vld [vmem:[%s245 + $0x308] sm:$0xff]
        %v390 = vld [vmem:[%s245 + $0x310] sm:$0xff]
        %v391 = vld [vmem:[%s245 + $0x318] sm:$0xff]
        %v392 = vld [vmem:[%s245 + $0x320] sm:$0xff]
        %v393 = vld [vmem:[%s245 + $0x328] sm:$0xff]
        %v394 = vld [vmem:[%s245 + $0x330] sm:$0xff]
        %v395 = vld [vmem:[%s245 + $0x338] sm:$0xff]
        %v396 = vld [vmem:[%s245 + $0x340] sm:$0xff]
        %v397 = vld [vmem:[%s245 + $0x348] sm:$0xff]
        %v398 = vld [vmem:[%s245 + $0x350] sm:$0xff]
        %v399 = vld [vmem:[%s245 + $0x358] sm:$0xff]
        %v400 = vld [vmem:[%s245 + $0x360] sm:$0xff]
        %v401 = vld [vmem:[%s245 + $0x368] sm:$0xff]
        %v402 = vld [vmem:[%s245 + $0x370] sm:$0xff]
        %v403 = vld [vmem:[%s245 + $0x378] sm:$0xff]
        %v404 = vld [vmem:[%s245 + $0x380] sm:$0xff]
        %v405 = vld [vmem:[%s245 + $0x388] sm:$0xff]
        %v406 = vld [vmem:[%s245 + $0x390] sm:$0xff]
        %v407 = vld [vmem:[%s245 + $0x398] sm:$0xff]
        %v408 = vld [vmem:[%s245 + $0x3a0] sm:$0xff]
        %v409 = vld [vmem:[%s245 + $0x3a8] sm:$0xff]
        %v410 = vld [vmem:[%s245 + $0x3b0] sm:$0xff]
        %v411 = vld [vmem:[%s245 + $0x3b8] sm:$0xff]
        %v412 = vld [vmem:[%s245 + $0x3c0] sm:$0xff]
        %v413 = vld [vmem:[%s245 + $0x3c8] sm:$0xff]
        %v414 = vld [vmem:[%s245 + $0x3d0] sm:$0xff]
        %v415 = vld [vmem:[%s245 + $0x3d8] sm:$0xff]
        %v416 = vld [vmem:[%s245 + $0x3e0] sm:$0xff]
        %v417 = vld [vmem:[%s245 + $0x3e8] sm:$0xff]
        %v418 = vld [vmem:[%s245 + $0x3f0] sm:$0xff]
        %v419 = vld [vmem:[%s245 + $0x3f8] sm:$0xff]
        %v420 = vld [vmem:[#allocation5] sm:$0xff]
        %v421 = vld [vmem:[#allocation5 + $0x8] sm:$0xff]
        %v422 = vld [vmem:[#allocation5 + $0x10] sm:$0xff]
        %v423 = vld [vmem:[#allocation5 + $0x18] sm:$0xff]
        %v424 = vld [vmem:[#allocation5 + $0x20] sm:$0xff]
        %v425 = vld [vmem:[#allocation5 + $0x28] sm:$0xff]
        %v426 = vld [vmem:[#allocation5 + $0x30] sm:$0xff]
        %v427 = vld [vmem:[#allocation5 + $0x38] sm:$0xff]
        %v428 = vld [vmem:[#allocation5 + $0x40] sm:$0xff]
        %v429 = vld [vmem:[#allocation5 + $0x48] sm:$0xff]
        %v430 = vld [vmem:[#allocation5 + $0x50] sm:$0xff]
        %v431 = vld [vmem:[#allocation5 + $0x58] sm:$0xff]
        %v432 = vld [vmem:[#allocation5 + $0x60] sm:$0xff]
        %v433 = vld [vmem:[#allocation5 + $0x68] sm:$0xff]
        %v434 = vld [vmem:[#allocation5 + $0x70] sm:$0xff]
        %v435 = vld [vmem:[#allocation5 + $0x78] sm:$0xff]
        %v436 = vld [vmem:[#allocation5 + $0x80] sm:$0xff]
        %v437 = vld [vmem:[#allocation5 + $0x88] sm:$0xff]
        %v438 = vld [vmem:[#allocation5 + $0x90] sm:$0xff]
        %v439 = vld [vmem:[#allocation5 + $0x98] sm:$0xff]
        %v440 = vld [vmem:[#allocation5 + $0xa0] sm:$0xff]
        %v441 = vld [vmem:[#allocation5 + $0xa8] sm:$0xff]
        %v442 = vld [vmem:[#allocation5 + $0xb0] sm:$0xff]
        %v443 = vld [vmem:[#allocation5 + $0xb8] sm:$0xff]
        %v444 = vld [vmem:[#allocation5 + $0xc0] sm:$0xff]
        %v445 = vld [vmem:[#allocation5 + $0xc8] sm:$0xff]
        %v446 = vld [vmem:[#allocation5 + $0xd0] sm:$0xff]
        %v447 = vld [vmem:[#allocation5 + $0xd8] sm:$0xff]
        %v448 = vld [vmem:[#allocation5 + $0xe0] sm:$0xff]
        %v449 = vld [vmem:[#allocation5 + $0xe8] sm:$0xff]
        %v450 = vld [vmem:[#allocation5 + $0xf0] sm:$0xff]
        %v451 = vld [vmem:[#allocation5 + $0xf8] sm:$0xff]
        %v452 = vld [vmem:[#allocation5 + $0x100] sm:$0xff]
        %v453 = vld [vmem:[#allocation5 + $0x108] sm:$0xff]
        %v454 = vld [vmem:[#allocation5 + $0x110] sm:$0xff]
        %v455 = vld [vmem:[#allocation5 + $0x118] sm:$0xff]
        %v456 = vld [vmem:[#allocation5 + $0x120] sm:$0xff]
        %v457 = vld [vmem:[#allocation5 + $0x128] sm:$0xff]
        %v458 = vld [vmem:[#allocation5 + $0x130] sm:$0xff]
        %v459 = vld [vmem:[#allocation5 + $0x138] sm:$0xff]
        %v460 = vld [vmem:[#allocation5 + $0x140] sm:$0xff]
        %v461 = vld [vmem:[#allocation5 + $0x148] sm:$0xff]
        %v462 = vld [vmem:[#allocation5 + $0x150] sm:$0xff]
        %v463 = vld [vmem:[#allocation5 + $0x158] sm:$0xff]
        %v464 = vld [vmem:[#allocation5 + $0x160] sm:$0xff]
        %v465 = vld [vmem:[#allocation5 + $0x168] sm:$0xff]
        %v466 = vld [vmem:[#allocation5 + $0x170] sm:$0xff]
        %v467 = vld [vmem:[#allocation5 + $0x178] sm:$0xff]
        %v468 = vld [vmem:[#allocation5 + $0x180] sm:$0xff]
        %v469 = vld [vmem:[#allocation5 + $0x188] sm:$0xff]
        %v470 = vld [vmem:[#allocation5 + $0x190] sm:$0xff]
        %v471 = vld [vmem:[#allocation5 + $0x198] sm:$0xff]
        %v472 = vld [vmem:[#allocation5 + $0x1a0] sm:$0xff]
        %v473 = vld [vmem:[#allocation5 + $0x1a8] sm:$0xff]
        %v474 = vld [vmem:[#allocation5 + $0x1b0] sm:$0xff]
        %v475 = vld [vmem:[#allocation5 + $0x1b8] sm:$0xff]
        %v476 = vld [vmem:[#allocation5 + $0x1c0] sm:$0xff]
        %v477 = vld [vmem:[#allocation5 + $0x1c8] sm:$0xff]
        %v478 = vld [vmem:[#allocation5 + $0x1d0] sm:$0xff]
        %v479 = vld [vmem:[#allocation5 + $0x1d8] sm:$0xff]
        %v480 = vld [vmem:[#allocation5 + $0x1e0] sm:$0xff]
        %v481 = vld [vmem:[#allocation5 + $0x1e8] sm:$0xff]
        %v482 = vld [vmem:[#allocation5 + $0x1f0] sm:$0xff]
        %v483 = vld [vmem:[#allocation5 + $0x1f8] sm:$0xff]
        %v484 = vld [vmem:[%s2] sm:$0x3]
        %v485 = vpack.c.bf16 %v296, %v292
        %v486 = vpack.c.bf16 %v297, %v293
        %v487 = vpack.c.bf16 %v298, %v294
        %v488 = vpack.c.bf16 %v299, %v295
        %v489 = vpack.c.bf16 %v304, %v300
        %v490 = vpack.c.bf16 %v305, %v301
        %v491 = vpack.c.bf16 %v306, %v302
        %v492 = vpack.c.bf16 %v307, %v303
        %v493 = vpack.c.bf16 %v312, %v308
        %v494 = vpack.c.bf16 %v313, %v309
        %v495 = vpack.c.bf16 %v314, %v310
        %v496 = vpack.c.bf16 %v315, %v311
        %v497 = vpack.c.bf16 %v320, %v316
        %v498 = vpack.c.bf16 %v321, %v317
        %v499 = vpack.c.bf16 %v322, %v318
        %v500 = vpack.c.bf16 %v323, %v319
        %v501 = vpack.c.bf16 %v328, %v324
        %v502 = vpack.c.bf16 %v329, %v325
        %v503 = vpack.c.bf16 %v330, %v326
        %v504 = vpack.c.bf16 %v331, %v327
        %v505 = vpack.c.bf16 %v336, %v332
        %v506 = vpack.c.bf16 %v337, %v333
        %v507 = vpack.c.bf16 %v338, %v334
        %v508 = vpack.c.bf16 %v339, %v335
        %v509 = vpack.c.bf16 %v344, %v340
        %v510 = vpack.c.bf16 %v345, %v341
        %v511 = vpack.c.bf16 %v346, %v342
        %v512 = vpack.c.bf16 %v347, %v343
        %v513 = vpack.c.bf16 %v352, %v348
        %v514 = vpack.c.bf16 %v353, %v349
        %v515 = vpack.c.bf16 %v354, %v350
        %v516 = vpack.c.bf16 %v355, %v351
        %v517 = vpack.c.bf16 %v360, %v356
        %v518 = vpack.c.bf16 %v361, %v357
        %v519 = vpack.c.bf16 %v362, %v358
        %v520 = vpack.c.bf16 %v363, %v359
        %v521 = vpack.c.bf16 %v368, %v364
        %v522 = vpack.c.bf16 %v369, %v365
        %v523 = vpack.c.bf16 %v370, %v366
        %v524 = vpack.c.bf16 %v371, %v367
        %v525 = vpack.c.bf16 %v376, %v372
        %v526 = vpack.c.bf16 %v377, %v373
        %v527 = vpack.c.bf16 %v378, %v374
        %v528 = vpack.c.bf16 %v379, %v375
        %v529 = vpack.c.bf16 %v384, %v380
        %v530 = vpack.c.bf16 %v385, %v381
        %v531 = vpack.c.bf16 %v386, %v382
        %v532 = vpack.c.bf16 %v387, %v383
        %v533 = vpack.c.bf16 %v392, %v388
        %v534 = vpack.c.bf16 %v393, %v389
        %v535 = vpack.c.bf16 %v394, %v390
        %v536 = vpack.c.bf16 %v395, %v391
        %v537 = vpack.c.bf16 %v400, %v396
        %v538 = vpack.c.bf16 %v401, %v397
        %v539 = vpack.c.bf16 %v402, %v398
        %v540 = vpack.c.bf16 %v403, %v399
        %v541 = vpack.c.bf16 %v408, %v404
        %v542 = vpack.c.bf16 %v409, %v405
        %v543 = vpack.c.bf16 %v410, %v406
        %v544 = vpack.c.bf16 %v411, %v407
        %v545 = vpack.c.bf16 %v416, %v412
        %v546 = vpack.c.bf16 %v417, %v413
        %v547 = vpack.c.bf16 %v418, %v414
        %v548 = vpack.c.bf16 %v419, %v415
        %v550 = vlaneseq
        %v551 = vshrl.u32 %v550, 7
        %v552 = vsub.s32 0, %v551
        %v553 = vrot.slane %v484, %v552
        %v554 = vlaneseq
        %v555 = vshrl.u32 %v554, 7
        %v556 = vsub.s32 1, %v555
        %v557 = vrot.slane %v484, %v556
        %v624 = vunpack.c.l.b16 %v420
        %v625 = vunpack.c.h.b16 %v420
        %v626 = vunpack.c.l.b16 %v421
        %v627 = vunpack.c.h.b16 %v421
        %v628 = vunpack.c.l.b16 %v422
        %v629 = vunpack.c.h.b16 %v422
        %v630 = vunpack.c.l.b16 %v423
        %v631 = vunpack.c.h.b16 %v423
        %v632 = vunpack.c.l.b16 %v424
        %v633 = vunpack.c.h.b16 %v424
        %v634 = vunpack.c.l.b16 %v425
        %v635 = vunpack.c.h.b16 %v425
        %v636 = vunpack.c.l.b16 %v426
        %v637 = vunpack.c.h.b16 %v426
        %v638 = vunpack.c.l.b16 %v427
        %v639 = vunpack.c.h.b16 %v427
        %v640 = vunpack.c.l.b16 %v428
        %v641 = vunpack.c.h.b16 %v428
        %v642 = vunpack.c.l.b16 %v429
        %v643 = vunpack.c.h.b16 %v429
        %v644 = vunpack.c.l.b16 %v430
        %v645 = vunpack.c.h.b16 %v430
        %v646 = vunpack.c.l.b16 %v431
        %v647 = vunpack.c.h.b16 %v431
        %v648 = vunpack.c.l.b16 %v432
        %v649 = vunpack.c.h.b16 %v432
        %v650 = vunpack.c.l.b16 %v433
        %v651 = vunpack.c.h.b16 %v433
        %v652 = vunpack.c.l.b16 %v434
        %v653 = vunpack.c.h.b16 %v434
        %v654 = vunpack.c.l.b16 %v435
        %v655 = vunpack.c.h.b16 %v435
        %v656 = vunpack.c.l.b16 %v436
        %v657 = vunpack.c.h.b16 %v436
        %v658 = vunpack.c.l.b16 %v437
        %v659 = vunpack.c.h.b16 %v437
        %v660 = vunpack.c.l.b16 %v438
        %v661 = vunpack.c.h.b16 %v438
        %v662 = vunpack.c.l.b16 %v439
        %v663 = vunpack.c.h.b16 %v439
        %v664 = vunpack.c.l.b16 %v440
        %v665 = vunpack.c.h.b16 %v440
        %v666 = vunpack.c.l.b16 %v441
        %v667 = vunpack.c.h.b16 %v441
        %v668 = vunpack.c.l.b16 %v442
        %v669 = vunpack.c.h.b16 %v442
        %v670 = vunpack.c.l.b16 %v443
        %v671 = vunpack.c.h.b16 %v443
        %v672 = vunpack.c.l.b16 %v444
        %v673 = vunpack.c.h.b16 %v444
        %v674 = vunpack.c.l.b16 %v445
        %v675 = vunpack.c.h.b16 %v445
        %v676 = vunpack.c.l.b16 %v446
        %v677 = vunpack.c.h.b16 %v446
        %v678 = vunpack.c.l.b16 %v447
        %v679 = vunpack.c.h.b16 %v447
        %v680 = vunpack.c.l.b16 %v448
        %v681 = vunpack.c.h.b16 %v448
        %v682 = vunpack.c.l.b16 %v449
        %v683 = vunpack.c.h.b16 %v449
        %v684 = vunpack.c.l.b16 %v450
        %v685 = vunpack.c.h.b16 %v450
        %v686 = vunpack.c.l.b16 %v451
        %v687 = vunpack.c.h.b16 %v451
        %v688 = vunpack.c.l.b16 %v452
        %v689 = vunpack.c.h.b16 %v452
        %v690 = vunpack.c.l.b16 %v453
        %v691 = vunpack.c.h.b16 %v453
        %v692 = vunpack.c.l.b16 %v454
        %v693 = vunpack.c.h.b16 %v454
        %v694 = vunpack.c.l.b16 %v455
        %v695 = vunpack.c.h.b16 %v455
        %v696 = vunpack.c.l.b16 %v456
        %v697 = vunpack.c.h.b16 %v456
        %v698 = vunpack.c.l.b16 %v457
        %v699 = vunpack.c.h.b16 %v457
        %v700 = vunpack.c.l.b16 %v458
        %v701 = vunpack.c.h.b16 %v458
        %v702 = vunpack.c.l.b16 %v459
        %v703 = vunpack.c.h.b16 %v459
        %v704 = vunpack.c.l.b16 %v460
        %v705 = vunpack.c.h.b16 %v460
        %v706 = vunpack.c.l.b16 %v461
        %v707 = vunpack.c.h.b16 %v461
        %v708 = vunpack.c.l.b16 %v462
        %v709 = vunpack.c.h.b16 %v462
        %v710 = vunpack.c.l.b16 %v463
        %v711 = vunpack.c.h.b16 %v463
        %v712 = vunpack.c.l.b16 %v464
        %v713 = vunpack.c.h.b16 %v464
        %v714 = vunpack.c.l.b16 %v465
        %v715 = vunpack.c.h.b16 %v465
        %v716 = vunpack.c.l.b16 %v466
        %v717 = vunpack.c.h.b16 %v466
        %v718 = vunpack.c.l.b16 %v467
        %v719 = vunpack.c.h.b16 %v467
        %v720 = vunpack.c.l.b16 %v468
        %v721 = vunpack.c.h.b16 %v468
        %v722 = vunpack.c.l.b16 %v469
        %v723 = vunpack.c.h.b16 %v469
        %v724 = vunpack.c.l.b16 %v470
        %v725 = vunpack.c.h.b16 %v470
        %v726 = vunpack.c.l.b16 %v471
        %v727 = vunpack.c.h.b16 %v471
        %v728 = vunpack.c.l.b16 %v472
        %v729 = vunpack.c.h.b16 %v472
        %v730 = vunpack.c.l.b16 %v473
        %v731 = vunpack.c.h.b16 %v473
        %v732 = vunpack.c.l.b16 %v474
        %v733 = vunpack.c.h.b16 %v474
        %v734 = vunpack.c.l.b16 %v475
        %v735 = vunpack.c.h.b16 %v475
        %v736 = vunpack.c.l.b16 %v476
        %v737 = vunpack.c.h.b16 %v476
        %v738 = vunpack.c.l.b16 %v477
        %v739 = vunpack.c.h.b16 %v477
        %v740 = vunpack.c.l.b16 %v478
        %v741 = vunpack.c.h.b16 %v478
        %v742 = vunpack.c.l.b16 %v479
        %v743 = vunpack.c.h.b16 %v479
        %v744 = vunpack.c.l.b16 %v480
        %v745 = vunpack.c.h.b16 %v480
        %v746 = vunpack.c.l.b16 %v481
        %v747 = vunpack.c.h.b16 %v481
        %v748 = vunpack.c.l.b16 %v482
        %v749 = vunpack.c.h.b16 %v482
        %v750 = vunpack.c.l.b16 %v483
        %v751 = vunpack.c.h.b16 %v483
        %v752 = vpack.c.b16 %v626, %v624
        %v753 = vpack.c.b16 %v627, %v625
        %v754 = vpack.c.b16 %v630, %v628
        %v755 = vpack.c.b16 %v631, %v629
        %v756 = vpack.c.b16 %v634, %v632
        %v757 = vpack.c.b16 %v635, %v633
        %v758 = vpack.c.b16 %v638, %v636
        %v759 = vpack.c.b16 %v639, %v637
        %v760 = vpack.c.b16 %v642, %v640
        %v761 = vpack.c.b16 %v643, %v641
        %v762 = vpack.c.b16 %v646, %v644
        %v763 = vpack.c.b16 %v647, %v645
        %v764 = vpack.c.b16 %v650, %v648
        %v765 = vpack.c.b16 %v651, %v649
        %v766 = vpack.c.b16 %v654, %v652
        %v767 = vpack.c.b16 %v655, %v653
        %v768 = vpack.c.b16 %v658, %v656
        %v769 = vpack.c.b16 %v659, %v657
        %v770 = vpack.c.b16 %v662, %v660
        %v771 = vpack.c.b16 %v663, %v661
        %v772 = vpack.c.b16 %v666, %v664
        %v773 = vpack.c.b16 %v667, %v665
        %v774 = vpack.c.b16 %v670, %v668
        %v775 = vpack.c.b16 %v671, %v669
        %v776 = vpack.c.b16 %v674, %v672
        %v777 = vpack.c.b16 %v675, %v673
        %v778 = vpack.c.b16 %v678, %v676
        %v779 = vpack.c.b16 %v679, %v677
        %v780 = vpack.c.b16 %v682, %v680
        %v781 = vpack.c.b16 %v683, %v681
        %v782 = vpack.c.b16 %v686, %v684
        %v783 = vpack.c.b16 %v687, %v685
        %v784 = vpack.c.b16 %v690, %v688
        %v785 = vpack.c.b16 %v691, %v689
        %v786 = vpack.c.b16 %v694, %v692
        %v787 = vpack.c.b16 %v695, %v693
        %v788 = vpack.c.b16 %v698, %v696
        %v789 = vpack.c.b16 %v699, %v697
        %v790 = vpack.c.b16 %v702, %v700
        %v791 = vpack.c.b16 %v703, %v701
        %v792 = vpack.c.b16 %v706, %v704
        %v793 = vpack.c.b16 %v707, %v705
        %v794 = vpack.c.b16 %v710, %v708
        %v795 = vpack.c.b16 %v711, %v709
        %v796 = vpack.c.b16 %v714, %v712
        %v797 = vpack.c.b16 %v715, %v713
        %v798 = vpack.c.b16 %v718, %v716
        %v799 = vpack.c.b16 %v719, %v717
        %v800 = vpack.c.b16 %v722, %v720
        %v801 = vpack.c.b16 %v723, %v721
        %v802 = vpack.c.b16 %v726, %v724
        %v803 = vpack.c.b16 %v727, %v725
        %v804 = vpack.c.b16 %v730, %v728
        %v805 = vpack.c.b16 %v731, %v729
        %v806 = vpack.c.b16 %v734, %v732
        %v807 = vpack.c.b16 %v735, %v733
        %v808 = vpack.c.b16 %v738, %v736
        %v809 = vpack.c.b16 %v739, %v737
        %v810 = vpack.c.b16 %v742, %v740
        %v811 = vpack.c.b16 %v743, %v741
        %v812 = vpack.c.b16 %v746, %v744
        %v813 = vpack.c.b16 %v747, %v745
        %v814 = vpack.c.b16 %v750, %v748
        %v815 = vpack.c.b16 %v751, %v749
        %880 = vmatprep.subr.bf16.mxu0 %v767
        %881 = vmatpush1.bf16.msra.mxu0 %v766
        %882 = vmatprep.subr.bf16.mxu0 %v765
        %883 = vmatpush1.bf16.msra.mxu0 %v764
        %884 = vmatprep.subr.bf16.mxu0 %v763
        %885 = vmatpush1.bf16.msra.mxu0 %v762
        %886 = vmatprep.subr.bf16.mxu0 %v761
        %887 = vmatpush1.bf16.msra.mxu0 %v760
        %888 = vmatprep.subr.bf16.mxu0 %v759
        %889 = vmatpush1.bf16.msra.mxu0 %v758
        %890 = vmatprep.subr.bf16.mxu0 %v757
        %891 = vmatpush1.bf16.msra.mxu0 %v756
        %892 = vmatprep.subr.bf16.mxu0 %v755
        %893 = vmatpush1.bf16.msra.mxu0 %v754
        %894 = vmatprep.subr.bf16.mxu0 %v753
        %895 = vmatpush1.bf16.msra.mxu0 %v752
        %896 = vmatprep.subr.bf16.mxu0 %v783
        %897 = vmatpush2.bf16.msra.mxu0 %v782
        %898 = vmatprep.subr.bf16.mxu0 %v781
        %899 = vmatpush2.bf16.msra.mxu0 %v780
        %900 = vmatprep.subr.bf16.mxu0 %v779
        %901 = vmatpush2.bf16.msra.mxu0 %v778
        %902 = vmatprep.subr.bf16.mxu0 %v777
        %903 = vmatpush2.bf16.msra.mxu0 %v776
        %904 = vmatprep.subr.bf16.mxu0 %v775
        %905 = vmatpush2.bf16.msra.mxu0 %v774
        %906 = vmatprep.subr.bf16.mxu0 %v773
        %907 = vmatpush2.bf16.msra.mxu0 %v772
        %908 = vmatprep.subr.bf16.mxu0 %v771
        %909 = vmatpush2.bf16.msra.mxu0 %v770
        %910 = vmatprep.subr.bf16.mxu0 %v769
        %911 = vmatpush2.bf16.msra.mxu0 %v768
        %912 = vmatprep.mubr.bf16.mxu0 %v486
        %913 = vmatmul.mubr.bf16.gmra.mxu0 %v485
        %v914 = vpop.f32.mrf.mxu0
        %v915 = vadd.f32 %v553, %v914
        %v916 = vpop.f32.mrf.mxu0
        %v917 = vadd.f32 %v557, %v916
        %v918 = vpop.f32.mrf.mxu0
        %v919 = vadd.f32 %v553, %v918
        %v920 = vpop.f32.mrf.mxu0
        %v921 = vadd.f32 %v557, %v920
        %922 = vmatprep.mubr.bf16.mxu0 %v490
        %923 = vmatmul.mubr.bf16.gmra.mxu0 %v489
        %v924 = vpop.f32.mrf.mxu0
        %v925 = vadd.f32 %v553, %v924
        %v926 = vpop.f32.mrf.mxu0
        %v927 = vadd.f32 %v557, %v926
        %v928 = vpop.f32.mrf.mxu0
        %v929 = vadd.f32 %v553, %v928
        %v930 = vpop.f32.mrf.mxu0
        %v931 = vadd.f32 %v557, %v930
        %932 = vmatprep.mubr.bf16.mxu0 %v494
        %933 = vmatmul.mubr.bf16.gmra.mxu0 %v493
        %v934 = vpop.f32.mrf.mxu0
        %v935 = vadd.f32 %v553, %v934
        %v936 = vpop.f32.mrf.mxu0
        %v937 = vadd.f32 %v557, %v936
        %v938 = vpop.f32.mrf.mxu0
        %v939 = vadd.f32 %v553, %v938
        %v940 = vpop.f32.mrf.mxu0
        %v941 = vadd.f32 %v557, %v940
        %942 = vmatprep.mubr.bf16.mxu0 %v498
        %943 = vmatmul.mubr.bf16.gmra.mxu0 %v497
        %v944 = vpop.f32.mrf.mxu0
        %v945 = vadd.f32 %v553, %v944
        %v946 = vpop.f32.mrf.mxu0
        %v947 = vadd.f32 %v557, %v946
        %v948 = vpop.f32.mrf.mxu0
        %v949 = vadd.f32 %v553, %v948
        %v950 = vpop.f32.mrf.mxu0
        %v951 = vadd.f32 %v557, %v950
        %952 = vmatprep.mubr.bf16.mxu0 %v502
        %953 = vmatmul.mubr.bf16.gmra.mxu0 %v501
        %v954 = vpop.f32.mrf.mxu0
        %v955 = vadd.f32 %v553, %v954
        %v956 = vpop.f32.mrf.mxu0
        %v957 = vadd.f32 %v557, %v956
        %v958 = vpop.f32.mrf.mxu0
        %v959 = vadd.f32 %v553, %v958
        %v960 = vpop.f32.mrf.mxu0
        %v961 = vadd.f32 %v557, %v960
        %962 = vmatprep.mubr.bf16.mxu0 %v506
        %963 = vmatmul.mubr.bf16.gmra.mxu0 %v505
        %v964 = vpop.f32.mrf.mxu0
        %v965 = vadd.f32 %v553, %v964
        %v966 = vpop.f32.mrf.mxu0
        %v967 = vadd.f32 %v557, %v966
        %v968 = vpop.f32.mrf.mxu0
        %v969 = vadd.f32 %v553, %v968
        %v970 = vpop.f32.mrf.mxu0
        %v971 = vadd.f32 %v557, %v970
        %972 = vmatprep.mubr.bf16.mxu0 %v510
        %973 = vmatmul.mubr.bf16.gmra.mxu0 %v509
        %v974 = vpop.f32.mrf.mxu0
        %v975 = vadd.f32 %v553, %v974
        %v976 = vpop.f32.mrf.mxu0
        %v977 = vadd.f32 %v557, %v976
        %v978 = vpop.f32.mrf.mxu0
        %v979 = vadd.f32 %v553, %v978
        %v980 = vpop.f32.mrf.mxu0
        %v981 = vadd.f32 %v557, %v980
        %982 = vmatprep.mubr.bf16.mxu0 %v514
        %983 = vmatmul.mubr.bf16.gmra.mxu0 %v513
        %v984 = vpop.f32.mrf.mxu0
        %v985 = vadd.f32 %v553, %v984
        %v986 = vpop.f32.mrf.mxu0
        %v987 = vadd.f32 %v557, %v986
        %v988 = vpop.f32.mrf.mxu0
        %v989 = vadd.f32 %v553, %v988
        %v990 = vpop.f32.mrf.mxu0
        %v991 = vadd.f32 %v557, %v990
        %992 = vmatprep.mubr.bf16.mxu0 %v518
        %993 = vmatmul.mubr.bf16.gmra.mxu0 %v517
        %v994 = vpop.f32.mrf.mxu0
        %v995 = vadd.f32 %v553, %v994
        %v996 = vpop.f32.mrf.mxu0
        %v997 = vadd.f32 %v557, %v996
        %v998 = vpop.f32.mrf.mxu0
        %v999 = vadd.f32 %v553, %v998
        %v1000 = vpop.f32.mrf.mxu0
        %v1001 = vadd.f32 %v557, %v1000
        %1002 = vmatprep.mubr.bf16.mxu0 %v522
        %1003 = vmatmul.mubr.bf16.gmra.mxu0 %v521
        %v1004 = vpop.f32.mrf.mxu0
        %v1005 = vadd.f32 %v553, %v1004
        %v1006 = vpop.f32.mrf.mxu0
        %v1007 = vadd.f32 %v557, %v1006
        %v1008 = vpop.f32.mrf.mxu0
        %v1009 = vadd.f32 %v553, %v1008
        %v1010 = vpop.f32.mrf.mxu0
        %v1011 = vadd.f32 %v557, %v1010
        %1012 = vmatprep.mubr.bf16.mxu0 %v526
        %1013 = vmatmul.mubr.bf16.gmra.mxu0 %v525
        %v1014 = vpop.f32.mrf.mxu0
        %v1015 = vadd.f32 %v553, %v1014
        %v1016 = vpop.f32.mrf.mxu0
        %v1017 = vadd.f32 %v557, %v1016
        %v1018 = vpop.f32.mrf.mxu0
        %v1019 = vadd.f32 %v553, %v1018
        %v1020 = vpop.f32.mrf.mxu0
        %v1021 = vadd.f32 %v557, %v1020
        %1022 = vmatprep.mubr.bf16.mxu0 %v530
        %1023 = vmatmul.mubr.bf16.gmra.mxu0 %v529
        %v1024 = vpop.f32.mrf.mxu0
        %v1025 = vadd.f32 %v553, %v1024
        %v1026 = vpop.f32.mrf.mxu0
        %v1027 = vadd.f32 %v557, %v1026
        %v1028 = vpop.f32.mrf.mxu0
        %v1029 = vadd.f32 %v553, %v1028
        %v1030 = vpop.f32.mrf.mxu0
        %v1031 = vadd.f32 %v557, %v1030
        %1032 = vmatprep.mubr.bf16.mxu0 %v534
        %1033 = vmatmul.mubr.bf16.gmra.mxu0 %v533
        %v1034 = vpop.f32.mrf.mxu0
        %v1035 = vadd.f32 %v553, %v1034
        %v1036 = vpop.f32.mrf.mxu0
        %v1037 = vadd.f32 %v557, %v1036
        %v1038 = vpop.f32.mrf.mxu0
        %v1039 = vadd.f32 %v553, %v1038
        %v1040 = vpop.f32.mrf.mxu0
        %v1041 = vadd.f32 %v557, %v1040
        %1042 = vmatprep.mubr.bf16.mxu0 %v538
        %1043 = vmatmul.mubr.bf16.gmra.mxu0 %v537
        %v1044 = vpop.f32.mrf.mxu0
        %v1045 = vadd.f32 %v553, %v1044
        %v1046 = vpop.f32.mrf.mxu0
        %v1047 = vadd.f32 %v557, %v1046
        %v1048 = vpop.f32.mrf.mxu0
        %v1049 = vadd.f32 %v553, %v1048
        %v1050 = vpop.f32.mrf.mxu0
        %v1051 = vadd.f32 %v557, %v1050
        %1052 = vmatprep.mubr.bf16.mxu0 %v542
        %1053 = vmatmul.mubr.bf16.gmra.mxu0 %v541
        %v1054 = vpop.f32.mrf.mxu0
        %v1055 = vadd.f32 %v553, %v1054
        %v1056 = vpop.f32.mrf.mxu0
        %v1057 = vadd.f32 %v557, %v1056
        %v1058 = vpop.f32.mrf.mxu0
        %v1059 = vadd.f32 %v553, %v1058
        %v1060 = vpop.f32.mrf.mxu0
        %v1061 = vadd.f32 %v557, %v1060
        %1062 = vmatprep.mubr.bf16.mxu0 %v546
        %1063 = vmatmul.mubr.bf16.gmra.mxu0 %v545
        %v1064 = vpop.f32.mrf.mxu0
        %v1065 = vadd.f32 %v553, %v1064
        %v1066 = vpop.f32.mrf.mxu0
        %v1067 = vadd.f32 %v557, %v1066
        %v1068 = vpop.f32.mrf.mxu0
        %v1069 = vadd.f32 %v553, %v1068
        %v1070 = vpop.f32.mrf.mxu0
        %v1071 = vadd.f32 %v557, %v1070
        %1072 = vdwg.mxu0
        %1073 = vmatprep.subr.bf16.mxu0 %v799
        %1074 = vmatpush1.bf16.msra.mxu0 %v798
        %1075 = vmatprep.subr.bf16.mxu0 %v797
        %1076 = vmatpush1.bf16.msra.mxu0 %v796
        %1077 = vmatprep.subr.bf16.mxu0 %v795
        %1078 = vmatpush1.bf16.msra.mxu0 %v794
        %1079 = vmatprep.subr.bf16.mxu0 %v793
        %1080 = vmatpush1.bf16.msra.mxu0 %v792
        %1081 = vmatprep.subr.bf16.mxu0 %v791
        %1082 = vmatpush1.bf16.msra.mxu0 %v790
        %1083 = vmatprep.subr.bf16.mxu0 %v789
        %1084 = vmatpush1.bf16.msra.mxu0 %v788
        %1085 = vmatprep.subr.bf16.mxu0 %v787
        %1086 = vmatpush1.bf16.msra.mxu0 %v786
        %1087 = vmatprep.subr.bf16.mxu0 %v785
        %1088 = vmatpush1.bf16.msra.mxu0 %v784
        %1089 = vmatprep.subr.bf16.mxu0 %v815
        %1090 = vmatpush2.bf16.msra.mxu0 %v814
        %1091 = vmatprep.subr.bf16.mxu0 %v813
        %1092 = vmatpush2.bf16.msra.mxu0 %v812
        %1093 = vmatprep.subr.bf16.mxu0 %v811
        %1094 = vmatpush2.bf16.msra.mxu0 %v810
        %1095 = vmatprep.subr.bf16.mxu0 %v809
        %1096 = vmatpush2.bf16.msra.mxu0 %v808
        %1097 = vmatprep.subr.bf16.mxu0 %v807
        %1098 = vmatpush2.bf16.msra.mxu0 %v806
        %1099 = vmatprep.subr.bf16.mxu0 %v805
        %1100 = vmatpush2.bf16.msra.mxu0 %v804
        %1101 = vmatprep.subr.bf16.mxu0 %v803
        %1102 = vmatpush2.bf16.msra.mxu0 %v802
        %1103 = vmatprep.subr.bf16.mxu0 %v801
        %1104 = vmatpush2.bf16.msra.mxu0 %v800
        %1105 = vmatprep.mubr.bf16.mxu0 %v488
        %1106 = vmatmul.mubr.bf16.gmra.mxu0 %v487
        %v1107 = vpop.f32.mrf.mxu0
        %v1108 = vadd.f32 %v915, %v1107
        %v1109 = vpop.f32.mrf.mxu0
        %v1110 = vadd.f32 %v917, %v1109
        %v1111 = vpop.f32.mrf.mxu0
        %v1112 = vadd.f32 %v919, %v1111
        %v1113 = vpop.f32.mrf.mxu0
        %v1114 = vadd.f32 %v921, %v1113
        %1115 = vmatprep.mubr.bf16.mxu0 %v492
        %1116 = vmatmul.mubr.bf16.gmra.mxu0 %v491
        %v1117 = vpop.f32.mrf.mxu0
        %v1118 = vadd.f32 %v925, %v1117
        %v1119 = vpop.f32.mrf.mxu0
        %v1120 = vadd.f32 %v927, %v1119
        %v1121 = vpop.f32.mrf.mxu0
        %v1122 = vadd.f32 %v929, %v1121
        %v1123 = vpop.f32.mrf.mxu0
        %v1124 = vadd.f32 %v931, %v1123
        %1125 = vmatprep.mubr.bf16.mxu0 %v496
        %1126 = vmatmul.mubr.bf16.gmra.mxu0 %v495
        %v1127 = vpop.f32.mrf.mxu0
        %v1128 = vadd.f32 %v935, %v1127
        %v1129 = vpop.f32.mrf.mxu0
        %v1130 = vadd.f32 %v937, %v1129
        %v1131 = vpop.f32.mrf.mxu0
        %v1132 = vadd.f32 %v939, %v1131
        %v1133 = vpop.f32.mrf.mxu0
        %v1134 = vadd.f32 %v941, %v1133
        %1135 = vmatprep.mubr.bf16.mxu0 %v500
        %1136 = vmatmul.mubr.bf16.gmra.mxu0 %v499
        %v1137 = vpop.f32.mrf.mxu0
        %v1138 = vadd.f32 %v945, %v1137
        %v1139 = vpop.f32.mrf.mxu0
        %v1140 = vadd.f32 %v947, %v1139
        %v1141 = vpop.f32.mrf.mxu0
        %v1142 = vadd.f32 %v949, %v1141
        %v1143 = vpop.f32.mrf.mxu0
        %v1144 = vadd.f32 %v951, %v1143
        %1145 = vmatprep.mubr.bf16.mxu0 %v504
        %1146 = vmatmul.mubr.bf16.gmra.mxu0 %v503
        %v1147 = vpop.f32.mrf.mxu0
        %v1148 = vadd.f32 %v955, %v1147
        %v1149 = vpop.f32.mrf.mxu0
        %v1150 = vadd.f32 %v957, %v1149
        %v1151 = vpop.f32.mrf.mxu0
        %v1152 = vadd.f32 %v959, %v1151
        %v1153 = vpop.f32.mrf.mxu0
        %v1154 = vadd.f32 %v961, %v1153
        %1155 = vmatprep.mubr.bf16.mxu0 %v508
        %1156 = vmatmul.mubr.bf16.gmra.mxu0 %v507
        %v1157 = vpop.f32.mrf.mxu0
        %v1158 = vadd.f32 %v965, %v1157
        %v1159 = vpop.f32.mrf.mxu0
        %v1160 = vadd.f32 %v967, %v1159
        %v1161 = vpop.f32.mrf.mxu0
        %v1162 = vadd.f32 %v969, %v1161
        %v1163 = vpop.f32.mrf.mxu0
        %v1164 = vadd.f32 %v971, %v1163
        %1165 = vmatprep.mubr.bf16.mxu0 %v512
        %1166 = vmatmul.mubr.bf16.gmra.mxu0 %v511
        %v1167 = vpop.f32.mrf.mxu0
        %v1168 = vadd.f32 %v975, %v1167
        %v1169 = vpop.f32.mrf.mxu0
        %v1170 = vadd.f32 %v977, %v1169
        %v1171 = vpop.f32.mrf.mxu0
        %v1172 = vadd.f32 %v979, %v1171
        %v1173 = vpop.f32.mrf.mxu0
        %v1174 = vadd.f32 %v981, %v1173
        %1175 = vmatprep.mubr.bf16.mxu0 %v516
        %1176 = vmatmul.mubr.bf16.gmra.mxu0 %v515
        %v1177 = vpop.f32.mrf.mxu0
        %v1178 = vadd.f32 %v985, %v1177
        %v1179 = vpop.f32.mrf.mxu0
        %v1180 = vadd.f32 %v987, %v1179
        %v1181 = vpop.f32.mrf.mxu0
        %v1182 = vadd.f32 %v989, %v1181
        %v1183 = vpop.f32.mrf.mxu0
        %v1184 = vadd.f32 %v991, %v1183
        %1185 = vmatprep.mubr.bf16.mxu0 %v520
        %1186 = vmatmul.mubr.bf16.gmra.mxu0 %v519
        %v1187 = vpop.f32.mrf.mxu0
        %v1188 = vadd.f32 %v995, %v1187
        %v1189 = vpop.f32.mrf.mxu0
        %v1190 = vadd.f32 %v997, %v1189
        %v1191 = vpop.f32.mrf.mxu0
        %v1192 = vadd.f32 %v999, %v1191
        %v1193 = vpop.f32.mrf.mxu0
        %v1194 = vadd.f32 %v1001, %v1193
        %1195 = vmatprep.mubr.bf16.mxu0 %v524
        %1196 = vmatmul.mubr.bf16.gmra.mxu0 %v523
        %v1197 = vpop.f32.mrf.mxu0
        %v1198 = vadd.f32 %v1005, %v1197
        %v1199 = vpop.f32.mrf.mxu0
        %v1200 = vadd.f32 %v1007, %v1199
        %v1201 = vpop.f32.mrf.mxu0
        %v1202 = vadd.f32 %v1009, %v1201
        %v1203 = vpop.f32.mrf.mxu0
        %v1204 = vadd.f32 %v1011, %v1203
        %1205 = vmatprep.mubr.bf16.mxu0 %v528
        %1206 = vmatmul.mubr.bf16.gmra.mxu0 %v527
        %v1207 = vpop.f32.mrf.mxu0
        %v1208 = vadd.f32 %v1015, %v1207
        %v1209 = vpop.f32.mrf.mxu0
        %v1210 = vadd.f32 %v1017, %v1209
        %v1211 = vpop.f32.mrf.mxu0
        %v1212 = vadd.f32 %v1019, %v1211
        %v1213 = vpop.f32.mrf.mxu0
        %v1214 = vadd.f32 %v1021, %v1213
        %1215 = vmatprep.mubr.bf16.mxu0 %v532
        %1216 = vmatmul.mubr.bf16.gmra.mxu0 %v531
        %v1217 = vpop.f32.mrf.mxu0
        %v1218 = vadd.f32 %v1025, %v1217
        %v1219 = vpop.f32.mrf.mxu0
        %v1220 = vadd.f32 %v1027, %v1219
        %v1221 = vpop.f32.mrf.mxu0
        %v1222 = vadd.f32 %v1029, %v1221
        %v1223 = vpop.f32.mrf.mxu0
        %v1224 = vadd.f32 %v1031, %v1223
        %1225 = vmatprep.mubr.bf16.mxu0 %v536
        %1226 = vmatmul.mubr.bf16.gmra.mxu0 %v535
        %v1227 = vpop.f32.mrf.mxu0
        %v1228 = vadd.f32 %v1035, %v1227
        %v1229 = vpop.f32.mrf.mxu0
        %v1230 = vadd.f32 %v1037, %v1229
        %v1231 = vpop.f32.mrf.mxu0
        %v1232 = vadd.f32 %v1039, %v1231
        %v1233 = vpop.f32.mrf.mxu0
        %v1234 = vadd.f32 %v1041, %v1233
        %1235 = vmatprep.mubr.bf16.mxu0 %v540
        %1236 = vmatmul.mubr.bf16.gmra.mxu0 %v539
        %v1237 = vpop.f32.mrf.mxu0
        %v1238 = vadd.f32 %v1045, %v1237
        %v1239 = vpop.f32.mrf.mxu0
        %v1240 = vadd.f32 %v1047, %v1239
        %v1241 = vpop.f32.mrf.mxu0
        %v1242 = vadd.f32 %v1049, %v1241
        %v1243 = vpop.f32.mrf.mxu0
        %v1244 = vadd.f32 %v1051, %v1243
        %1245 = vmatprep.mubr.bf16.mxu0 %v544
        %1246 = vmatmul.mubr.bf16.gmra.mxu0 %v543
        %v1247 = vpop.f32.mrf.mxu0
        %v1248 = vadd.f32 %v1055, %v1247
        %v1249 = vpop.f32.mrf.mxu0
        %v1250 = vadd.f32 %v1057, %v1249
        %v1251 = vpop.f32.mrf.mxu0
        %v1252 = vadd.f32 %v1059, %v1251
        %v1253 = vpop.f32.mrf.mxu0
        %v1254 = vadd.f32 %v1061, %v1253
        %1255 = vmatprep.mubr.bf16.mxu0 %v548
        %1256 = vmatmul.mubr.bf16.gmra.mxu0 %v547
        %v1257 = vpop.f32.mrf.mxu0
        %v1258 = vadd.f32 %v1065, %v1257
        %v1259 = vpop.f32.mrf.mxu0
        %v1260 = vadd.f32 %v1067, %v1259
        %v1261 = vpop.f32.mrf.mxu0
        %v1262 = vadd.f32 %v1069, %v1261
        %v1263 = vpop.f32.mrf.mxu0
        %v1264 = vadd.f32 %v1071, %v1263
        %1265 = vdwg.mxu0
        %v1266 = vmax.f32 %v1108, 0.0
        %v1267 = vmax.f32 %v1110, 0.0
        %v1268 = vmax.f32 %v1112, 0.0
        %v1269 = vmax.f32 %v1114, 0.0
        %v1270 = vmax.f32 %v1118, 0.0
        %v1271 = vmax.f32 %v1120, 0.0
        %v1272 = vmax.f32 %v1122, 0.0
        %v1273 = vmax.f32 %v1124, 0.0
        %v1274 = vmax.f32 %v1128, 0.0
        %v1275 = vmax.f32 %v1130, 0.0
        %v1276 = vmax.f32 %v1132, 0.0
        %v1277 = vmax.f32 %v1134, 0.0
        %v1278 = vmax.f32 %v1138, 0.0
        %v1279 = vmax.f32 %v1140, 0.0
        %v1280 = vmax.f32 %v1142, 0.0
        %v1281 = vmax.f32 %v1144, 0.0
        %v1282 = vmax.f32 %v1148, 0.0
        %v1283 = vmax.f32 %v1150, 0.0
        %v1284 = vmax.f32 %v1152, 0.0
        %v1285 = vmax.f32 %v1154, 0.0
        %v1286 = vmax.f32 %v1158, 0.0
        %v1287 = vmax.f32 %v1160, 0.0
        %v1288 = vmax.f32 %v1162, 0.0
        %v1289 = vmax.f32 %v1164, 0.0
        %v1290 = vmax.f32 %v1168, 0.0
        %v1291 = vmax.f32 %v1170, 0.0
        %v1292 = vmax.f32 %v1172, 0.0
        %v1293 = vmax.f32 %v1174, 0.0
        %v1294 = vmax.f32 %v1178, 0.0
        %v1295 = vmax.f32 %v1180, 0.0
        %v1296 = vmax.f32 %v1182, 0.0
        %v1297 = vmax.f32 %v1184, 0.0
        %v1298 = vmax.f32 %v1188, 0.0
        %v1299 = vmax.f32 %v1190, 0.0
        %v1300 = vmax.f32 %v1192, 0.0
        %v1301 = vmax.f32 %v1194, 0.0
        %v1302 = vmax.f32 %v1198, 0.0
        %v1303 = vmax.f32 %v1200, 0.0
        %v1304 = vmax.f32 %v1202, 0.0
        %v1305 = vmax.f32 %v1204, 0.0
        %v1306 = vmax.f32 %v1208, 0.0
        %v1307 = vmax.f32 %v1210, 0.0
        %v1308 = vmax.f32 %v1212, 0.0
        %v1309 = vmax.f32 %v1214, 0.0
        %v1310 = vmax.f32 %v1218, 0.0
        %v1311 = vmax.f32 %v1220, 0.0
        %v1312 = vmax.f32 %v1222, 0.0
        %v1313 = vmax.f32 %v1224, 0.0
        %v1314 = vmax.f32 %v1228, 0.0
        %v1315 = vmax.f32 %v1230, 0.0
        %v1316 = vmax.f32 %v1232, 0.0
        %v1317 = vmax.f32 %v1234, 0.0
        %v1318 = vmax.f32 %v1238, 0.0
        %v1319 = vmax.f32 %v1240, 0.0
        %v1320 = vmax.f32 %v1242, 0.0
        %v1321 = vmax.f32 %v1244, 0.0
        %v1322 = vmax.f32 %v1248, 0.0
        %v1323 = vmax.f32 %v1250, 0.0
        %v1324 = vmax.f32 %v1252, 0.0
        %v1325 = vmax.f32 %v1254, 0.0
        %v1326 = vmax.f32 %v1258, 0.0
        %v1327 = vmax.f32 %v1260, 0.0
        %v1328 = vmax.f32 %v1262, 0.0
        %v1329 = vmax.f32 %v1264, 0.0
        %v1330 = vld [vmem:[#allocation7] sm:$0xf]
        %v1331 = vld [vmem:[#allocation7 + $0x4] sm:$0xf]
        %v1332 = vld [vmem:[#allocation7 + $0x8] sm:$0xf]
        %v1333 = vld [vmem:[#allocation7 + $0xc] sm:$0xf]
        %v1334 = vld [vmem:[#allocation7 + $0x10] sm:$0xf]
        %v1335 = vld [vmem:[#allocation7 + $0x14] sm:$0xf]
        %v1336 = vld [vmem:[#allocation7 + $0x18] sm:$0xf]
        %v1337 = vld [vmem:[#allocation7 + $0x1c] sm:$0xf]
        %v1338 = vld [vmem:[#allocation7 + $0x20] sm:$0xf]
        %v1339 = vld [vmem:[#allocation7 + $0x24] sm:$0xf]
        %v1340 = vld [vmem:[#allocation7 + $0x28] sm:$0xf]
        %v1341 = vld [vmem:[#allocation7 + $0x2c] sm:$0xf]
        %v1342 = vld [vmem:[#allocation7 + $0x30] sm:$0xf]
        %v1343 = vld [vmem:[#allocation7 + $0x34] sm:$0xf]
        %v1344 = vld [vmem:[#allocation7 + $0x38] sm:$0xf]
        %v1345 = vld [vmem:[#allocation7 + $0x3c] sm:$0xf]
        %v1346 = vld [vmem:[#allocation7 + $0x40] sm:$0xf]
        %v1347 = vld [vmem:[#allocation7 + $0x44] sm:$0xf]
        %v1348 = vld [vmem:[#allocation7 + $0x48] sm:$0xf]
        %v1349 = vld [vmem:[#allocation7 + $0x4c] sm:$0xf]
        %v1350 = vld [vmem:[#allocation7 + $0x50] sm:$0xf]
        %v1351 = vld [vmem:[#allocation7 + $0x54] sm:$0xf]
        %v1352 = vld [vmem:[#allocation7 + $0x58] sm:$0xf]
        %v1353 = vld [vmem:[#allocation7 + $0x5c] sm:$0xf]
        %v1354 = vld [vmem:[#allocation7 + $0x60] sm:$0xf]
        %v1355 = vld [vmem:[#allocation7 + $0x64] sm:$0xf]
        %v1356 = vld [vmem:[#allocation7 + $0x68] sm:$0xf]
        %v1357 = vld [vmem:[#allocation7 + $0x6c] sm:$0xf]
        %v1358 = vld [vmem:[#allocation7 + $0x70] sm:$0xf]
        %v1359 = vld [vmem:[#allocation7 + $0x74] sm:$0xf]
        %v1360 = vld [vmem:[#allocation7 + $0x78] sm:$0xf]
        %v1361 = vld [vmem:[#allocation7 + $0x7c] sm:$0xf]
        %v1362 = vld [vmem:[%s4] sm:$0x1]
        %v1363 = vpack.c.bf16 %v1268, %v1266
        %v1364 = vpack.c.bf16 %v1269, %v1267
        %v1365 = vpack.c.bf16 %v1272, %v1270
        %v1366 = vpack.c.bf16 %v1273, %v1271
        %v1367 = vpack.c.bf16 %v1276, %v1274
        %v1368 = vpack.c.bf16 %v1277, %v1275
        %v1369 = vpack.c.bf16 %v1280, %v1278
        %v1370 = vpack.c.bf16 %v1281, %v1279
        %v1371 = vpack.c.bf16 %v1284, %v1282
        %v1372 = vpack.c.bf16 %v1285, %v1283
        %v1373 = vpack.c.bf16 %v1288, %v1286
        %v1374 = vpack.c.bf16 %v1289, %v1287
        %v1375 = vpack.c.bf16 %v1292, %v1290
        %v1376 = vpack.c.bf16 %v1293, %v1291
        %v1377 = vpack.c.bf16 %v1296, %v1294
        %v1378 = vpack.c.bf16 %v1297, %v1295
        %v1379 = vpack.c.bf16 %v1300, %v1298
        %v1380 = vpack.c.bf16 %v1301, %v1299
        %v1381 = vpack.c.bf16 %v1304, %v1302
        %v1382 = vpack.c.bf16 %v1305, %v1303
        %v1383 = vpack.c.bf16 %v1308, %v1306
        %v1384 = vpack.c.bf16 %v1309, %v1307
        %v1385 = vpack.c.bf16 %v1312, %v1310
        %v1386 = vpack.c.bf16 %v1313, %v1311
        %v1387 = vpack.c.bf16 %v1316, %v1314
        %v1388 = vpack.c.bf16 %v1317, %v1315
        %v1389 = vpack.c.bf16 %v1320, %v1318
        %v1390 = vpack.c.bf16 %v1321, %v1319
        %v1391 = vpack.c.bf16 %v1324, %v1322
        %v1392 = vpack.c.bf16 %v1325, %v1323
        %v1393 = vpack.c.bf16 %v1328, %v1326
        %v1394 = vpack.c.bf16 %v1329, %v1327
        %v1396 = vlaneseq
        %v1397 = vshrl.u32 %v1396, 7
        %v1398 = vsub.s32 0, %v1397
        %v1399 = vrot.slane %v1362, %v1398
        %v1433 = vunpack.c.l.b16 %v1330
        %v1434 = vunpack.c.l.b16 %v1331
        %v1435 = vunpack.c.l.b16 %v1332
        %v1436 = vunpack.c.l.b16 %v1333
        %v1437 = vunpack.c.l.b16 %v1334
        %v1438 = vunpack.c.l.b16 %v1335
        %v1439 = vunpack.c.l.b16 %v1336
        %v1440 = vunpack.c.l.b16 %v1337
        %v1441 = vunpack.c.l.b16 %v1338
        %v1442 = vunpack.c.l.b16 %v1339
        %v1443 = vunpack.c.l.b16 %v1340
        %v1444 = vunpack.c.l.b16 %v1341
        %v1445 = vunpack.c.l.b16 %v1342
        %v1446 = vunpack.c.l.b16 %v1343
        %v1447 = vunpack.c.l.b16 %v1344
        %v1448 = vunpack.c.l.b16 %v1345
        %v1449 = vunpack.c.l.b16 %v1346
        %v1450 = vunpack.c.l.b16 %v1347
        %v1451 = vunpack.c.l.b16 %v1348
        %v1452 = vunpack.c.l.b16 %v1349
        %v1453 = vunpack.c.l.b16 %v1350
        %v1454 = vunpack.c.l.b16 %v1351
        %v1455 = vunpack.c.l.b16 %v1352
        %v1456 = vunpack.c.l.b16 %v1353
        %v1457 = vunpack.c.l.b16 %v1354
        %v1458 = vunpack.c.l.b16 %v1355
        %v1459 = vunpack.c.l.b16 %v1356
        %v1460 = vunpack.c.l.b16 %v1357
        %v1461 = vunpack.c.l.b16 %v1358
        %v1462 = vunpack.c.l.b16 %v1359
        %v1463 = vunpack.c.l.b16 %v1360
        %v1464 = vunpack.c.l.b16 %v1361
        %v1465 = vpack.c.b16 %v1434, %v1433
        %v1466 = vpack.c.b16 %v1436, %v1435
        %v1467 = vpack.c.b16 %v1438, %v1437
        %v1468 = vpack.c.b16 %v1440, %v1439
        %v1469 = vpack.c.b16 %v1442, %v1441
        %v1470 = vpack.c.b16 %v1444, %v1443
        %v1471 = vpack.c.b16 %v1446, %v1445
        %v1472 = vpack.c.b16 %v1448, %v1447
        %v1473 = vpack.c.b16 %v1450, %v1449
        %v1474 = vpack.c.b16 %v1452, %v1451
        %v1475 = vpack.c.b16 %v1454, %v1453
        %v1476 = vpack.c.b16 %v1456, %v1455
        %v1477 = vpack.c.b16 %v1458, %v1457
        %v1478 = vpack.c.b16 %v1460, %v1459
        %v1479 = vpack.c.b16 %v1462, %v1461
        %v1480 = vpack.c.b16 %v1464, %v1463
        %1497 = vmatprep.subr.bf16.mxu0 0
        %1498 = vmatpush1.bf16.msra.mxu0 %v1472
        %1499 = vmatprep.subr.bf16.mxu0 0
        %1500 = vmatpush1.bf16.msra.mxu0 %v1471
        %1501 = vmatprep.subr.bf16.mxu0 0
        %1502 = vmatpush1.bf16.msra.mxu0 %v1470
        %1503 = vmatprep.subr.bf16.mxu0 0
        %1504 = vmatpush1.bf16.msra.mxu0 %v1469
        %1505 = vmatprep.subr.bf16.mxu0 0
        %1506 = vmatpush1.bf16.msra.mxu0 %v1468
        %1507 = vmatprep.subr.bf16.mxu0 0
        %1508 = vmatpush1.bf16.msra.mxu0 %v1467
        %1509 = vmatprep.subr.bf16.mxu0 0
        %1510 = vmatpush1.bf16.msra.mxu0 %v1466
        %1511 = vmatprep.subr.bf16.mxu0 0
        %1512 = vmatpush1.bf16.msra.mxu0 %v1465
        %1513 = vmatprep.subr.bf16.mxu0 0
        %1514 = vmatpush2.bf16.msra.mxu0 %v1480
        %1515 = vmatprep.subr.bf16.mxu0 0
        %1516 = vmatpush2.bf16.msra.mxu0 %v1479
        %1517 = vmatprep.subr.bf16.mxu0 0
        %1518 = vmatpush2.bf16.msra.mxu0 %v1478
        %1519 = vmatprep.subr.bf16.mxu0 0
        %1520 = vmatpush2.bf16.msra.mxu0 %v1477
        %1521 = vmatprep.subr.bf16.mxu0 0
        %1522 = vmatpush2.bf16.msra.mxu0 %v1476
        %1523 = vmatprep.subr.bf16.mxu0 0
        %1524 = vmatpush2.bf16.msra.mxu0 %v1475
        %1525 = vmatprep.subr.bf16.mxu0 0
        %1526 = vmatpush2.bf16.msra.mxu0 %v1474
        %1527 = vmatprep.subr.bf16.mxu0 0
        %1528 = vmatpush2.bf16.msra.mxu0 %v1473
        %1529 = vmatprep.mubr.bf16.mxu0 %v1364
        %1530 = vmatmul.mubr.bf16.gmra.mxu0 %v1363
        %v1531 = vpop.f32.mrf.mxu0
        %v1532 = vadd.f32 %v1399, %v1531
        %v1533 = vpop.f32.mrf.mxu0
        %v1534 = vpop.f32.mrf.mxu0
        %v1535 = vadd.f32 %v1399, %v1534
        %v1536 = vpop.f32.mrf.mxu0
        %1537 = vmatprep.mubr.bf16.mxu0 %v1366
        %1538 = vmatmul.mubr.bf16.gmra.mxu0 %v1365
        %v1539 = vpop.f32.mrf.mxu0
        %v1540 = vadd.f32 %v1399, %v1539
        %v1541 = vpop.f32.mrf.mxu0
        %v1542 = vpop.f32.mrf.mxu0
        %v1543 = vadd.f32 %v1399, %v1542
        %v1544 = vpop.f32.mrf.mxu0
        %1545 = vmatprep.mubr.bf16.mxu0 %v1368
        %1546 = vmatmul.mubr.bf16.gmra.mxu0 %v1367
        %v1547 = vpop.f32.mrf.mxu0
        %v1548 = vadd.f32 %v1399, %v1547
        %v1549 = vpop.f32.mrf.mxu0
        %v1550 = vpop.f32.mrf.mxu0
        %v1551 = vadd.f32 %v1399, %v1550
        %v1552 = vpop.f32.mrf.mxu0
        %1553 = vmatprep.mubr.bf16.mxu0 %v1370
        %1554 = vmatmul.mubr.bf16.gmra.mxu0 %v1369
        %v1555 = vpop.f32.mrf.mxu0
        %v1556 = vadd.f32 %v1399, %v1555
        %v1557 = vpop.f32.mrf.mxu0
        %v1558 = vpop.f32.mrf.mxu0
        %v1559 = vadd.f32 %v1399, %v1558
        %v1560 = vpop.f32.mrf.mxu0
        %1561 = vmatprep.mubr.bf16.mxu0 %v1372
        %1562 = vmatmul.mubr.bf16.gmra.mxu0 %v1371
        %v1563 = vpop.f32.mrf.mxu0
        %v1564 = vadd.f32 %v1399, %v1563
        %v1565 = vpop.f32.mrf.mxu0
        %v1566 = vpop.f32.mrf.mxu0
        %v1567 = vadd.f32 %v1399, %v1566
        %v1568 = vpop.f32.mrf.mxu0
        %1569 = vmatprep.mubr.bf16.mxu0 %v1374
        %1570 = vmatmul.mubr.bf16.gmra.mxu0 %v1373
        %v1571 = vpop.f32.mrf.mxu0
        %v1572 = vadd.f32 %v1399, %v1571
        %v1573 = vpop.f32.mrf.mxu0
        %v1574 = vpop.f32.mrf.mxu0
        %v1575 = vadd.f32 %v1399, %v1574
        %v1576 = vpop.f32.mrf.mxu0
        %1577 = vmatprep.mubr.bf16.mxu0 %v1376
        %1578 = vmatmul.mubr.bf16.gmra.mxu0 %v1375
        %v1579 = vpop.f32.mrf.mxu0
        %v1580 = vadd.f32 %v1399, %v1579
        %v1581 = vpop.f32.mrf.mxu0
        %v1582 = vpop.f32.mrf.mxu0
        %v1583 = vadd.f32 %v1399, %v1582
        %v1584 = vpop.f32.mrf.mxu0
        %1585 = vmatprep.mubr.bf16.mxu0 %v1378
        %1586 = vmatmul.mubr.bf16.gmra.mxu0 %v1377
        %v1587 = vpop.f32.mrf.mxu0
        %v1588 = vadd.f32 %v1399, %v1587
        %v1589 = vpop.f32.mrf.mxu0
        %v1590 = vpop.f32.mrf.mxu0
        %v1591 = vadd.f32 %v1399, %v1590
        %v1592 = vpop.f32.mrf.mxu0
        %1593 = vmatprep.mubr.bf16.mxu0 %v1380
        %1594 = vmatmul.mubr.bf16.gmra.mxu0 %v1379
        %v1595 = vpop.f32.mrf.mxu0
        %v1596 = vadd.f32 %v1399, %v1595
        %v1597 = vpop.f32.mrf.mxu0
        %v1598 = vpop.f32.mrf.mxu0
        %v1599 = vadd.f32 %v1399, %v1598
        %v1600 = vpop.f32.mrf.mxu0
        %1601 = vmatprep.mubr.bf16.mxu0 %v1382
        %1602 = vmatmul.mubr.bf16.gmra.mxu0 %v1381
        %v1603 = vpop.f32.mrf.mxu0
        %v1604 = vadd.f32 %v1399, %v1603
        %v1605 = vpop.f32.mrf.mxu0
        %v1606 = vpop.f32.mrf.mxu0
        %v1607 = vadd.f32 %v1399, %v1606
        %v1608 = vpop.f32.mrf.mxu0
        %1609 = vmatprep.mubr.bf16.mxu0 %v1384
        %1610 = vmatmul.mubr.bf16.gmra.mxu0 %v1383
        %v1611 = vpop.f32.mrf.mxu0
        %v1612 = vadd.f32 %v1399, %v1611
        %v1613 = vpop.f32.mrf.mxu0
        %v1614 = vpop.f32.mrf.mxu0
        %v1615 = vadd.f32 %v1399, %v1614
        %v1616 = vpop.f32.mrf.mxu0
        %1617 = vmatprep.mubr.bf16.mxu0 %v1386
        %1618 = vmatmul.mubr.bf16.gmra.mxu0 %v1385
        %v1619 = vpop.f32.mrf.mxu0
        %v1620 = vadd.f32 %v1399, %v1619
        %v1621 = vpop.f32.mrf.mxu0
        %v1622 = vpop.f32.mrf.mxu0
        %v1623 = vadd.f32 %v1399, %v1622
        %v1624 = vpop.f32.mrf.mxu0
        %1625 = vmatprep.mubr.bf16.mxu0 %v1388
        %1626 = vmatmul.mubr.bf16.gmra.mxu0 %v1387
        %v1627 = vpop.f32.mrf.mxu0
        %v1628 = vadd.f32 %v1399, %v1627
        %v1629 = vpop.f32.mrf.mxu0
        %v1630 = vpop.f32.mrf.mxu0
        %v1631 = vadd.f32 %v1399, %v1630
        %v1632 = vpop.f32.mrf.mxu0
        %1633 = vmatprep.mubr.bf16.mxu0 %v1390
        %1634 = vmatmul.mubr.bf16.gmra.mxu0 %v1389
        %v1635 = vpop.f32.mrf.mxu0
        %v1636 = vadd.f32 %v1399, %v1635
        %v1637 = vpop.f32.mrf.mxu0
        %v1638 = vpop.f32.mrf.mxu0
        %v1639 = vadd.f32 %v1399, %v1638
        %v1640 = vpop.f32.mrf.mxu0
        %1641 = vmatprep.mubr.bf16.mxu0 %v1392
        %1642 = vmatmul.mubr.bf16.gmra.mxu0 %v1391
        %v1643 = vpop.f32.mrf.mxu0
        %v1644 = vadd.f32 %v1399, %v1643
        %v1645 = vpop.f32.mrf.mxu0
        %v1646 = vpop.f32.mrf.mxu0
        %v1647 = vadd.f32 %v1399, %v1646
        %v1648 = vpop.f32.mrf.mxu0
        %1649 = vmatprep.mubr.bf16.mxu0 %v1394
        %1650 = vmatmul.mubr.bf16.gmra.mxu0 %v1393
        %v1651 = vpop.f32.mrf.mxu0
        %v1652 = vadd.f32 %v1399, %v1651
        %v1653 = vpop.f32.mrf.mxu0
        %v1654 = vpop.f32.mrf.mxu0
        %v1655 = vadd.f32 %v1399, %v1654
        %v1656 = vpop.f32.mrf.mxu0
        %1657 = vdwg.mxu0
        %1658 = vst [vmem:[%s279] sm:$0xff] %v1532
        %1659 = vst [vmem:[%s279 + $0x8] sm:$0xff] %v1535
        %1660 = vst [vmem:[%s279 + $0x10] sm:$0xff] %v1540
        %1661 = vst [vmem:[%s279 + $0x18] sm:$0xff] %v1543
        %1662 = vst [vmem:[%s279 + $0x20] sm:$0xff] %v1548
        %1663 = vst [vmem:[%s279 + $0x28] sm:$0xff] %v1551
        %1664 = vst [vmem:[%s279 + $0x30] sm:$0xff] %v1556
        %1665 = vst [vmem:[%s279 + $0x38] sm:$0xff] %v1559
        %1666 = vst [vmem:[%s279 + $0x40] sm:$0xff] %v1564
        %1667 = vst [vmem:[%s279 + $0x48] sm:$0xff] %v1567
        %1668 = vst [vmem:[%s279 + $0x50] sm:$0xff] %v1572
        %1669 = vst [vmem:[%s279 + $0x58] sm:$0xff] %v1575
        %1670 = vst [vmem:[%s279 + $0x60] sm:$0xff] %v1580
        %1671 = vst [vmem:[%s279 + $0x68] sm:$0xff] %v1583
        %1672 = vst [vmem:[%s279 + $0x70] sm:$0xff] %v1588
        %1673 = vst [vmem:[%s279 + $0x78] sm:$0xff] %v1591
        %1674 = vst [vmem:[%s279 + $0x80] sm:$0xff] %v1596
        %1675 = vst [vmem:[%s279 + $0x88] sm:$0xff] %v1599
        %1676 = vst [vmem:[%s279 + $0x90] sm:$0xff] %v1604
        %1677 = vst [vmem:[%s279 + $0x98] sm:$0xff] %v1607
        %1678 = vst [vmem:[%s279 + $0xa0] sm:$0xff] %v1612
        %1679 = vst [vmem:[%s279 + $0xa8] sm:$0xff] %v1615
        %1680 = vst [vmem:[%s279 + $0xb0] sm:$0xff] %v1620
        %1681 = vst [vmem:[%s279 + $0xb8] sm:$0xff] %v1623
        %1682 = vst [vmem:[%s279 + $0xc0] sm:$0xff] %v1628
        %1683 = vst [vmem:[%s279 + $0xc8] sm:$0xff] %v1631
        %1684 = vst [vmem:[%s279 + $0xd0] sm:$0xff] %v1636
        %1685 = vst [vmem:[%s279 + $0xd8] sm:$0xff] %v1639
        %1686 = vst [vmem:[%s279 + $0xe0] sm:$0xff] %v1644
        %1687 = vst [vmem:[%s279 + $0xe8] sm:$0xff] %v1647
        %1688 = vst [vmem:[%s279 + $0xf0] sm:$0xff] %v1652
        %1689 = vst [vmem:[%s279 + $0xf8] sm:$0xff] %v1655
        %s1690 = sand.u32 %s141, 1
        %s1691 = scalar_lea.sflag [#allocation4], %s1690
        %s1692 = sand.u32 %s141, 1
        %s1693 = smul.addr %s1692, 256
        %s1694 = scalar_lea.vmem [#allocation8], %s1693
        // Predicated region
        $region53: #{tpu_custom_call.1} parent=39 // pred_check
          %p1695 = pneg %p151
        $region54: #{tpu_custom_call.1} parent=39 // pred_check_branch
          %1697 = sbr.rel (%p1695) target = $region56
        $region55: #{tpu_custom_call.1} parent=39 // pred_region
          %s1698 = smul.u32 32, %s23
          %s1699 = ssub.s32 38, %s1698
          %p1700 = scmp.lt.s32.totalorder %s1699, 32
          %s1701 = scalar_select %p1700, %s1699, 32
          %s1702 = smul.u32 128, %s1701
          %s1704 = ssub.s32 4096, %s1702
          %1705 = vsyncadd %s1691, %s1704
          %p1706 = scmp.ne.s32.totalorder 0, %s1702
          %s1707 = smul.addr %s1698, 128
          %s1708 = scalar_lea.hbm %s5, %s1707
          %s1709 = smul.u32 8, %s1701
          %s1710 = sshll.u32 %s1694, 4
          %s1711 = int_to_ptr.vmem [resolvable:$true] %s1710
          %s1712 = sshll.u32 %s1709, 4
          %1716 = dma.vmem_to_hbm [thread:$0]  (%p1706), %s1711, %s1712, %s1708, %s1691, 128, 128, 8
        $region56: #{tpu_custom_call.1} parent=39 // pred_fallthru
          _
      $region40: #{tpu_custom_call.1} parent=5 // pred_fallthru
        _
      %p1717 = scmp.le.s32.totalorder 2, %s18
      // Predicated region
      $region57: #{tpu_custom_call.1} parent=5 // pred_check
        %p1718 = pneg %p1717
      $region58: #{tpu_custom_call.1} parent=5 // pred_check_branch
        %1720 = sbr.rel (%p1718) target = $region60
      $region59: #{tpu_custom_call.1} parent=5 // pred_region
        %s1721 = ssub.s32 %s18, 2
        // Predicated region
        $region61: #{tpu_custom_call.1} parent=59 // pred_check
          %p1722 = pneg %p157
        $region62: #{tpu_custom_call.1} parent=59 // pred_check_branch
          %1724 = sbr.rel (%p1722) target = $region64
        $region63: #{tpu_custom_call.1} parent=59 // pred_region
          %s1725 = sand.u32 %s142, 1
          %s1726 = scalar_lea.sflag [#allocation4], %s1725
          %s1727 = sand.u32 %s142, 1
          %s1728 = smul.addr %s1727, 256
          %s1729 = scalar_lea.vmem [#allocation8], %s1728
          %1730 = dma.done %s1726, 4096
        $region64: #{tpu_custom_call.1} parent=59 // pred_fallthru
          _
      $region60: #{tpu_custom_call.1} parent=5 // pred_fallthru
        _
    $region6: #{tpu_custom_call.1} parent=1 // loop_footer
      %s22 = sadd.s32 1, %s18
    $region7: #{tpu_custom_call.1} parent=1 // loop_footer_branch
      %17 = sbr.rel target = $region3
    $region8: #{tpu_custom_call.1} parent=1 // loop_exit
      _
    %1731 = vsyncpa [#allocation3], 1
    %s1732 = scalar_lea.sflag [#allocation3], 1
    %1733 = vsyncpa %s1732, 1
    %1734 = vsyncpa [#allocation6], 1
    %1735 = vsyncpa [#allocation4], 1
    %s1736 = scalar_lea.sflag [#allocation4], 1
    %1737 = vsyncpa %s1736, 1

</llo_original>
